<compile_context>
chip_gen: v7x
topology: tpu7x:2x2x1
jax: 0.10.0
libtpu: 0.0.40
codegen_flags: <defaults>
</compile_context>

<pallas_src>
import jax
import jax.numpy as jnp
from jax import lax
from jax.experimental import pallas as pl
from jax.experimental.pallas import tpu as pltpu

NUM_ORGANS = 4            # num_organs / num_channels in SOPConfig
NUM_GNG_CLASSES = 3       # go-nogo classes / num_labels in SOPConfig
IN_CHANNELS = 3           # RGB input
LANES = 128
ROWS_ALIGN = 32           # int8 argmax plane needs (32, 128) tiling
MAX_ROWS_TILE = 1024      # 1024 * 128 = 131072 pixels per grid step
N_PIX_SPLITS = 2          # pixel-axis parallel split (dual TensorCore on v7x)
VMEM_LIMIT_BYTES = 48 * 1024 * 1024   # <= v7x 64 MiB, plenty on v5e/v6e
EPS = 1e-6                # empty-segment guard in pooled/(counts+eps)


def _round_up(n, m):
    return ((n + m - 1) // m) * m


def _tiling(num_pix, n_splits_req):
    """Pick (rows_tile, tiles_per_split, n_splits, padded_rows) for P pixels."""
    rows = pl.cdiv(num_pix, LANES)
    n_splits = max(1, min(n_splits_req, pl.cdiv(rows, ROWS_ALIGN)))
    rows_per_split = pl.cdiv(rows, n_splits)
    tiles_per_split = pl.cdiv(rows_per_split, MAX_ROWS_TILE)
    rows_tile = min(MAX_ROWS_TILE,
                    _round_up(pl.cdiv(rows_per_split, tiles_per_split), ROWS_ALIGN))
    rows_pad = n_splits * tiles_per_split * rows_tile
    return rows_tile, tiles_per_split, n_splits, rows_pad


def _plane_sum(p2d):
    """(rows, 128) -> (1, 1): lane reduction then sublane reduction (XLU, once per
    batch/split, not per tile)."""
    return jnp.sum(jnp.sum(p2d, axis=1, keepdims=True), axis=0, keepdims=True)


def _make_main_kernel(emit_organ, num_pix, rows_tile, tiles_per_split, needs_mask):
    """Fused kernel: organ 1x1-conv surrogate + (optional) softmax2d write-back +
    int8 argmax plane + go-nogo 1x1-conv surrogate + softmax + per-organ masked
    pooling accumulated into dense VMEM scratch over the pixel-tile grid axis."""

    def kernel(x_ref, wo_ref, bo_ref, wg_ref, bg_ref, *rest):
        if emit_organ:
            organ_ref, idx_ref, pooled_ref, counts_ref, pool_acc, cnt_acc = rest
        else:
            idx_ref, pooled_ref, counts_ref, pool_acc, cnt_acc = rest

        s = pl.program_id(1)             # pixel split (parallel, dual-TC on v7x)
        t = pl.program_id(2)             # tile within split (arbitrary / reduction)
        n_t = pl.num_programs(2)

        # ---- input channels: dense (rows_tile, 128) planes, upcast in-register
        x0 = x_ref[0, 0].astype(jnp.float32)
        x1 = x_ref[0, 1].astype(jnp.float32)
        x2 = x_ref[0, 2].astype(jnp.float32)

        # ---- organ segmentation surrogate: 1x1-conv as scalar FMAs (weights in SMEM)
        o = [wo_ref[k, 0] * x0 + wo_ref[k, 1] * x1 + wo_ref[k, 2] * x2 + bo_ref[k]
             for k in range(NUM_ORGANS)]
        m = jnp.maximum(jnp.maximum(o[0], o[1]), jnp.maximum(o[2], o[3]))

        if emit_organ:
            # softmax2d over the organ axis; per-plane dense stores (no concatenate).
            # NOTE: approx reciprocal (EUP) -> ~1e-3 relative deviation from exact
            # softmax; the argmax below uses the pre-softmax logits so the mask is
            # unaffected.
            e = [jnp.exp(ok - m) for ok in o]
            inv = pl.reciprocal(e[0] + e[1] + e[2] + e[3], approx=True)
            for k in range(NUM_ORGANS):
                organ_ref[0, k] = e[k] * inv

        # ---- argmax(dim=1), first-max tie break (torch-like); compare logits vs max
        idx = jnp.where(o[0] == m, 0,
              jnp.where(o[1] == m, 1,
              jnp.where(o[2] == m, 2, 3))).astype(jnp.int32)
        idx_ref[0, 0] = idx.astype(jnp.int8)          # 1 B/pixel argmax plane

        # ---- go-nogo backbone surrogate: 1x1-conv + softmax over 3 classes
        g = [wg_ref[c, 0] * x0 + wg_ref[c, 1] * x1 + wg_ref[c, 2] * x2 + bg_ref[c]
             for c in range(NUM_GNG_CLASSES)]
        gm = jnp.maximum(jnp.maximum(g[0], g[1]), g[2])
        ge = [jnp.exp(gc - gm) for gc in g]
        ginv = pl.reciprocal(ge[0] + ge[1] + ge[2], approx=True)
        gp = [gec * ginv for gec in ge]

        # ---- SOP masked pooling: pure-VPU select/accumulate into VMEM scratch
        @pl.when(t == 0)
        def _():
            pool_acc[...] = jnp.zeros_like(pool_acc)
            cnt_acc[...] = jnp.zeros_like(cnt_acc)

        if needs_mask:
            # validity mask for padded tail pixels (so counts/pooled stay exact)
            base = (s * tiles_per_split + t) * (rows_tile * LANES)
            row_iota = lax.broadcasted_iota(jnp.int32, (rows_tile, LANES), 0)
            lane_iota = lax.broadcasted_iota(jnp.int32, (rows_tile, LANES), 1)
            valid = (base + row_iota * LANES + lane_iota) < num_pix

        for k in range(NUM_ORGANS):
            sel = idx == k
            if needs_mask:
                sel = jnp.logical_and(sel, valid)
            cnt_acc[k] += sel.astype(jnp.float32)
            for c in range(NUM_GNG_CLASSES):
                pool_acc[k * NUM_GNG_CLASSES + c] += jnp.where(sel, gp[c], 0.0)

        # ---- single deferred cross-lane/sublane reduction, once per (batch, split)
        @pl.when(t == n_t - 1)
        def _():
            ci = lax.broadcasted_iota(jnp.int32, (1, NUM_GNG_CLASSES), 1)        # (1,3)
            ri = lax.broadcasted_iota(jnp.int32, (NUM_ORGANS, NUM_GNG_CLASSES), 0)  # (4,3)
            rows = []
            for k in range(NUM_ORGANS):
                sums = [_plane_sum(pool_acc[k * NUM_GNG_CLASSES + c])
                        for c in range(NUM_GNG_CLASSES)]                 # each (1,1)
                rows.append(jnp.where(ci == 0, sums[0],
                            jnp.where(ci == 1, sums[1], sums[2])))       # (1,3)
            pooled_ref[0, 0] = jnp.where(ri == 0, rows[0],
                               jnp.where(ri == 1, rows[1],
                               jnp.where(ri == 2, rows[2], rows[3])))    # (4,3)

            ri4 = lax.broadcasted_iota(jnp.int32, (NUM_ORGANS, 1), 0)    # (4,1)
            cs = [_plane_sum(cnt_acc[k]) for k in range(NUM_ORGANS)]     # each (1,1)
            counts_ref[0, 0] = jnp.where(ri4 == 0, cs[0],
                               jnp.where(ri4 == 1, cs[1],
                               jnp.where(ri4 == 2, cs[2], cs[3])))       # (4,1)

    return kernel


def _scatter_kernel(part_ref, idx_ref, out_ref):
    """Broadcast per-segment class scores onto each segment's pixels:
       out[c, pix] = part[idx[pix], c], with part held as SMEM scalars.
       Pure-VPU: 3 shared compares + 9 selects per pixel, no MXU/XLU work."""
    b = pl.program_id(0)
    idx = idx_ref[0, 0].astype(jnp.int32)        # (rows_tile, 128)
    is0 = idx == 0
    is1 = idx == 1
    is2 = idx == 2
    base = b * (NUM_ORGANS * NUM_GNG_CLASSES)
    for c in range(NUM_GNG_CLASSES):
        p0 = part_ref[base + 0 * NUM_GNG_CLASSES + c]
        p1 = part_ref[base + 1 * NUM_GNG_CLASSES + c]
        p2 = part_ref[base + 2 * NUM_GNG_CLASSES + c]
        p3 = part_ref[base + 3 * NUM_GNG_CLASSES + c]
        out_ref[0, c] = jnp.where(is0, p0,
                        jnp.where(is1, p1,
                        jnp.where(is2, p2, p3)))


def organ_gng_forward(x_nchw, params, get_organs=False, n_pix_splits=N_PIX_SPLITS):
    """Pallas implementation of OrganGNGSopSelectorModel.forward (simplified backbones)."""
    B, C, H, W = x_nchw.shape
    assert C == IN_CHANNELS
    P = H * W
    rows_tile, tiles_per_split, n_splits, rows_pad = _tiling(P, n_pix_splits)
    p_pad = rows_pad * LANES
    n_tiles_total = n_splits * tiles_per_split
    needs_mask = p_pad != P

    # keep native dtype; the kernel upcasts in-register
    x = x_nchw.reshape(B, C, P)
    if needs_mask:
        x = jnp.pad(x, ((0, 0), (0, 0), (0, p_pad - P)))
    x = x.reshape(B, C, rows_pad, LANES)

    wo = params["wo"].astype(jnp.float32)                        # (4, 3)
    bo = params["bo"].reshape(NUM_ORGANS).astype(jnp.float32)    # (4,)
    wg = params["wg"].astype(jnp.float32)                        # (3, 3)
    bg = params["bg"].reshape(NUM_GNG_CLASSES).astype(jnp.float32)

    pix_map = lambda b, s, t: (b, 0, s * tiles_per_split + t, 0)

    out_shapes = []
    out_specs = []
    if get_organs:
        out_shapes.append(jax.ShapeDtypeStruct((B, NUM_ORGANS, rows_pad, LANES),
                                               jnp.float32))
        out_specs.append(pl.BlockSpec((1, NUM_ORGANS, rows_tile, LANES), pix_map))
    out_shapes += [
        jax.ShapeDtypeStruct((B, 1, rows_pad, LANES), jnp.int8),                    # argmax
        jax.ShapeDtypeStruct((B, n_splits, NUM_ORGANS, NUM_GNG_CLASSES), jnp.float32),
        jax.ShapeDtypeStruct((B, n_splits, NUM_ORGANS, 1), jnp.float32),
    ]
    out_specs += [
        pl.BlockSpec((1, 1, rows_tile, LANES), pix_map),
        pl.BlockSpec((1, 1, NUM_ORGANS, NUM_GNG_CLASSES), lambda b, s, t: (b, s, 0, 0)),
        pl.BlockSpec((1, 1, NUM_ORGANS, 1), lambda b, s, t: (b, s, 0, 0)),
    ]

    results = pl.pallas_call(
        _make_main_kernel(get_organs, P, rows_tile, tiles_per_split, needs_mask),
        out_shape=tuple(out_shapes),
        grid_spec=pltpu.PrefetchScalarGridSpec(
            num_scalar_prefetch=0,
            grid=(B, n_splits, tiles_per_split),
            in_specs=[
                pl.BlockSpec((1, C, rows_tile, LANES), pix_map),
                pl.BlockSpec(memory_space=pltpu.MemorySpace.SMEM),   # wo
                pl.BlockSpec(memory_space=pltpu.MemorySpace.SMEM),   # bo
                pl.BlockSpec(memory_space=pltpu.MemorySpace.SMEM),   # wg
                pl.BlockSpec(memory_space=pltpu.MemorySpace.SMEM),   # bg
            ],
            out_specs=out_specs,
            scratch_shapes=[
                pltpu.VMEM((NUM_ORGANS * NUM_GNG_CLASSES, rows_tile, LANES), jnp.float32),
                pltpu.VMEM((NUM_ORGANS, rows_tile, LANES), jnp.float32),
            ],
        ),
        compiler_params=pltpu.CompilerParams(
            dimension_semantics=("parallel", "parallel", "arbitrary"),
            vmem_limit_bytes=VMEM_LIMIT_BYTES),
    )(x, wo, bo, wg, bg)

    if get_organs:
        organ_probs, idx, pooled, counts = results
    else:
        idx, pooled, counts = results
        organ_probs = None

    # masked-mean per-segment class scores (tiny (B,4,3) XLA op; sums the per-split
    # partials from the dual-TC pixel split).  Empty segments -> exactly zero scores.
    part = jnp.sum(pooled, axis=1) / (jnp.sum(counts, axis=1) + EPS)       # (B, 4, 3)
    part_flat = part.reshape(B * NUM_ORGANS * NUM_GNG_CLASSES).astype(jnp.float32)

    gng = pl.pallas_call(
        _scatter_kernel,
        out_shape=jax.ShapeDtypeStruct((B, NUM_GNG_CLASSES, rows_pad, LANES),
                                       jnp.float32),
        grid_spec=pltpu.PrefetchScalarGridSpec(
            num_scalar_prefetch=0,
            grid=(B, n_tiles_total),
            in_specs=[
                pl.BlockSpec(memory_space=pltpu.MemorySpace.SMEM),           # part scores
                pl.BlockSpec((1, 1, rows_tile, LANES), lambda b, t: (b, 0, t, 0)),
            ],
            out_specs=pl.BlockSpec((1, NUM_GNG_CLASSES, rows_tile, LANES),
                                   lambda b, t: (b, 0, t, 0)),
        ),
        compiler_params=pltpu.CompilerParams(
            dimension_semantics=("parallel", "parallel"),
            vmem_limit_bytes=VMEM_LIMIT_BYTES),
    )(part_flat, idx)

    gng_logits = gng.reshape(B, NUM_GNG_CLASSES, p_pad)[:, :, :P].reshape(
        B, NUM_GNG_CLASSES, H, W)

    if get_organs:
        # NOTE: like the torch reference (activation='softmax2d'), these "logits"
        # are post-softmax probabilities.
        organ_logits = organ_probs.reshape(B, NUM_ORGANS, p_pad)[:, :, :P].reshape(
            B, NUM_ORGANS, H, W)
        return organ_logits, gng_logits
    return gng_logits


def init_params(key):
    k1, k2, k3, k4 = jax.random.split(key, 4)
    return {
        "wo": 0.5 * jax.random.normal(k1, (NUM_ORGANS, IN_CHANNELS), jnp.float32),
        "bo": 0.1 * jax.random.normal(k2, (NUM_ORGANS,), jnp.float32),
        "wg": 0.5 * jax.random.normal(k3, (NUM_GNG_CLASSES, IN_CHANNELS), jnp.float32),
        "bg": 0.1 * jax.random.normal(k4, (NUM_GNG_CLASSES,), jnp.float32),
    }


def _reference_forward(x_nchw, params, get_organs=False):
    """Pure-JAX reference of the same simplified forward (exact softmax)."""
    B, C, H, W = x_nchw.shape
    x = x_nchw.reshape(B, C, H * W).astype(jnp.float32)
    o_logits = jnp.einsum("kc,bcp->bkp", params["wo"], x) + params["bo"][None, :, None]
    o_prob = jax.nn.softmax(o_logits, axis=1)
    idx = jnp.argmax(o_logits, axis=1)                                   # (B, P)
    g_logits = jnp.einsum("kc,bcp->bkp", params["wg"], x) + params["bg"][None, :, None]
    g_prob = jax.nn.softmax(g_logits, axis=1)                            # (B, 3, P)
    onehot = (idx[:, None, :] ==
              jnp.arange(NUM_ORGANS)[None, :, None]).astype(jnp.float32)  # (B, 4, P)
    pooled = jnp.einsum("bkp,bcp->bkc", onehot, g_prob)                   # (B, 4, 3)
    counts = jnp.sum(onehot, axis=2)[..., None]                           # (B, 4, 1)
    part = pooled / (counts + EPS)
    gng = jnp.einsum("bkc,bkp->bcp", part, onehot).reshape(B, NUM_GNG_CLASSES, H, W)
    if get_organs:
        return o_prob.reshape(B, NUM_ORGANS, H, W), gng
    return gng


if __name__ == "__main__":
    key = jax.random.PRNGKey(0)
    kp, kx = jax.random.split(key)
    params = init_params(kp)

    # small NCHW image batch: batch=2, channels=3, spatial=16x16
    x = jax.random.normal(kx, (2, IN_CHANNELS, 16, 16), jnp.float32)

    organ_logits, gng_logits = organ_gng_forward(x, params, get_organs=True)
    jax.block_until_ready((organ_logits, gng_logits))

    # gng-only fast path (no organ-probability write-back)
    gng_only = organ_gng_forward(x, params, get_organs=False)
    jax.block_until_ready(gng_only)

    assert organ_logits.shape == (2, NUM_ORGANS, 16, 16)
    assert gng_logits.shape == (2, NUM_GNG_CLASSES, 16, 16)
    assert gng_only.shape == (2, NUM_GNG_CLASSES, 16, 16)
    assert organ_logits.dtype == jnp.float32 and gng_logits.dtype == jnp.float32
    assert bool(jnp.allclose(gng_only, gng_logits, atol=1e-5, rtol=1e-5))

    # loose-tolerance parity vs. exact-softmax reference (kernel uses EUP approx
    # reciprocal in the two softmaxes; argmax/masks are computed on exact logits)
    ref_organ, ref_gng = _reference_forward(x, params, get_organs=True)
    assert bool(jnp.allclose(organ_logits, ref_organ, atol=5e-2))
    assert bool(jnp.allclose(gng_logits, ref_gng, atol=5e-2))

    print("KERNEL_OK")
</pallas_src>

<mosaic_0001>
module attributes {stable_mosaic.version = 11 : i64} {
  func.func @kernel(%arg0: i32, %arg1: i32, %arg2: i32, %arg3: memref<1x3x32x128xf32, #tpu.memory_space<vmem>>, %arg4: memref<4x3xf32, #tpu.memory_space<smem>>, %arg5: memref<4xf32, #tpu.memory_space<smem>>, %arg6: memref<3x3xf32, #tpu.memory_space<smem>>, %arg7: memref<3xf32, #tpu.memory_space<smem>>, %arg8: memref<1x4x32x128xf32, #tpu.memory_space<vmem>>, %arg9: memref<1x1x32x128xi8, #tpu.memory_space<vmem>>, %arg10: memref<1x1x4x3xf32, #tpu.memory_space<vmem>>, %arg11: memref<1x1x4x1xf32, #tpu.memory_space<vmem>>, %arg12: memref<12x32x128xf32, #tpu.memory_space<vmem>>, %arg13: memref<4x32x128xf32, #tpu.memory_space<vmem>>) attributes {dimension_semantics = [#tpu.dimension_semantics<parallel>, #tpu.dimension_semantics<parallel>, #tpu.dimension_semantics<arbitrary>], iteration_bounds = array<i64: 2, 1, 1>, scalar_prefetch = 0 : i64, scratch_operands = 2 : i64, tpu.core_type = #tpu.core_type<tc>, window_params = [{transform_indices = @transform_0, window_bounds = array<i64: 1, 3, 32, 128>}, {transform_indices = @transform_1, window_bounds = array<i64: 4, 3>}, {transform_indices = @transform_2, window_bounds = array<i64: 4>}, {transform_indices = @transform_3, window_bounds = array<i64: 3, 3>}, {transform_indices = @transform_4, window_bounds = array<i64: 3>}, {transform_indices = @transform_5, window_bounds = array<i64: 1, 4, 32, 128>}, {transform_indices = @transform_6, window_bounds = array<i64: 1, 1, 32, 128>}, {transform_indices = @transform_7, window_bounds = array<i64: 1, 1, 4, 3>}, {transform_indices = @transform_8, window_bounds = array<i64: 1, 1, 4, 1>}]} {
    %c0 = arith.constant 0 : index
    %c0_0 = arith.constant 0 : index
    %c0_1 = arith.constant 0 : index
    %c0_2 = arith.constant 0 : index
    %0 = vector.load %arg3[%c0, %c0_0, %c0_1, %c0_2] : memref<1x3x32x128xf32, #tpu.memory_space<vmem>>, vector<1x1x32x128xf32>
    %1 = vector.shape_cast %0 : vector<1x1x32x128xf32> to vector<32x128xf32>
    %c0_3 = arith.constant 0 : index
    %c1 = arith.constant 1 : index
    %c0_4 = arith.constant 0 : index
    %c0_5 = arith.constant 0 : index
    %2 = vector.load %arg3[%c0_3, %c1, %c0_4, %c0_5] : memref<1x3x32x128xf32, #tpu.memory_space<vmem>>, vector<1x1x32x128xf32>
    %3 = vector.shape_cast %2 : vector<1x1x32x128xf32> to vector<32x128xf32>
    %c0_6 = arith.constant 0 : index
    %c2 = arith.constant 2 : index
    %c0_7 = arith.constant 0 : index
    %c0_8 = arith.constant 0 : index
    %4 = vector.load %arg3[%c0_6, %c2, %c0_7, %c0_8] : memref<1x3x32x128xf32, #tpu.memory_space<vmem>>, vector<1x1x32x128xf32>
    %5 = vector.shape_cast %4 : vector<1x1x32x128xf32> to vector<32x128xf32>
    %c0_9 = arith.constant 0 : index
    %c0_10 = arith.constant 0 : index
    %6 = memref.load %arg4[%c0_9, %c0_10] : memref<4x3xf32, #tpu.memory_space<smem>>
    %7 = vector.broadcast %6 : f32 to vector<32x128xf32>
    %8 = arith.mulf %7, %1 : vector<32x128xf32>
    %c0_11 = arith.constant 0 : index
    %c1_12 = arith.constant 1 : index
    %9 = memref.load %arg4[%c0_11, %c1_12] : memref<4x3xf32, #tpu.memory_space<smem>>
    %10 = vector.broadcast %9 : f32 to vector<32x128xf32>
    %11 = arith.mulf %10, %3 : vector<32x128xf32>
    %12 = arith.addf %8, %11 : vector<32x128xf32>
    %c0_13 = arith.constant 0 : index
    %c2_14 = arith.constant 2 : index
    %13 = memref.load %arg4[%c0_13, %c2_14] : memref<4x3xf32, #tpu.memory_space<smem>>
    %14 = vector.broadcast %13 : f32 to vector<32x128xf32>
    %15 = arith.mulf %14, %5 : vector<32x128xf32>
    %16 = arith.addf %12, %15 : vector<32x128xf32>
    %c0_15 = arith.constant 0 : index
    %17 = memref.load %arg5[%c0_15] : memref<4xf32, #tpu.memory_space<smem>>
    %18 = vector.broadcast %17 : f32 to vector<32x128xf32>
    %19 = arith.addf %16, %18 : vector<32x128xf32>
    %c1_16 = arith.constant 1 : index
    %c0_17 = arith.constant 0 : index
    %20 = memref.load %arg4[%c1_16, %c0_17] : memref<4x3xf32, #tpu.memory_space<smem>>
    %21 = vector.broadcast %20 : f32 to vector<32x128xf32>
    %22 = arith.mulf %21, %1 : vector<32x128xf32>
    %c1_18 = arith.constant 1 : index
    %c1_19 = arith.constant 1 : index
    %23 = memref.load %arg4[%c1_18, %c1_19] : memref<4x3xf32, #tpu.memory_space<smem>>
    %24 = vector.broadcast %23 : f32 to vector<32x128xf32>
    %25 = arith.mulf %24, %3 : vector<32x128xf32>
    %26 = arith.addf %22, %25 : vector<32x128xf32>
    %c1_20 = arith.constant 1 : index
    %c2_21 = arith.constant 2 : index
    %27 = memref.load %arg4[%c1_20, %c2_21] : memref<4x3xf32, #tpu.memory_space<smem>>
    %28 = vector.broadcast %27 : f32 to vector<32x128xf32>
    %29 = arith.mulf %28, %5 : vector<32x128xf32>
    %30 = arith.addf %26, %29 : vector<32x128xf32>
    %c1_22 = arith.constant 1 : index
    %31 = memref.load %arg5[%c1_22] : memref<4xf32, #tpu.memory_space<smem>>
    %32 = vector.broadcast %31 : f32 to vector<32x128xf32>
    %33 = arith.addf %30, %32 : vector<32x128xf32>
    %c2_23 = arith.constant 2 : index
    %c0_24 = arith.constant 0 : index
    %34 = memref.load %arg4[%c2_23, %c0_24] : memref<4x3xf32, #tpu.memory_space<smem>>
    %35 = vector.broadcast %34 : f32 to vector<32x128xf32>
    %36 = arith.mulf %35, %1 : vector<32x128xf32>
    %c2_25 = arith.constant 2 : index
    %c1_26 = arith.constant 1 : index
    %37 = memref.load %arg4[%c2_25, %c1_26] : memref<4x3xf32, #tpu.memory_space<smem>>
    %38 = vector.broadcast %37 : f32 to vector<32x128xf32>
    %39 = arith.mulf %38, %3 : vector<32x128xf32>
    %40 = arith.addf %36, %39 : vector<32x128xf32>
    %c2_27 = arith.constant 2 : index
    %c2_28 = arith.constant 2 : index
    %41 = memref.load %arg4[%c2_27, %c2_28] : memref<4x3xf32, #tpu.memory_space<smem>>
    %42 = vector.broadcast %41 : f32 to vector<32x128xf32>
    %43 = arith.mulf %42, %5 : vector<32x128xf32>
    %44 = arith.addf %40, %43 : vector<32x128xf32>
    %c2_29 = arith.constant 2 : index
    %45 = memref.load %arg5[%c2_29] : memref<4xf32, #tpu.memory_space<smem>>
    %46 = vector.broadcast %45 : f32 to vector<32x128xf32>
    %47 = arith.addf %44, %46 : vector<32x128xf32>
    %c3 = arith.constant 3 : index
    %c0_30 = arith.constant 0 : index
    %48 = memref.load %arg4[%c3, %c0_30] : memref<4x3xf32, #tpu.memory_space<smem>>
    %49 = vector.broadcast %48 : f32 to vector<32x128xf32>
    %50 = arith.mulf %49, %1 : vector<32x128xf32>
    %c3_31 = arith.constant 3 : index
    %c1_32 = arith.constant 1 : index
    %51 = memref.load %arg4[%c3_31, %c1_32] : memref<4x3xf32, #tpu.memory_space<smem>>
    %52 = vector.broadcast %51 : f32 to vector<32x128xf32>
    %53 = arith.mulf %52, %3 : vector<32x128xf32>
    %54 = arith.addf %50, %53 : vector<32x128xf32>
    %c3_33 = arith.constant 3 : index
    %c2_34 = arith.constant 2 : index
    %55 = memref.load %arg4[%c3_33, %c2_34] : memref<4x3xf32, #tpu.memory_space<smem>>
    %56 = vector.broadcast %55 : f32 to vector<32x128xf32>
    %57 = arith.mulf %56, %5 : vector<32x128xf32>
    %58 = arith.addf %54, %57 : vector<32x128xf32>
    %c3_35 = arith.constant 3 : index
    %59 = memref.load %arg5[%c3_35] : memref<4xf32, #tpu.memory_space<smem>>
    %60 = vector.broadcast %59 : f32 to vector<32x128xf32>
    %61 = arith.addf %58, %60 : vector<32x128xf32>
    %62 = arith.maximumf %19, %33 : vector<32x128xf32>
    %63 = arith.maximumf %47, %61 : vector<32x128xf32>
    %64 = arith.maximumf %62, %63 : vector<32x128xf32>
    %65 = arith.subf %19, %64 : vector<32x128xf32>
    %66 = math.exp %65 : vector<32x128xf32>
    %67 = arith.subf %33, %64 : vector<32x128xf32>
    %68 = math.exp %67 : vector<32x128xf32>
    %69 = arith.subf %47, %64 : vector<32x128xf32>
    %70 = math.exp %69 : vector<32x128xf32>
    %71 = arith.subf %61, %64 : vector<32x128xf32>
    %72 = math.exp %71 : vector<32x128xf32>
    %73 = arith.addf %66, %68 : vector<32x128xf32>
    %74 = arith.addf %73, %70 : vector<32x128xf32>
    %75 = arith.addf %74, %72 : vector<32x128xf32>
    %76 = tpu.reciprocal %75 {approx = true} : vector<32x128xf32> -> vector<32x128xf32>
    %77 = arith.mulf %66, %76 : vector<32x128xf32>
    %c0_36 = arith.constant 0 : index
    %c0_37 = arith.constant 0 : index
    %c0_38 = arith.constant 0 : index
    %c0_39 = arith.constant 0 : index
    %78 = vector.load %arg8[%c0_36, %c0_37, %c0_38, %c0_39] : memref<1x4x32x128xf32, #tpu.memory_space<vmem>>, vector<1x1x32x128xf32>
    %79 = vector.shape_cast %78 : vector<1x1x32x128xf32> to vector<32x128xf32>
    %80 = vector.shape_cast %77 : vector<32x128xf32> to vector<1x1x32x128xf32>
    tpu.vector_store %arg8[%c0_36, %c0_37, %c0_38, %c0_39], %80 {strides = array<i32>} : memref<1x4x32x128xf32, #tpu.memory_space<vmem>>, vector<1x1x32x128xf32>,
    %81 = arith.mulf %68, %76 : vector<32x128xf32>
    %c0_40 = arith.constant 0 : index
    %c1_41 = arith.constant 1 : index
    %c0_42 = arith.constant 0 : index
    %c0_43 = arith.constant 0 : index
    %82 = vector.load %arg8[%c0_40, %c1_41, %c0_42, %c0_43] : memref<1x4x32x128xf32, #tpu.memory_space<vmem>>, vector<1x1x32x128xf32>
    %83 = vector.shape_cast %82 : vector<1x1x32x128xf32> to vector<32x128xf32>
    %84 = vector.shape_cast %81 : vector<32x128xf32> to vector<1x1x32x128xf32>
    tpu.vector_store %arg8[%c0_40, %c1_41, %c0_42, %c0_43], %84 {strides = array<i32>} : memref<1x4x32x128xf32, #tpu.memory_space<vmem>>, vector<1x1x32x128xf32>,
    %85 = arith.mulf %70, %76 : vector<32x128xf32>
    %c0_44 = arith.constant 0 : index
    %c2_45 = arith.constant 2 : index
    %c0_46 = arith.constant 0 : index
    %c0_47 = arith.constant 0 : index
    %86 = vector.load %arg8[%c0_44, %c2_45, %c0_46, %c0_47] : memref<1x4x32x128xf32, #tpu.memory_space<vmem>>, vector<1x1x32x128xf32>
    %87 = vector.shape_cast %86 : vector<1x1x32x128xf32> to vector<32x128xf32>
    %88 = vector.shape_cast %85 : vector<32x128xf32> to vector<1x1x32x128xf32>
    tpu.vector_store %arg8[%c0_44, %c2_45, %c0_46, %c0_47], %88 {strides = array<i32>} : memref<1x4x32x128xf32, #tpu.memory_space<vmem>>, vector<1x1x32x128xf32>,
    %89 = arith.mulf %72, %76 : vector<32x128xf32>
    %c0_48 = arith.constant 0 : index
    %c3_49 = arith.constant 3 : index
    %c0_50 = arith.constant 0 : index
    %c0_51 = arith.constant 0 : index
    %90 = vector.load %arg8[%c0_48, %c3_49, %c0_50, %c0_51] : memref<1x4x32x128xf32, #tpu.memory_space<vmem>>, vector<1x1x32x128xf32>
    %91 = vector.shape_cast %90 : vector<1x1x32x128xf32> to vector<32x128xf32>
    %92 = vector.shape_cast %89 : vector<32x128xf32> to vector<1x1x32x128xf32>
    tpu.vector_store %arg8[%c0_48, %c3_49, %c0_50, %c0_51], %92 {strides = array<i32>} : memref<1x4x32x128xf32, #tpu.memory_space<vmem>>, vector<1x1x32x128xf32>,
    %93 = arith.cmpf oeq, %19, %64 : vector<32x128xf32>
    %94 = arith.cmpf oeq, %33, %64 : vector<32x128xf32>
    %95 = arith.cmpf oeq, %47, %64 : vector<32x128xf32>
    %c2_i32 = arith.constant 2 : i32
    %c3_i32 = arith.constant 3 : i32
    %96 = vector.broadcast %c2_i32 : i32 to vector<32x128xi32>
    %97 = vector.broadcast %c3_i32 : i32 to vector<32x128xi32>
    %98 = arith.select %95, %96, %97 : vector<32x128xi1>, vector<32x128xi32>
    %c1_i32 = arith.constant 1 : i32
    %99 = vector.broadcast %c1_i32 : i32 to vector<32x128xi32>
    %100 = arith.select %94, %99, %98 : vector<32x128xi1>, vector<32x128xi32>
    %c0_i32 = arith.constant 0 : i32
    %101 = vector.broadcast %c0_i32 : i32 to vector<32x128xi32>
    %102 = arith.select %93, %101, %100 : vector<32x128xi1>, vector<32x128xi32>
    %103 = arith.trunci %102 : vector<32x128xi32> to vector<32x128xi8>
    %c0_52 = arith.constant 0 : index
    %c0_53 = arith.constant 0 : index
    %c0_54 = arith.constant 0 : index
    %c0_55 = arith.constant 0 : index
    %104 = vector.load %arg9[%c0_52, %c0_53, %c0_54, %c0_55] : memref<1x1x32x128xi8, #tpu.memory_space<vmem>>, vector<1x1x32x128xi8>
    %105 = vector.shape_cast %104 : vector<1x1x32x128xi8> to vector<32x128xi8>
    %106 = vector.shape_cast %103 : vector<32x128xi8> to vector<1x1x32x128xi8>
    tpu.vector_store %arg9[%c0_52, %c0_53, %c0_54, %c0_55], %106 {strides = array<i32>} : memref<1x1x32x128xi8, #tpu.memory_space<vmem>>, vector<1x1x32x128xi8>,
    %c0_56 = arith.constant 0 : index
    %c0_57 = arith.constant 0 : index
    %107 = memref.load %arg6[%c0_56, %c0_57] : memref<3x3xf32, #tpu.memory_space<smem>>
    %108 = vector.broadcast %107 : f32 to vector<32x128xf32>
    %109 = arith.mulf %108, %1 : vector<32x128xf32>
    %c0_58 = arith.constant 0 : index
    %c1_59 = arith.constant 1 : index
    %110 = memref.load %arg6[%c0_58, %c1_59] : memref<3x3xf32, #tpu.memory_space<smem>>
    %111 = vector.broadcast %110 : f32 to vector<32x128xf32>
    %112 = arith.mulf %111, %3 : vector<32x128xf32>
    %113 = arith.addf %109, %112 : vector<32x128xf32>
    %c0_60 = arith.constant 0 : index
    %c2_61 = arith.constant 2 : index
    %114 = memref.load %arg6[%c0_60, %c2_61] : memref<3x3xf32, #tpu.memory_space<smem>>
    %115 = vector.broadcast %114 : f32 to vector<32x128xf32>
    %116 = arith.mulf %115, %5 : vector<32x128xf32>
    %117 = arith.addf %113, %116 : vector<32x128xf32>
    %c0_62 = arith.constant 0 : index
    %118 = memref.load %arg7[%c0_62] : memref<3xf32, #tpu.memory_space<smem>>
    %119 = vector.broadcast %118 : f32 to vector<32x128xf32>
    %120 = arith.addf %117, %119 : vector<32x128xf32>
    %c1_63 = arith.constant 1 : index
    %c0_64 = arith.constant 0 : index
    %121 = memref.load %arg6[%c1_63, %c0_64] : memref<3x3xf32, #tpu.memory_space<smem>>
    %122 = vector.broadcast %121 : f32 to vector<32x128xf32>
    %123 = arith.mulf %122, %1 : vector<32x128xf32>
    %c1_65 = arith.constant 1 : index
    %c1_66 = arith.constant 1 : index
    %124 = memref.load %arg6[%c1_65, %c1_66] : memref<3x3xf32, #tpu.memory_space<smem>>
    %125 = vector.broadcast %124 : f32 to vector<32x128xf32>
    %126 = arith.mulf %125, %3 : vector<32x128xf32>
    %127 = arith.addf %123, %126 : vector<32x128xf32>
    %c1_67 = arith.constant 1 : index
    %c2_68 = arith.constant 2 : index
    %128 = memref.load %arg6[%c1_67, %c2_68] : memref<3x3xf32, #tpu.memory_space<smem>>
    %129 = vector.broadcast %128 : f32 to vector<32x128xf32>
    %130 = arith.mulf %129, %5 : vector<32x128xf32>
    %131 = arith.addf %127, %130 : vector<32x128xf32>
    %c1_69 = arith.constant 1 : index
    %132 = memref.load %arg7[%c1_69] : memref<3xf32, #tpu.memory_space<smem>>
    %133 = vector.broadcast %132 : f32 to vector<32x128xf32>
    %134 = arith.addf %131, %133 : vector<32x128xf32>
    %c2_70 = arith.constant 2 : index
    %c0_71 = arith.constant 0 : index
    %135 = memref.load %arg6[%c2_70, %c0_71] : memref<3x3xf32, #tpu.memory_space<smem>>
    %136 = vector.broadcast %135 : f32 to vector<32x128xf32>
    %137 = arith.mulf %136, %1 : vector<32x128xf32>
    %c2_72 = arith.constant 2 : index
    %c1_73 = arith.constant 1 : index
    %138 = memref.load %arg6[%c2_72, %c1_73] : memref<3x3xf32, #tpu.memory_space<smem>>
    %139 = vector.broadcast %138 : f32 to vector<32x128xf32>
    %140 = arith.mulf %139, %3 : vector<32x128xf32>
    %141 = arith.addf %137, %140 : vector<32x128xf32>
    %c2_74 = arith.constant 2 : index
    %c2_75 = arith.constant 2 : index
    %142 = memref.load %arg6[%c2_74, %c2_75] : memref<3x3xf32, #tpu.memory_space<smem>>
    %143 = vector.broadcast %142 : f32 to vector<32x128xf32>
    %144 = arith.mulf %143, %5 : vector<32x128xf32>
    %145 = arith.addf %141, %144 : vector<32x128xf32>
    %c2_76 = arith.constant 2 : index
    %146 = memref.load %arg7[%c2_76] : memref<3xf32, #tpu.memory_space<smem>>
    %147 = vector.broadcast %146 : f32 to vector<32x128xf32>
    %148 = arith.addf %145, %147 : vector<32x128xf32>
    %149 = arith.maximumf %120, %134 : vector<32x128xf32>
    %150 = arith.maximumf %149, %148 : vector<32x128xf32>
    %151 = arith.subf %120, %150 : vector<32x128xf32>
    %152 = math.exp %151 : vector<32x128xf32>
    %153 = arith.subf %134, %150 : vector<32x128xf32>
    %154 = math.exp %153 : vector<32x128xf32>
    %155 = arith.subf %148, %150 : vector<32x128xf32>
    %156 = math.exp %155 : vector<32x128xf32>
    %157 = arith.addf %152, %154 : vector<32x128xf32>
    %158 = arith.addf %157, %156 : vector<32x128xf32>
    %159 = tpu.reciprocal %158 {approx = true} : vector<32x128xf32> -> vector<32x128xf32>
    %160 = arith.mulf %152, %159 : vector<32x128xf32>
    %161 = arith.mulf %154, %159 : vector<32x128xf32>
    %162 = arith.mulf %156, %159 : vector<32x128xf32>
    %c0_i32_77 = arith.constant 0 : i32
    %163 = arith.cmpi eq, %arg2, %c0_i32_77 : i32
    %164 = arith.extui %163 : i1 to i32
    %c0_i32_78 = arith.constant 0 : i32
    %165 = arith.cmpi ne, %164, %c0_i32_78 : i32
    scf.if %165 {
      %cst_185 = arith.constant 0.000000e+00 : f32
      %321 = vector.broadcast %cst_185 : f32 to vector<12x32x128xf32>
      %c0_186 = arith.constant 0 : index
      %c0_187 = arith.constant 0 : index
      %c0_188 = arith.constant 0 : index
      %322 = vector.load %arg12[%c0_186, %c0_187, %c0_188] : memref<12x32x128xf32, #tpu.memory_space<vmem>>, vector<12x32x128xf32>
      tpu.vector_store %arg12[%c0_186, %c0_187, %c0_188], %321 {strides = array<i32>} : memref<12x32x128xf32, #tpu.memory_space<vmem>>, vector<12x32x128xf32>,
      %cst_189 = arith.constant 0.000000e+00 : f32
      %323 = vector.broadcast %cst_189 : f32 to vector<4x32x128xf32>
      %c0_190 = arith.constant 0 : index
      %c0_191 = arith.constant 0 : index
      %c0_192 = arith.constant 0 : index
      %324 = vector.load %arg13[%c0_190, %c0_191, %c0_192] : memref<4x32x128xf32, #tpu.memory_space<vmem>>, vector<4x32x128xf32>
      tpu.vector_store %arg13[%c0_190, %c0_191, %c0_192], %323 {strides = array<i32>} : memref<4x32x128xf32, #tpu.memory_space<vmem>>, vector<4x32x128xf32>,
    } else {
    }
    %c1_i32_79 = arith.constant 1 : i32
    %166 = arith.muli %arg1, %c1_i32_79 : i32
    %167 = arith.addi %166, %arg2 : i32
    %c4096_i32 = arith.constant 4096 : i32
    %168 = arith.muli %167, %c4096_i32 : i32
    %169 = tpu.iota {dimensions = array<i32: 0>} : vector<32x128xi32>
    %170 = tpu.iota {dimensions = array<i32: 1>} : vector<32x128xi32>
    %c128_i32 = arith.constant 128 : i32
    %171 = vector.broadcast %c128_i32 : i32 to vector<32x128xi32>
    %172 = arith.muli %169, %171 : vector<32x128xi32>
    %173 = vector.broadcast %168 : i32 to vector<32x128xi32>
    %174 = arith.addi %173, %172 : vector<32x128xi32>
    %175 = arith.addi %174, %170 : vector<32x128xi32>
    %c256_i32 = arith.constant 256 : i32
    %176 = vector.broadcast %c256_i32 : i32 to vector<32x128xi32>
    %177 = arith.cmpi slt, %175, %176 : vector<32x128xi32>
    %c0_i32_80 = arith.constant 0 : i32
    %178 = vector.broadcast %c0_i32_80 : i32 to vector<32x128xi32>
    %179 = arith.cmpi eq, %102, %178 : vector<32x128xi32>
    %180 = arith.andi %179, %177 : vector<32x128xi1>
    %c0_81 = arith.constant 0 : index
    %c0_82 = arith.constant 0 : index
    %c0_83 = arith.constant 0 : index
    %181 = vector.load %arg13[%c0_81, %c0_82, %c0_83] : memref<4x32x128xf32, #tpu.memory_space<vmem>>, vector<1x32x128xf32>
    %182 = vector.shape_cast %181 : vector<1x32x128xf32> to vector<32x128xf32>
    %183 = arith.extui %180 : vector<32x128xi1> to vector<32x128xi32>
    %184 = arith.sitofp %183 : vector<32x128xi32> to vector<32x128xf32>
    %185 = arith.addf %182, %184 : vector<32x128xf32>
    %c0_84 = arith.constant 0 : index
    %c0_85 = arith.constant 0 : index
    %c0_86 = arith.constant 0 : index
    %186 = vector.load %arg13[%c0_84, %c0_85, %c0_86] : memref<4x32x128xf32, #tpu.memory_space<vmem>>, vector<1x32x128xf32>
    %187 = vector.shape_cast %186 : vector<1x32x128xf32> to vector<32x128xf32>
    %188 = vector.shape_cast %185 : vector<32x128xf32> to vector<1x32x128xf32>
    tpu.vector_store %arg13[%c0_84, %c0_85, %c0_86], %188 {strides = array<i32>} : memref<4x32x128xf32, #tpu.memory_space<vmem>>, vector<1x32x128xf32>,
    %c0_87 = arith.constant 0 : index
    %c0_88 = arith.constant 0 : index
    %c0_89 = arith.constant 0 : index
    %189 = vector.load %arg12[%c0_87, %c0_88, %c0_89] : memref<12x32x128xf32, #tpu.memory_space<vmem>>, vector<1x32x128xf32>
    %190 = vector.shape_cast %189 : vector<1x32x128xf32> to vector<32x128xf32>
    %cst = arith.constant 0.000000e+00 : f32
    %191 = vector.broadcast %cst : f32 to vector<32x128xf32>
    %192 = arith.select %180, %160, %191 : vector<32x128xi1>, vector<32x128xf32>
    %193 = arith.addf %190, %192 : vector<32x128xf32>
    %c0_90 = arith.constant 0 : index
    %c0_91 = arith.constant 0 : index
    %c0_92 = arith.constant 0 : index
    %194 = vector.load %arg12[%c0_90, %c0_91, %c0_92] : memref<12x32x128xf32, #tpu.memory_space<vmem>>, vector<1x32x128xf32>
    %195 = vector.shape_cast %194 : vector<1x32x128xf32> to vector<32x128xf32>
    %196 = vector.shape_cast %193 : vector<32x128xf32> to vector<1x32x128xf32>
    tpu.vector_store %arg12[%c0_90, %c0_91, %c0_92], %196 {strides = array<i32>} : memref<12x32x128xf32, #tpu.memory_space<vmem>>, vector<1x32x128xf32>,
    %c1_93 = arith.constant 1 : index
    %c0_94 = arith.constant 0 : index
    %c0_95 = arith.constant 0 : index
    %197 = vector.load %arg12[%c1_93, %c0_94, %c0_95] : memref<12x32x128xf32, #tpu.memory_space<vmem>>, vector<1x32x128xf32>
    %198 = vector.shape_cast %197 : vector<1x32x128xf32> to vector<32x128xf32>
    %cst_96 = arith.constant 0.000000e+00 : f32
    %199 = vector.broadcast %cst_96 : f32 to vector<32x128xf32>
    %200 = arith.select %180, %161, %199 : vector<32x128xi1>, vector<32x128xf32>
    %201 = arith.addf %198, %200 : vector<32x128xf32>
    %c1_97 = arith.constant 1 : index
    %c0_98 = arith.constant 0 : index
    %c0_99 = arith.constant 0 : index
    %202 = vector.load %arg12[%c1_97, %c0_98, %c0_99] : memref<12x32x128xf32, #tpu.memory_space<vmem>>, vector<1x32x128xf32>
    %203 = vector.shape_cast %202 : vector<1x32x128xf32> to vector<32x128xf32>
    %204 = vector.shape_cast %201 : vector<32x128xf32> to vector<1x32x128xf32>
    tpu.vector_store %arg12[%c1_97, %c0_98, %c0_99], %204 {strides = array<i32>} : memref<12x32x128xf32, #tpu.memory_space<vmem>>, vector<1x32x128xf32>,
    %c2_100 = arith.constant 2 : index
    %c0_101 = arith.constant 0 : index
    %c0_102 = arith.constant 0 : index
    %205 = vector.load %arg12[%c2_100, %c0_101, %c0_102] : memref<12x32x128xf32, #tpu.memory_space<vmem>>, vector<1x32x128xf32>
    %206 = vector.shape_cast %205 : vector<1x32x128xf32> to vector<32x128xf32>
    %cst_103 = arith.constant 0.000000e+00 : f32
    %207 = vector.broadcast %cst_103 : f32 to vector<32x128xf32>
    %208 = arith.select %180, %162, %207 : vector<32x128xi1>, vector<32x128xf32>
    %209 = arith.addf %206, %208 : vector<32x128xf32>
    %c2_104 = arith.constant 2 : index
    %c0_105 = arith.constant 0 : index
    %c0_106 = arith.constant 0 : index
    %210 = vector.load %arg12[%c2_104, %c0_105, %c0_106] : memref<12x32x128xf32, #tpu.memory_space<vmem>>, vector<1x32x128xf32>
    %211 = vector.shape_cast %210 : vector<1x32x128xf32> to vector<32x128xf32>
    %212 = vector.shape_cast %209 : vector<32x128xf32> to vector<1x32x128xf32>
    tpu.vector_store %arg12[%c2_104, %c0_105, %c0_106], %212 {strides = array<i32>} : memref<12x32x128xf32, #tpu.memory_space<vmem>>, vector<1x32x128xf32>,
    %c1_i32_107 = arith.constant 1 : i32
    %213 = vector.broadcast %c1_i32_107 : i32 to vector<32x128xi32>
    %214 = arith.cmpi eq, %102, %213 : vector<32x128xi32>
    %215 = arith.andi %214, %177 : vector<32x128xi1>
    %c1_108 = arith.constant 1 : index
    %c0_109 = arith.constant 0 : index
    %c0_110 = arith.constant 0 : index
    %216 = vector.load %arg13[%c1_108, %c0_109, %c0_110] : memref<4x32x128xf32, #tpu.memory_space<vmem>>, vector<1x32x128xf32>
    %217 = vector.shape_cast %216 : vector<1x32x128xf32> to vector<32x128xf32>
    %218 = arith.extui %215 : vector<32x128xi1> to vector<32x128xi32>
    %219 = arith.sitofp %218 : vector<32x128xi32> to vector<32x128xf32>
    %220 = arith.addf %217, %219 : vector<32x128xf32>
    %c1_111 = arith.constant 1 : index
    %c0_112 = arith.constant 0 : index
    %c0_113 = arith.constant 0 : index
    %221 = vector.load %arg13[%c1_111, %c0_112, %c0_113] : memref<4x32x128xf32, #tpu.memory_space<vmem>>, vector<1x32x128xf32>
    %222 = vector.shape_cast %221 : vector<1x32x128xf32> to vector<32x128xf32>
    %223 = vector.shape_cast %220 : vector<32x128xf32> to vector<1x32x128xf32>
    tpu.vector_store %arg13[%c1_111, %c0_112, %c0_113], %223 {strides = array<i32>} : memref<4x32x128xf32, #tpu.memory_space<vmem>>, vector<1x32x128xf32>,
    %c3_114 = arith.constant 3 : index
    %c0_115 = arith.constant 0 : index
    %c0_116 = arith.constant 0 : index
    %224 = vector.load %arg12[%c3_114, %c0_115, %c0_116] : memref<12x32x128xf32, #tpu.memory_space<vmem>>, vector<1x32x128xf32>
    %225 = vector.shape_cast %224 : vector<1x32x128xf32> to vector<32x128xf32>
    %cst_117 = arith.constant 0.000000e+00 : f32
    %226 = vector.broadcast %cst_117 : f32 to vector<32x128xf32>
    %227 = arith.select %215, %160, %226 : vector<32x128xi1>, vector<32x128xf32>
    %228 = arith.addf %225, %227 : vector<32x128xf32>
    %c3_118 = arith.constant 3 : index
    %c0_119 = arith.constant 0 : index
    %c0_120 = arith.constant 0 : index
    %229 = vector.load %arg12[%c3_118, %c0_119, %c0_120] : memref<12x32x128xf32, #tpu.memory_space<vmem>>, vector<1x32x128xf32>
    %230 = vector.shape_cast %229 : vector<1x32x128xf32> to vector<32x128xf32>
    %231 = vector.shape_cast %228 : vector<32x128xf32> to vector<1x32x128xf32>
    tpu.vector_store %arg12[%c3_118, %c0_119, %c0_120], %231 {strides = array<i32>} : memref<12x32x128xf32, #tpu.memory_space<vmem>>, vector<1x32x128xf32>,
    %c4 = arith.constant 4 : index
    %c0_121 = arith.constant 0 : index
    %c0_122 = arith.constant 0 : index
    %232 = vector.load %arg12[%c4, %c0_121, %c0_122] : memref<12x32x128xf32, #tpu.memory_space<vmem>>, vector<1x32x128xf32>
    %233 = vector.shape_cast %232 : vector<1x32x128xf32> to vector<32x128xf32>
    %cst_123 = arith.constant 0.000000e+00 : f32
    %234 = vector.broadcast %cst_123 : f32 to vector<32x128xf32>
    %235 = arith.select %215, %161, %234 : vector<32x128xi1>, vector<32x128xf32>
    %236 = arith.addf %233, %235 : vector<32x128xf32>
    %c4_124 = arith.constant 4 : index
    %c0_125 = arith.constant 0 : index
    %c0_126 = arith.constant 0 : index
    %237 = vector.load %arg12[%c4_124, %c0_125, %c0_126] : memref<12x32x128xf32, #tpu.memory_space<vmem>>, vector<1x32x128xf32>
    %238 = vector.shape_cast %237 : vector<1x32x128xf32> to vector<32x128xf32>
    %239 = vector.shape_cast %236 : vector<32x128xf32> to vector<1x32x128xf32>
    tpu.vector_store %arg12[%c4_124, %c0_125, %c0_126], %239 {strides = array<i32>} : memref<12x32x128xf32, #tpu.memory_space<vmem>>, vector<1x32x128xf32>,
    %c5 = arith.constant 5 : index
    %c0_127 = arith.constant 0 : index
    %c0_128 = arith.constant 0 : index
    %240 = vector.load %arg12[%c5, %c0_127, %c0_128] : memref<12x32x128xf32, #tpu.memory_space<vmem>>, vector<1x32x128xf32>
    %241 = vector.shape_cast %240 : vector<1x32x128xf32> to vector<32x128xf32>
    %cst_129 = arith.constant 0.000000e+00 : f32
    %242 = vector.broadcast %cst_129 : f32 to vector<32x128xf32>
    %243 = arith.select %215, %162, %242 : vector<32x128xi1>, vector<32x128xf32>
    %244 = arith.addf %241, %243 : vector<32x128xf32>
    %c5_130 = arith.constant 5 : index
    %c0_131 = arith.constant 0 : index
    %c0_132 = arith.constant 0 : index
    %245 = vector.load %arg12[%c5_130, %c0_131, %c0_132] : memref<12x32x128xf32, #tpu.memory_space<vmem>>, vector<1x32x128xf32>
    %246 = vector.shape_cast %245 : vector<1x32x128xf32> to vector<32x128xf32>
    %247 = vector.shape_cast %244 : vector<32x128xf32> to vector<1x32x128xf32>
    tpu.vector_store %arg12[%c5_130, %c0_131, %c0_132], %247 {strides = array<i32>} : memref<12x32x128xf32, #tpu.memory_space<vmem>>, vector<1x32x128xf32>,
    %c2_i32_133 = arith.constant 2 : i32
    %248 = vector.broadcast %c2_i32_133 : i32 to vector<32x128xi32>
    %249 = arith.cmpi eq, %102, %248 : vector<32x128xi32>
    %250 = arith.andi %249, %177 : vector<32x128xi1>
    %c2_134 = arith.constant 2 : index
    %c0_135 = arith.constant 0 : index
    %c0_136 = arith.constant 0 : index
    %251 = vector.load %arg13[%c2_134, %c0_135, %c0_136] : memref<4x32x128xf32, #tpu.memory_space<vmem>>, vector<1x32x128xf32>
    %252 = vector.shape_cast %251 : vector<1x32x128xf32> to vector<32x128xf32>
    %253 = arith.extui %250 : vector<32x128xi1> to vector<32x128xi32>
    %254 = arith.sitofp %253 : vector<32x128xi32> to vector<32x128xf32>
    %255 = arith.addf %252, %254 : vector<32x128xf32>
    %c2_137 = arith.constant 2 : index
    %c0_138 = arith.constant 0 : index
    %c0_139 = arith.constant 0 : index
    %256 = vector.load %arg13[%c2_137, %c0_138, %c0_139] : memref<4x32x128xf32, #tpu.memory_space<vmem>>, vector<1x32x128xf32>
    %257 = vector.shape_cast %256 : vector<1x32x128xf32> to vector<32x128xf32>
    %258 = vector.shape_cast %255 : vector<32x128xf32> to vector<1x32x128xf32>
    tpu.vector_store %arg13[%c2_137, %c0_138, %c0_139], %258 {strides = array<i32>} : memref<4x32x128xf32, #tpu.memory_space<vmem>>, vector<1x32x128xf32>,
    %c6 = arith.constant 6 : index
    %c0_140 = arith.constant 0 : index
    %c0_141 = arith.constant 0 : index
    %259 = vector.load %arg12[%c6, %c0_140, %c0_141] : memref<12x32x128xf32, #tpu.memory_space<vmem>>, vector<1x32x128xf32>
    %260 = vector.shape_cast %259 : vector<1x32x128xf32> to vector<32x128xf32>
    %cst_142 = arith.constant 0.000000e+00 : f32
    %261 = vector.broadcast %cst_142 : f32 to vector<32x128xf32>
    %262 = arith.select %250, %160, %261 : vector<32x128xi1>, vector<32x128xf32>
    %263 = arith.addf %260, %262 : vector<32x128xf32>
    %c6_143 = arith.constant 6 : index
    %c0_144 = arith.constant 0 : index
    %c0_145 = arith.constant 0 : index
    %264 = vector.load %arg12[%c6_143, %c0_144, %c0_145] : memref<12x32x128xf32, #tpu.memory_space<vmem>>, vector<1x32x128xf32>
    %265 = vector.shape_cast %264 : vector<1x32x128xf32> to vector<32x128xf32>
    %266 = vector.shape_cast %263 : vector<32x128xf32> to vector<1x32x128xf32>
    tpu.vector_store %arg12[%c6_143, %c0_144, %c0_145], %266 {strides = array<i32>} : memref<12x32x128xf32, #tpu.memory_space<vmem>>, vector<1x32x128xf32>,
    %c7 = arith.constant 7 : index
    %c0_146 = arith.constant 0 : index
    %c0_147 = arith.constant 0 : index
    %267 = vector.load %arg12[%c7, %c0_146, %c0_147] : memref<12x32x128xf32, #tpu.memory_space<vmem>>, vector<1x32x128xf32>
    %268 = vector.shape_cast %267 : vector<1x32x128xf32> to vector<32x128xf32>
    %cst_148 = arith.constant 0.000000e+00 : f32
    %269 = vector.broadcast %cst_148 : f32 to vector<32x128xf32>
    %270 = arith.select %250, %161, %269 : vector<32x128xi1>, vector<32x128xf32>
    %271 = arith.addf %268, %270 : vector<32x128xf32>
    %c7_149 = arith.constant 7 : index
    %c0_150 = arith.constant 0 : index
    %c0_151 = arith.constant 0 : index
    %272 = vector.load %arg12[%c7_149, %c0_150, %c0_151] : memref<12x32x128xf32, #tpu.memory_space<vmem>>, vector<1x32x128xf32>
    %273 = vector.shape_cast %272 : vector<1x32x128xf32> to vector<32x128xf32>
    %274 = vector.shape_cast %271 : vector<32x128xf32> to vector<1x32x128xf32>
    tpu.vector_store %arg12[%c7_149, %c0_150, %c0_151], %274 {strides = array<i32>} : memref<12x32x128xf32, #tpu.memory_space<vmem>>, vector<1x32x128xf32>,
    %c8 = arith.constant 8 : index
    %c0_152 = arith.constant 0 : index
    %c0_153 = arith.constant 0 : index
    %275 = vector.load %arg12[%c8, %c0_152, %c0_153] : memref<12x32x128xf32, #tpu.memory_space<vmem>>, vector<1x32x128xf32>
    %276 = vector.shape_cast %275 : vector<1x32x128xf32> to vector<32x128xf32>
    %cst_154 = arith.constant 0.000000e+00 : f32
    %277 = vector.broadcast %cst_154 : f32 to vector<32x128xf32>
    %278 = arith.select %250, %162, %277 : vector<32x128xi1>, vector<32x128xf32>
    %279 = arith.addf %276, %278 : vector<32x128xf32>
    %c8_155 = arith.constant 8 : index
    %c0_156 = arith.constant 0 : index
    %c0_157 = arith.constant 0 : index
    %280 = vector.load %arg12[%c8_155, %c0_156, %c0_157] : memref<12x32x128xf32, #tpu.memory_space<vmem>>, vector<1x32x128xf32>
    %281 = vector.shape_cast %280 : vector<1x32x128xf32> to vector<32x128xf32>
    %282 = vector.shape_cast %279 : vector<32x128xf32> to vector<1x32x128xf32>
    tpu.vector_store %arg12[%c8_155, %c0_156, %c0_157], %282 {strides = array<i32>} : memref<12x32x128xf32, #tpu.memory_space<vmem>>, vector<1x32x128xf32>,
    %c3_i32_158 = arith.constant 3 : i32
    %283 = vector.broadcast %c3_i32_158 : i32 to vector<32x128xi32>
    %284 = arith.cmpi eq, %102, %283 : vector<32x128xi32>
    %285 = arith.andi %284, %177 : vector<32x128xi1>
    %c3_159 = arith.constant 3 : index
    %c0_160 = arith.constant 0 : index
    %c0_161 = arith.constant 0 : index
    %286 = vector.load %arg13[%c3_159, %c0_160, %c0_161] : memref<4x32x128xf32, #tpu.memory_space<vmem>>, vector<1x32x128xf32>
    %287 = vector.shape_cast %286 : vector<1x32x128xf32> to vector<32x128xf32>
    %288 = arith.extui %285 : vector<32x128xi1> to vector<32x128xi32>
    %289 = arith.sitofp %288 : vector<32x128xi32> to vector<32x128xf32>
    %290 = arith.addf %287, %289 : vector<32x128xf32>
    %c3_162 = arith.constant 3 : index
    %c0_163 = arith.constant 0 : index
    %c0_164 = arith.constant 0 : index
    %291 = vector.load %arg13[%c3_162, %c0_163, %c0_164] : memref<4x32x128xf32, #tpu.memory_space<vmem>>, vector<1x32x128xf32>
    %292 = vector.shape_cast %291 : vector<1x32x128xf32> to vector<32x128xf32>
    %293 = vector.shape_cast %290 : vector<32x128xf32> to vector<1x32x128xf32>
    tpu.vector_store %arg13[%c3_162, %c0_163, %c0_164], %293 {strides = array<i32>} : memref<4x32x128xf32, #tpu.memory_space<vmem>>, vector<1x32x128xf32>,
    %c9 = arith.constant 9 : index
    %c0_165 = arith.constant 0 : index
    %c0_166 = arith.constant 0 : index
    %294 = vector.load %arg12[%c9, %c0_165, %c0_166] : memref<12x32x128xf32, #tpu.memory_space<vmem>>, vector<1x32x128xf32>
    %295 = vector.shape_cast %294 : vector<1x32x128xf32> to vector<32x128xf32>
    %cst_167 = arith.constant 0.000000e+00 : f32
    %296 = vector.broadcast %cst_167 : f32 to vector<32x128xf32>
    %297 = arith.select %285, %160, %296 : vector<32x128xi1>, vector<32x128xf32>
    %298 = arith.addf %295, %297 : vector<32x128xf32>
    %c9_168 = arith.constant 9 : index
    %c0_169 = arith.constant 0 : index
    %c0_170 = arith.constant 0 : index
    %299 = vector.load %arg12[%c9_168, %c0_169, %c0_170] : memref<12x32x128xf32, #tpu.memory_space<vmem>>, vector<1x32x128xf32>
    %300 = vector.shape_cast %299 : vector<1x32x128xf32> to vector<32x128xf32>
    %301 = vector.shape_cast %298 : vector<32x128xf32> to vector<1x32x128xf32>
    tpu.vector_store %arg12[%c9_168, %c0_169, %c0_170], %301 {strides = array<i32>} : memref<12x32x128xf32, #tpu.memory_space<vmem>>, vector<1x32x128xf32>,
    %c10 = arith.constant 10 : index
    %c0_171 = arith.constant 0 : index
    %c0_172 = arith.constant 0 : index
    %302 = vector.load %arg12[%c10, %c0_171, %c0_172] : memref<12x32x128xf32, #tpu.memory_space<vmem>>, vector<1x32x128xf32>
    %303 = vector.shape_cast %302 : vector<1x32x128xf32> to vector<32x128xf32>
    %cst_173 = arith.constant 0.000000e+00 : f32
    %304 = vector.broadcast %cst_173 : f32 to vector<32x128xf32>
    %305 = arith.select %285, %161, %304 : vector<32x128xi1>, vector<32x128xf32>
    %306 = arith.addf %303, %305 : vector<32x128xf32>
    %c10_174 = arith.constant 10 : index
    %c0_175 = arith.constant 0 : index
    %c0_176 = arith.constant 0 : index
    %307 = vector.load %arg12[%c10_174, %c0_175, %c0_176] : memref<12x32x128xf32, #tpu.memory_space<vmem>>, vector<1x32x128xf32>
    %308 = vector.shape_cast %307 : vector<1x32x128xf32> to vector<32x128xf32>
    %309 = vector.shape_cast %306 : vector<32x128xf32> to vector<1x32x128xf32>
    tpu.vector_store %arg12[%c10_174, %c0_175, %c0_176], %309 {strides = array<i32>} : memref<12x32x128xf32, #tpu.memory_space<vmem>>, vector<1x32x128xf32>,
    %c11 = arith.constant 11 : index
    %c0_177 = arith.constant 0 : index
    %c0_178 = arith.constant 0 : index
    %310 = vector.load %arg12[%c11, %c0_177, %c0_178] : memref<12x32x128xf32, #tpu.memory_space<vmem>>, vector<1x32x128xf32>
    %311 = vector.shape_cast %310 : vector<1x32x128xf32> to vector<32x128xf32>
    %cst_179 = arith.constant 0.000000e+00 : f32
    %312 = vector.broadcast %cst_179 : f32 to vector<32x128xf32>
    %313 = arith.select %285, %162, %312 : vector<32x128xi1>, vector<32x128xf32>
    %314 = arith.addf %311, %313 : vector<32x128xf32>
    %c11_180 = arith.constant 11 : index
    %c0_181 = arith.constant 0 : index
    %c0_182 = arith.constant 0 : index
    %315 = vector.load %arg12[%c11_180, %c0_181, %c0_182] : memref<12x32x128xf32, #tpu.memory_space<vmem>>, vector<1x32x128xf32>
    %316 = vector.shape_cast %315 : vector<1x32x128xf32> to vector<32x128xf32>
    %317 = vector.shape_cast %314 : vector<32x128xf32> to vector<1x32x128xf32>
    tpu.vector_store %arg12[%c11_180, %c0_181, %c0_182], %317 {strides = array<i32>} : memref<12x32x128xf32, #tpu.memory_space<vmem>>, vector<1x32x128xf32>,
    %c0_i32_183 = arith.constant 0 : i32
    %318 = arith.cmpi eq, %arg2, %c0_i32_183 : i32
    %319 = arith.extui %318 : i1 to i32
    %c0_i32_184 = arith.constant 0 : i32
    %320 = arith.cmpi ne, %319, %c0_i32_184 : i32
    scf.if %320 {
      %321 = tpu.iota {dimensions = array<i32: 1>} : vector<1x3xi32>
      %322 = tpu.iota {dimensions = array<i32: 0>} : vector<4x3xi32>
      %c0_185 = arith.constant 0 : index
      %c0_186 = arith.constant 0 : index
      %c0_187 = arith.constant 0 : index
      %323 = vector.load %arg12[%c0_185, %c0_186, %c0_187] : memref<12x32x128xf32, #tpu.memory_space<vmem>>, vector<1x32x128xf32>
      %324 = vector.shape_cast %323 : vector<1x32x128xf32> to vector<32x128xf32>
      %cst_188 = arith.constant dense<0.000000e+00> : vector<32xf32>
      %325 = vector.multi_reduction <add>, %324, %cst_188 [1] : vector<32x128xf32> to vector<32xf32>
      %326 = vector.shape_cast %325 : vector<32xf32> to vector<32x1xf32>
      %cst_189 = arith.constant dense<0.000000e+00> : vector<1xf32>
      %327 = vector.multi_reduction <add>, %326, %cst_189 [0] : vector<32x1xf32> to vector<1xf32>
      %328 = vector.shape_cast %327 : vector<1xf32> to vector<1x1xf32>
      %c1_190 = arith.constant 1 : index
      %c0_191 = arith.constant 0 : index
      %c0_192 = arith.constant 0 : index
      %329 = vector.load %arg12[%c1_190, %c0_191, %c0_192] : memref<12x32x128xf32, #tpu.memory_space<vmem>>, vector<1x32x128xf32>
      %330 = vector.shape_cast %329 : vector<1x32x128xf32> to vector<32x128xf32>
      %cst_193 = arith.constant dense<0.000000e+00> : vector<32xf32>
      %331 = vector.multi_reduction <add>, %330, %cst_193 [1] : vector<32x128xf32> to vector<32xf32>
      %332 = vector.shape_cast %331 : vector<32xf32> to vector<32x1xf32>
      %cst_194 = arith.constant dense<0.000000e+00> : vector<1xf32>
      %333 = vector.multi_reduction <add>, %332, %cst_194 [0] : vector<32x1xf32> to vector<1xf32>
      %334 = vector.shape_cast %333 : vector<1xf32> to vector<1x1xf32>
      %c2_195 = arith.constant 2 : index
      %c0_196 = arith.constant 0 : index
      %c0_197 = arith.constant 0 : index
      %335 = vector.load %arg12[%c2_195, %c0_196, %c0_197] : memref<12x32x128xf32, #tpu.memory_space<vmem>>, vector<1x32x128xf32>
      %336 = vector.shape_cast %335 : vector<1x32x128xf32> to vector<32x128xf32>
      %cst_198 = arith.constant dense<0.000000e+00> : vector<32xf32>
      %337 = vector.multi_reduction <add>, %336, %cst_198 [1] : vector<32x128xf32> to vector<32xf32>
      %338 = vector.shape_cast %337 : vector<32xf32> to vector<32x1xf32>
      %cst_199 = arith.constant dense<0.000000e+00> : vector<1xf32>
      %339 = vector.multi_reduction <add>, %338, %cst_199 [0] : vector<32x1xf32> to vector<1xf32>
      %340 = vector.shape_cast %339 : vector<1xf32> to vector<1x1xf32>
      %c0_i32_200 = arith.constant 0 : i32
      %341 = vector.broadcast %c0_i32_200 : i32 to vector<1x3xi32>
      %342 = arith.cmpi eq, %321, %341 : vector<1x3xi32>
      %c1_i32_201 = arith.constant 1 : i32
      %343 = vector.broadcast %c1_i32_201 : i32 to vector<1x3xi32>
      %344 = arith.cmpi eq, %321, %343 : vector<1x3xi32>
      %345 = vector.shape_cast %334 : vector<1x1xf32> to vector<1x1xf32>
      %346 = vector.broadcast %345 : vector<1x1xf32> to vector<1x3xf32>
      %347 = vector.shape_cast %340 : vector<1x1xf32> to vector<1x1xf32>
      %348 = vector.broadcast %347 : vector<1x1xf32> to vector<1x3xf32>
      %349 = arith.select %344, %346, %348 : vector<1x3xi1>, vector<1x3xf32>
      %350 = vector.shape_cast %328 : vector<1x1xf32> to vector<1x1xf32>
      %351 = vector.broadcast %350 : vector<1x1xf32> to vector<1x3xf32>
      %352 = arith.select %342, %351, %349 : vector<1x3xi1>, vector<1x3xf32>
      %c3_202 = arith.constant 3 : index
      %c0_203 = arith.constant 0 : index
      %c0_204 = arith.constant 0 : index
      %353 = vector.load %arg12[%c3_202, %c0_203, %c0_204] : memref<12x32x128xf32, #tpu.memory_space<vmem>>, vector<1x32x128xf32>
      %354 = vector.shape_cast %353 : vector<1x32x128xf32> to vector<32x128xf32>
      %cst_205 = arith.constant dense<0.000000e+00> : vector<32xf32>
      %355 = vector.multi_reduction <add>, %354, %cst_205 [1] : vector<32x128xf32> to vector<32xf32>
      %356 = vector.shape_cast %355 : vector<32xf32> to vector<32x1xf32>
      %cst_206 = arith.constant dense<0.000000e+00> : vector<1xf32>
      %357 = vector.multi_reduction <add>, %356, %cst_206 [0] : vector<32x1xf32> to vector<1xf32>
      %358 = vector.shape_cast %357 : vector<1xf32> to vector<1x1xf32>
      %c4_207 = arith.constant 4 : index
      %c0_208 = arith.constant 0 : index
      %c0_209 = arith.constant 0 : index
      %359 = vector.load %arg12[%c4_207, %c0_208, %c0_209] : memref<12x32x128xf32, #tpu.memory_space<vmem>>, vector<1x32x128xf32>
      %360 = vector.shape_cast %359 : vector<1x32x128xf32> to vector<32x128xf32>
      %cst_210 = arith.constant dense<0.000000e+00> : vector<32xf32>
      %361 = vector.multi_reduction <add>, %360, %cst_210 [1] : vector<32x128xf32> to vector<32xf32>
      %362 = vector.shape_cast %361 : vector<32xf32> to vector<32x1xf32>
      %cst_211 = arith.constant dense<0.000000e+00> : vector<1xf32>
      %363 = vector.multi_reduction <add>, %362, %cst_211 [0] : vector<32x1xf32> to vector<1xf32>
      %364 = vector.shape_cast %363 : vector<1xf32> to vector<1x1xf32>
      %c5_212 = arith.constant 5 : index
      %c0_213 = arith.constant 0 : index
      %c0_214 = arith.constant 0 : index
      %365 = vector.load %arg12[%c5_212, %c0_213, %c0_214] : memref<12x32x128xf32, #tpu.memory_space<vmem>>, vector<1x32x128xf32>
      %366 = vector.shape_cast %365 : vector<1x32x128xf32> to vector<32x128xf32>
      %cst_215 = arith.constant dense<0.000000e+00> : vector<32xf32>
      %367 = vector.multi_reduction <add>, %366, %cst_215 [1] : vector<32x128xf32> to vector<32xf32>
      %368 = vector.shape_cast %367 : vector<32xf32> to vector<32x1xf32>
      %cst_216 = arith.constant dense<0.000000e+00> : vector<1xf32>
      %369 = vector.multi_reduction <add>, %368, %cst_216 [0] : vector<32x1xf32> to vector<1xf32>
      %370 = vector.shape_cast %369 : vector<1xf32> to vector<1x1xf32>
      %c0_i32_217 = arith.constant 0 : i32
      %371 = vector.broadcast %c0_i32_217 : i32 to vector<1x3xi32>
      %372 = arith.cmpi eq, %321, %371 : vector<1x3xi32>
      %c1_i32_218 = arith.constant 1 : i32
      %373 = vector.broadcast %c1_i32_218 : i32 to vector<1x3xi32>
      %374 = arith.cmpi eq, %321, %373 : vector<1x3xi32>
      %375 = vector.shape_cast %364 : vector<1x1xf32> to vector<1x1xf32>
      %376 = vector.broadcast %375 : vector<1x1xf32> to vector<1x3xf32>
      %377 = vector.shape_cast %370 : vector<1x1xf32> to vector<1x1xf32>
      %378 = vector.broadcast %377 : vector<1x1xf32> to vector<1x3xf32>
      %379 = arith.select %374, %376, %378 : vector<1x3xi1>, vector<1x3xf32>
      %380 = vector.shape_cast %358 : vector<1x1xf32> to vector<1x1xf32>
      %381 = vector.broadcast %380 : vector<1x1xf32> to vector<1x3xf32>
      %382 = arith.select %372, %381, %379 : vector<1x3xi1>, vector<1x3xf32>
      %c6_219 = arith.constant 6 : index
      %c0_220 = arith.constant 0 : index
      %c0_221 = arith.constant 0 : index
      %383 = vector.load %arg12[%c6_219, %c0_220, %c0_221] : memref<12x32x128xf32, #tpu.memory_space<vmem>>, vector<1x32x128xf32>
      %384 = vector.shape_cast %383 : vector<1x32x128xf32> to vector<32x128xf32>
      %cst_222 = arith.constant dense<0.000000e+00> : vector<32xf32>
      %385 = vector.multi_reduction <add>, %384, %cst_222 [1] : vector<32x128xf32> to vector<32xf32>
      %386 = vector.shape_cast %385 : vector<32xf32> to vector<32x1xf32>
      %cst_223 = arith.constant dense<0.000000e+00> : vector<1xf32>
      %387 = vector.multi_reduction <add>, %386, %cst_223 [0] : vector<32x1xf32> to vector<1xf32>
      %388 = vector.shape_cast %387 : vector<1xf32> to vector<1x1xf32>
      %c7_224 = arith.constant 7 : index
      %c0_225 = arith.constant 0 : index
      %c0_226 = arith.constant 0 : index
      %389 = vector.load %arg12[%c7_224, %c0_225, %c0_226] : memref<12x32x128xf32, #tpu.memory_space<vmem>>, vector<1x32x128xf32>
      %390 = vector.shape_cast %389 : vector<1x32x128xf32> to vector<32x128xf32>
      %cst_227 = arith.constant dense<0.000000e+00> : vector<32xf32>
      %391 = vector.multi_reduction <add>, %390, %cst_227 [1] : vector<32x128xf32> to vector<32xf32>
      %392 = vector.shape_cast %391 : vector<32xf32> to vector<32x1xf32>
      %cst_228 = arith.constant dense<0.000000e+00> : vector<1xf32>
      %393 = vector.multi_reduction <add>, %392, %cst_228 [0] : vector<32x1xf32> to vector<1xf32>
      %394 = vector.shape_cast %393 : vector<1xf32> to vector<1x1xf32>
      %c8_229 = arith.constant 8 : index
      %c0_230 = arith.constant 0 : index
      %c0_231 = arith.constant 0 : index
      %395 = vector.load %arg12[%c8_229, %c0_230, %c0_231] : memref<12x32x128xf32, #tpu.memory_space<vmem>>, vector<1x32x128xf32>
      %396 = vector.shape_cast %395 : vector<1x32x128xf32> to vector<32x128xf32>
      %cst_232 = arith.constant dense<0.000000e+00> : vector<32xf32>
      %397 = vector.multi_reduction <add>, %396, %cst_232 [1] : vector<32x128xf32> to vector<32xf32>
      %398 = vector.shape_cast %397 : vector<32xf32> to vector<32x1xf32>
      %cst_233 = arith.constant dense<0.000000e+00> : vector<1xf32>
      %399 = vector.multi_reduction <add>, %398, %cst_233 [0] : vector<32x1xf32> to vector<1xf32>
      %400 = vector.shape_cast %399 : vector<1xf32> to vector<1x1xf32>
      %c0_i32_234 = arith.constant 0 : i32
      %401 = vector.broadcast %c0_i32_234 : i32 to vector<1x3xi32>
      %402 = arith.cmpi eq, %321, %401 : vector<1x3xi32>
      %c1_i32_235 = arith.constant 1 : i32
      %403 = vector.broadcast %c1_i32_235 : i32 to vector<1x3xi32>
      %404 = arith.cmpi eq, %321, %403 : vector<1x3xi32>
      %405 = vector.shape_cast %394 : vector<1x1xf32> to vector<1x1xf32>
      %406 = vector.broadcast %405 : vector<1x1xf32> to vector<1x3xf32>
      %407 = vector.shape_cast %400 : vector<1x1xf32> to vector<1x1xf32>
      %408 = vector.broadcast %407 : vector<1x1xf32> to vector<1x3xf32>
      %409 = arith.select %404, %406, %408 : vector<1x3xi1>, vector<1x3xf32>
      %410 = vector.shape_cast %388 : vector<1x1xf32> to vector<1x1xf32>
      %411 = vector.broadcast %410 : vector<1x1xf32> to vector<1x3xf32>
      %412 = arith.select %402, %411, %409 : vector<1x3xi1>, vector<1x3xf32>
      %c9_236 = arith.constant 9 : index
      %c0_237 = arith.constant 0 : index
      %c0_238 = arith.constant 0 : index
      %413 = vector.load %arg12[%c9_236, %c0_237, %c0_238] : memref<12x32x128xf32, #tpu.memory_space<vmem>>, vector<1x32x128xf32>
      %414 = vector.shape_cast %413 : vector<1x32x128xf32> to vector<32x128xf32>
      %cst_239 = arith.constant dense<0.000000e+00> : vector<32xf32>
      %415 = vector.multi_reduction <add>, %414, %cst_239 [1] : vector<32x128xf32> to vector<32xf32>
      %416 = vector.shape_cast %415 : vector<32xf32> to vector<32x1xf32>
      %cst_240 = arith.constant dense<0.000000e+00> : vector<1xf32>
      %417 = vector.multi_reduction <add>, %416, %cst_240 [0] : vector<32x1xf32> to vector<1xf32>
      %418 = vector.shape_cast %417 : vector<1xf32> to vector<1x1xf32>
      %c10_241 = arith.constant 10 : index
      %c0_242 = arith.constant 0 : index
      %c0_243 = arith.constant 0 : index
      %419 = vector.load %arg12[%c10_241, %c0_242, %c0_243] : memref<12x32x128xf32, #tpu.memory_space<vmem>>, vector<1x32x128xf32>
      %420 = vector.shape_cast %419 : vector<1x32x128xf32> to vector<32x128xf32>
      %cst_244 = arith.constant dense<0.000000e+00> : vector<32xf32>
      %421 = vector.multi_reduction <add>, %420, %cst_244 [1] : vector<32x128xf32> to vector<32xf32>
      %422 = vector.shape_cast %421 : vector<32xf32> to vector<32x1xf32>
      %cst_245 = arith.constant dense<0.000000e+00> : vector<1xf32>
      %423 = vector.multi_reduction <add>, %422, %cst_245 [0] : vector<32x1xf32> to vector<1xf32>
      %424 = vector.shape_cast %423 : vector<1xf32> to vector<1x1xf32>
      %c11_246 = arith.constant 11 : index
      %c0_247 = arith.constant 0 : index
      %c0_248 = arith.constant 0 : index
      %425 = vector.load %arg12[%c11_246, %c0_247, %c0_248] : memref<12x32x128xf32, #tpu.memory_space<vmem>>, vector<1x32x128xf32>
      %426 = vector.shape_cast %425 : vector<1x32x128xf32> to vector<32x128xf32>
      %cst_249 = arith.constant dense<0.000000e+00> : vector<32xf32>
      %427 = vector.multi_reduction <add>, %426, %cst_249 [1] : vector<32x128xf32> to vector<32xf32>
      %428 = vector.shape_cast %427 : vector<32xf32> to vector<32x1xf32>
      %cst_250 = arith.constant dense<0.000000e+00> : vector<1xf32>
      %429 = vector.multi_reduction <add>, %428, %cst_250 [0] : vector<32x1xf32> to vector<1xf32>
      %430 = vector.shape_cast %429 : vector<1xf32> to vector<1x1xf32>
      %c0_i32_251 = arith.constant 0 : i32
      %431 = vector.broadcast %c0_i32_251 : i32 to vector<1x3xi32>
      %432 = arith.cmpi eq, %321, %431 : vector<1x3xi32>
      %c1_i32_252 = arith.constant 1 : i32
      %433 = vector.broadcast %c1_i32_252 : i32 to vector<1x3xi32>
      %434 = arith.cmpi eq, %321, %433 : vector<1x3xi32>
      %435 = vector.shape_cast %424 : vector<1x1xf32> to vector<1x1xf32>
      %436 = vector.broadcast %435 : vector<1x1xf32> to vector<1x3xf32>
      %437 = vector.shape_cast %430 : vector<1x1xf32> to vector<1x1xf32>
      %438 = vector.broadcast %437 : vector<1x1xf32> to vector<1x3xf32>
      %439 = arith.select %434, %436, %438 : vector<1x3xi1>, vector<1x3xf32>
      %440 = vector.shape_cast %418 : vector<1x1xf32> to vector<1x1xf32>
      %441 = vector.broadcast %440 : vector<1x1xf32> to vector<1x3xf32>
      %442 = arith.select %432, %441, %439 : vector<1x3xi1>, vector<1x3xf32>
      %c0_i32_253 = arith.constant 0 : i32
      %443 = vector.broadcast %c0_i32_253 : i32 to vector<4x3xi32>
      %444 = arith.cmpi eq, %322, %443 : vector<4x3xi32>
      %c1_i32_254 = arith.constant 1 : i32
      %445 = vector.broadcast %c1_i32_254 : i32 to vector<4x3xi32>
      %446 = arith.cmpi eq, %322, %445 : vector<4x3xi32>
      %c2_i32_255 = arith.constant 2 : i32
      %447 = vector.broadcast %c2_i32_255 : i32 to vector<4x3xi32>
      %448 = arith.cmpi eq, %322, %447 : vector<4x3xi32>
      %449 = vector.shape_cast %412 : vector<1x3xf32> to vector<1x3xf32>
      %450 = vector.broadcast %449 : vector<1x3xf32> to vector<4x3xf32>
      %451 = vector.shape_cast %442 : vector<1x3xf32> to vector<1x3xf32>
      %452 = vector.broadcast %451 : vector<1x3xf32> to vector<4x3xf32>
      %453 = arith.select %448, %450, %452 : vector<4x3xi1>, vector<4x3xf32>
      %454 = vector.shape_cast %382 : vector<1x3xf32> to vector<1x3xf32>
      %455 = vector.broadcast %454 : vector<1x3xf32> to vector<4x3xf32>
      %456 = arith.select %446, %455, %453 : vector<4x3xi1>, vector<4x3xf32>
      %457 = vector.shape_cast %352 : vector<1x3xf32> to vector<1x3xf32>
      %458 = vector.broadcast %457 : vector<1x3xf32> to vector<4x3xf32>
      %459 = arith.select %444, %458, %456 : vector<4x3xi1>, vector<4x3xf32>
      %c0_256 = arith.constant 0 : index
      %c0_257 = arith.constant 0 : index
      %c0_258 = arith.constant 0 : index
      %c0_259 = arith.constant 0 : index
      %460 = vector.load %arg10[%c0_256, %c0_257, %c0_258, %c0_259] : memref<1x1x4x3xf32, #tpu.memory_space<vmem>>, vector<1x1x4x3xf32>
      %461 = vector.shape_cast %460 : vector<1x1x4x3xf32> to vector<4x3xf32>
      %462 = vector.shape_cast %459 : vector<4x3xf32> to vector<1x1x4x3xf32>
      tpu.vector_store %arg10[%c0_256, %c0_257, %c0_258, %c0_259], %462 {strides = array<i32>} : memref<1x1x4x3xf32, #tpu.memory_space<vmem>>, vector<1x1x4x3xf32>,
      %463 = tpu.iota {dimensions = array<i32: 0>} : vector<4x1xi32>
      %c0_260 = arith.constant 0 : index
      %c0_261 = arith.constant 0 : index
      %c0_262 = arith.constant 0 : index
      %464 = vector.load %arg13[%c0_260, %c0_261, %c0_262] : memref<4x32x128xf32, #tpu.memory_space<vmem>>, vector<1x32x128xf32>
      %465 = vector.shape_cast %464 : vector<1x32x128xf32> to vector<32x128xf32>
      %cst_263 = arith.constant dense<0.000000e+00> : vector<32xf32>
      %466 = vector.multi_reduction <add>, %465, %cst_263 [1] : vector<32x128xf32> to vector<32xf32>
      %467 = vector.shape_cast %466 : vector<32xf32> to vector<32x1xf32>
      %cst_264 = arith.constant dense<0.000000e+00> : vector<1xf32>
      %468 = vector.multi_reduction <add>, %467, %cst_264 [0] : vector<32x1xf32> to vector<1xf32>
      %469 = vector.shape_cast %468 : vector<1xf32> to vector<1x1xf32>
      %c1_265 = arith.constant 1 : index
      %c0_266 = arith.constant 0 : index
      %c0_267 = arith.constant 0 : index
      %470 = vector.load %arg13[%c1_265, %c0_266, %c0_267] : memref<4x32x128xf32, #tpu.memory_space<vmem>>, vector<1x32x128xf32>
      %471 = vector.shape_cast %470 : vector<1x32x128xf32> to vector<32x128xf32>
      %cst_268 = arith.constant dense<0.000000e+00> : vector<32xf32>
      %472 = vector.multi_reduction <add>, %471, %cst_268 [1] : vector<32x128xf32> to vector<32xf32>
      %473 = vector.shape_cast %472 : vector<32xf32> to vector<32x1xf32>
      %cst_269 = arith.constant dense<0.000000e+00> : vector<1xf32>
      %474 = vector.multi_reduction <add>, %473, %cst_269 [0] : vector<32x1xf32> to vector<1xf32>
      %475 = vector.shape_cast %474 : vector<1xf32> to vector<1x1xf32>
      %c2_270 = arith.constant 2 : index
      %c0_271 = arith.constant 0 : index
      %c0_272 = arith.constant 0 : index
      %476 = vector.load %arg13[%c2_270, %c0_271, %c0_272] : memref<4x32x128xf32, #tpu.memory_space<vmem>>, vector<1x32x128xf32>
      %477 = vector.shape_cast %476 : vector<1x32x128xf32> to vector<32x128xf32>
      %cst_273 = arith.constant dense<0.000000e+00> : vector<32xf32>
      %478 = vector.multi_reduction <add>, %477, %cst_273 [1] : vector<32x128xf32> to vector<32xf32>
      %479 = vector.shape_cast %478 : vector<32xf32> to vector<32x1xf32>
      %cst_274 = arith.constant dense<0.000000e+00> : vector<1xf32>
      %480 = vector.multi_reduction <add>, %479, %cst_274 [0] : vector<32x1xf32> to vector<1xf32>
      %481 = vector.shape_cast %480 : vector<1xf32> to vector<1x1xf32>
      %c3_275 = arith.constant 3 : index
      %c0_276 = arith.constant 0 : index
      %c0_277 = arith.constant 0 : index
      %482 = vector.load %arg13[%c3_275, %c0_276, %c0_277] : memref<4x32x128xf32, #tpu.memory_space<vmem>>, vector<1x32x128xf32>
      %483 = vector.shape_cast %482 : vector<1x32x128xf32> to vector<32x128xf32>
      %cst_278 = arith.constant dense<0.000000e+00> : vector<32xf32>
      %484 = vector.multi_reduction <add>, %483, %cst_278 [1] : vector<32x128xf32> to vector<32xf32>
      %485 = vector.shape_cast %484 : vector<32xf32> to vector<32x1xf32>
      %cst_279 = arith.constant dense<0.000000e+00> : vector<1xf32>
      %486 = vector.multi_reduction <add>, %485, %cst_279 [0] : vector<32x1xf32> to vector<1xf32>
      %487 = vector.shape_cast %486 : vector<1xf32> to vector<1x1xf32>
      %c0_i32_280 = arith.constant 0 : i32
      %488 = vector.broadcast %c0_i32_280 : i32 to vector<4x1xi32>
      %489 = arith.cmpi eq, %463, %488 : vector<4x1xi32>
      %c1_i32_281 = arith.constant 1 : i32
      %490 = vector.broadcast %c1_i32_281 : i32 to vector<4x1xi32>
      %491 = arith.cmpi eq, %463, %490 : vector<4x1xi32>
      %c2_i32_282 = arith.constant 2 : i32
      %492 = vector.broadcast %c2_i32_282 : i32 to vector<4x1xi32>
      %493 = arith.cmpi eq, %463, %492 : vector<4x1xi32>
      %494 = vector.shape_cast %481 : vector<1x1xf32> to vector<1x1xf32>
      %495 = vector.broadcast %494 : vector<1x1xf32> to vector<4x1xf32>
      %496 = vector.shape_cast %487 : vector<1x1xf32> to vector<1x1xf32>
      %497 = vector.broadcast %496 : vector<1x1xf32> to vector<4x1xf32>
      %498 = arith.select %493, %495, %497 : vector<4x1xi1>, vector<4x1xf32>
      %499 = vector.shape_cast %475 : vector<1x1xf32> to vector<1x1xf32>
      %500 = vector.broadcast %499 : vector<1x1xf32> to vector<4x1xf32>
      %501 = arith.select %491, %500, %498 : vector<4x1xi1>, vector<4x1xf32>
      %502 = vector.shape_cast %469 : vector<1x1xf32> to vector<1x1xf32>
      %503 = vector.broadcast %502 : vector<1x1xf32> to vector<4x1xf32>
      %504 = arith.select %489, %503, %501 : vector<4x1xi1>, vector<4x1xf32>
      %c0_283 = arith.constant 0 : index
      %c0_284 = arith.constant 0 : index
      %c0_285 = arith.constant 0 : index
      %c0_286 = arith.constant 0 : index
      %505 = vector.load %arg11[%c0_283, %c0_284, %c0_285, %c0_286] : memref<1x1x4x1xf32, #tpu.memory_space<vmem>>, vector<1x1x4x1xf32>
      %506 = vector.shape_cast %505 : vector<1x1x4x1xf32> to vector<4x1xf32>
      %507 = vector.shape_cast %504 : vector<4x1xf32> to vector<1x1x4x1xf32>
      tpu.vector_store %arg11[%c0_283, %c0_284, %c0_285, %c0_286], %507 {strides = array<i32>} : memref<1x1x4x1xf32, #tpu.memory_space<vmem>>, vector<1x1x4x1xf32>,
    } else {
    }
    return
  }
  func.func @transform_0(%arg0: i32, %arg1: i32, %arg2: i32) -> (i32, i32, i32, i32) {
    %c1_i32 = arith.constant 1 : i32
    %0 = arith.muli %arg1, %c1_i32 : i32
    %1 = arith.addi %0, %arg2 : i32
    %c0_i32 = arith.constant 0 : i32
    %c0_i32_0 = arith.constant 0 : i32
    %c0_i32_1 = arith.constant 0 : i32
    return %arg0, %c0_i32, %1, %c0_i32_0 : i32, i32, i32, i32
  }
  func.func @transform_1(%arg0: i32, %arg1: i32, %arg2: i32) -> (i32, i32) {
    %c0_i32 = arith.constant 0 : i32
    %c0_i32_0 = arith.constant 0 : i32
    %c0_i32_1 = arith.constant 0 : i32
    return %c0_i32, %c0_i32_0 : i32, i32
  }
  func.func @transform_2(%arg0: i32, %arg1: i32, %arg2: i32) -> i32 {
    %c0_i32 = arith.constant 0 : i32
    %c0_i32_0 = arith.constant 0 : i32
    return %c0_i32 : i32
  }
  func.func @transform_3(%arg0: i32, %arg1: i32, %arg2: i32) -> (i32, i32) {
    %c0_i32 = arith.constant 0 : i32
    %c0_i32_0 = arith.constant 0 : i32
    %c0_i32_1 = arith.constant 0 : i32
    return %c0_i32, %c0_i32_0 : i32, i32
  }
  func.func @transform_4(%arg0: i32, %arg1: i32, %arg2: i32) -> i32 {
    %c0_i32 = arith.constant 0 : i32
    %c0_i32_0 = arith.constant 0 : i32
    return %c0_i32 : i32
  }
  func.func @transform_5(%arg0: i32, %arg1: i32, %arg2: i32) -> (i32, i32, i32, i32) {
    %c1_i32 = arith.constant 1 : i32
    %0 = arith.muli %arg1, %c1_i32 : i32
    %1 = arith.addi %0, %arg2 : i32
    %c0_i32 = arith.constant 0 : i32
    %c0_i32_0 = arith.constant 0 : i32
    %c0_i32_1 = arith.constant 0 : i32
    return %arg0, %c0_i32, %1, %c0_i32_0 : i32, i32, i32, i32
  }
  func.func @transform_6(%arg0: i32, %arg1: i32, %arg2: i32) -> (i32, i32, i32, i32) {
    %c1_i32 = arith.constant 1 : i32
    %0 = arith.muli %arg1, %c1_i32 : i32
    %1 = arith.addi %0, %arg2 : i32
    %c0_i32 = arith.constant 0 : i32
    %c0_i32_0 = arith.constant 0 : i32
    %c0_i32_1 = arith.constant 0 : i32
    return %arg0, %c0_i32, %1, %c0_i32_0 : i32, i32, i32, i32
  }
  func.func @transform_7(%arg0: i32, %arg1: i32, %arg2: i32) -> (i32, i32, i32, i32) {
    %c0_i32 = arith.constant 0 : i32
    %c0_i32_0 = arith.constant 0 : i32
    %c0_i32_1 = arith.constant 0 : i32
    return %arg0, %arg1, %c0_i32, %c0_i32_0 : i32, i32, i32, i32
  }
  func.func @transform_8(%arg0: i32, %arg1: i32, %arg2: i32) -> (i32, i32, i32, i32) {
    %c0_i32 = arith.constant 0 : i32
    %c0_i32_0 = arith.constant 0 : i32
    %c0_i32_1 = arith.constant 0 : i32
    return %arg0, %arg1, %c0_i32, %c0_i32_0 : i32, i32, i32, i32
  }
}

</mosaic_0001>

<llo_original>
// kernel: tpu_custom_call.1
$region0: #{tpu_custom_call.1}
  #allocation0 [shape = 'u32[]', space=smem, size = 0x4, offset = 0x4, fixed_abs, tag = 'smem constant byte address 0x4 - core index']
  #allocation1 [shape = 'u32[144,128]{1,0:T(1,128)}', space=vmem, size = 0x12000, scoped, tag = 'internal scratch']
  #allocation2 [shape = 'f32[12,32,128]{2,1,0:T(8,128)}', space=vmem, size = 0x30000, scoped, tag = 'scratch operand']
  #allocation3 [shape = 'f32[4,32,128]{2,1,0:T(8,128)}', space=vmem, size = 0x10000, scoped, tag = 'scratch operand']
  %s0 = inlined_call_operand.hbm [shape: f32[2,3,32,128], index: 0, kind: input, shape index: {}]
  %s1 = inlined_call_operand.hbm [shape: f32[4,3], index: 1, kind: input, shape index: {}]
  %s2 = inlined_call_operand.vmem [shape: f32[4], index: 2, kind: input, shape index: {}]
  %s3 = inlined_call_operand.vmem [shape: f32[3,3], index: 3, kind: input, shape index: {}]
  %s4 = inlined_call_operand.vmem [shape: f32[3], index: 4, kind: input, shape index: {}]
  %s5 = inlined_call_operand.hbm [shape: f32[2,4,32,128], index: 5, kind: output, shape index: {0}]
  %s6 = inlined_call_operand.hbm [shape: s8[2,1,32,128], index: 6, kind: output, shape index: {1}]
  %s7 = inlined_call_operand.vmem [shape: f32[2,1,4,3], index: 7, kind: output, shape index: {2}]
  %s8 = inlined_call_operand.vmem [shape: f32[2,1,4,1], index: 8, kind: output, shape index: {3}]
  %9 = xla_tuple %s5, %s6, %s7, %s8
  %s10 = sld [smem:[#allocation0]]
  $region105: #{tpu_custom_call.1} parent=0
    _
  %s12 = ssub.s32 1, %s10
  %s13 = scalar_select 0, %s12, %s10
  $region1: #{tpu_custom_call.1} parent=0
    #allocation4 [shape = 'u8[98304]{0}', space=vmem, size = 0x18000, scoped, tag = 'input window, operand 0']
    #allocation5 [shape = 's32[2]{0}', space=sflag, size = 0x8, scoped, tag = 'scoped memory for tpu_custom_call.1']
    #allocation6 [shape = 's32[2]{0}', space=sflag, size = 0x8, scoped, tag = 'scoped memory for tpu_custom_call.1']
    #allocation7 [shape = 's32[2]{0}', space=sflag, size = 0x8, scoped, tag = 'scoped memory for tpu_custom_call.1']
    #allocation8 [shape = 's32[2]{0}', space=sflag, size = 0x8, scoped, tag = 'scoped memory for tpu_custom_call.1']
    #allocation9 [shape = 'u8[2048]{0}', space=smem, size = 0x800, scoped, tag = 'input window, operand 1, single buffered']
    #allocation10 [shape = 'u8[512]{0}', space=smem, size = 0x200, scoped, tag = 'input window, operand 2, single buffered']
    #allocation11 [shape = 'u8[2048]{0}', space=smem, size = 0x800, scoped, tag = 'input window, operand 3, single buffered']
    #allocation12 [shape = 's32[1]{0}', space=sflag, size = 0x4, scoped, tag = 'scoped memory for tpu_custom_call.1']
    #allocation13 [shape = 'u8[512]{0}', space=smem, size = 0x200, scoped, tag = 'input window, operand 4, single buffered']
    #allocation14 [shape = 'u8[131072]{0}', space=vmem, size = 0x20000, scoped, tag = 'output window, operand 0']
    #allocation15 [shape = 'u8[8192]{0}', space=vmem, size = 0x2000, scoped, tag = 'output window, operand 1']
    #allocation16 [shape = 's32[2]{0}', space=sflag, size = 0x8, scoped, tag = 'scoped memory for tpu_custom_call.1']
    %14 = vsyncpa [#allocation5], 0
    %s15 = scalar_lea.sflag [#allocation5], 1
    %16 = vsyncpa %s15, 0
    %17 = vsyncpa [#allocation7], 0
    %18 = vsyncpa [#allocation8], 0
    %19 = vsyncpa [#allocation12], 0
    %20 = vsyncpa [#allocation6], 0
    %s21 = scalar_lea.sflag [#allocation6], 1
    %22 = vsyncpa %s21, 0
    %23 = vsyncpa [#allocation16], 0
    %s24 = scalar_lea.sflag [#allocation16], 1
    %25 = vsyncpa %s24, 0
    loop: start=0, step=1, limit=4
    $region2: #{tpu_custom_call.1} parent=1 // loop_pre_header
      _
    $region3: #{tpu_custom_call.1} parent=1 // loop_header
      %s27 = sphi 0, %s31
      %p28 = scmp.ge.s32.totalorder %s27, 4
      %s34 = sphi 0, %s53
      %s35 = sphi 0, %s49
      %s36 = sphi 0, %s45
      %s37 = sphi 0, %s34
      %s38 = sphi 0, %s35
      %s39 = sphi 0, %s36
      %s40 = sphi 0, %s37
      %s41 = sphi 0, %s38
      %s42 = sphi 0, %s39
      %s60 = sphi 0, %s62
      %s63 = sphi 0, %s60
      %s64 = sphi 0, %s63
      %s80 = sphi 0, %s64
      %s84 = sphi 0, %s84
      %s86 = sphi 0, %s84
      %s87 = sphi 0, %s86
      %s101 = sphi 0, %s87
      %s105 = sphi 0, %s105
      %s107 = sphi 0, %s105
      %s108 = sphi 0, %s107
      %s122 = sphi 0, %s108
      %s126 = sphi 0, %s126
      %s128 = sphi 0, %s126
      %s129 = sphi 0, %s128
      %s143 = sphi 0, %s129
      %s147 = sphi 0, %s147
      %s149 = sphi 0, %s147
      %s150 = sphi 0, %s149
      %s164 = sphi 0, %s150
      %s174 = sphi 0, %s176
      %s177 = sphi 0, %s174
      %s178 = sphi 0, %s177
      %s194 = sphi 0, %s178
      %s204 = sphi 0, %s206
      %s207 = sphi 0, %s204
      %s208 = sphi 0, %s207
      %s224 = sphi 0, %s208
      %s232 = sphi 0, %s234
      %s235 = sphi 0, %s232
      %s236 = sphi 0, %s235
      %s252 = sphi 0, %s236
      %s260 = sphi 0, %s262
      %s263 = sphi 0, %s260
      %s264 = sphi 0, %s263
      %s280 = sphi 0, %s264
    $region4: #{tpu_custom_call.1} parent=1 // loop_header_branch
      %30 = sbr.rel (%p28) target = $region8
    $region5: #{tpu_custom_call.1} parent=1 // loop_body
      %s32 = ssub.s32 %s27, 1
      %s33 = ssub.s32 %s27, 2
      %s43 = sadd.s32 1, %s36
      %p44 = scmp.ge.s32.totalorder %s43, 1
      %s45 = scalar_select %p44, 0, %s43
      %s46 = sadd.s32 1, %s35
      %s47 = scalar_select %p44, %s46, %s35
      %p48 = scmp.ge.s32.totalorder %s47, 1
      %s49 = scalar_select %p48, 0, %s47
      %s50 = sadd.s32 1, %s34
      %s51 = scalar_select %p48, %s50, %s34
      %p52 = scmp.ge.s32.totalorder %s51, 2
      %s53 = scalar_select %p52, 0, %s51
      %s54 = sadd.s32 %s35, %s36
      %s55 = sadd.s32 %s49, %s45
      %s56 = ssub.s32 %s34, %s53
      %s57 = ssub.s32 %s54, %s55
      %s58 = sor.u32 %s56, %s57
      %p59 = scmp.eq.s32.totalorder %s58, 0
      %s61 = sadd.s32 %s60, 1
      %s62 = scalar_select %p59, %s60, %s61
      %p65 = pneg %p59
      %p66 = scmp.eq.s32.totalorder %s27, 1
      %p67 = por %p65, %p66
      %p68 = scmp.ne.s32.totalorder %s60, %s63
      %p69 = scmp.eq.s32.totalorder %s27, 0
      %p70 = por %p68, %p69
      %p71 = scmp.ne.s32.totalorder %s60, %s63
      %p72 = scmp.eq.s32.totalorder %s32, 1
      %p73 = por %p71, %p72
      %p74 = scmp.ne.s32.totalorder %s63, %s64
      %p75 = scmp.eq.s32.totalorder %s32, 0
      %p76 = por %p74, %p75
      %p77 = scmp.ne.s32.totalorder %s63, %s64
      %p78 = scmp.eq.s32.totalorder %s33, 1
      %p79 = por %p77, %p78
      %p81 = scmp.ne.s32.totalorder %s64, %s80
      %p82 = scmp.eq.s32.totalorder %s33, 0
      %p83 = por %p81, %p82
      %s85 = sadd.s32 %s84, 1
      %p88 = scmp.eq.s32.totalorder %s27, 1
      %p89 = scmp.ne.s32.totalorder %s84, %s86
      %p90 = scmp.eq.s32.totalorder %s27, 0
      %p91 = por %p89, %p90
      %p92 = scmp.ne.s32.totalorder %s84, %s86
      %p93 = scmp.eq.s32.totalorder %s32, 1
      %p94 = por %p92, %p93
      %p95 = scmp.ne.s32.totalorder %s86, %s87
      %p96 = scmp.eq.s32.totalorder %s32, 0
      %p97 = por %p95, %p96
      %p98 = scmp.ne.s32.totalorder %s86, %s87
      %p99 = scmp.eq.s32.totalorder %s33, 1
      %p100 = por %p98, %p99
      %p102 = scmp.ne.s32.totalorder %s87, %s101
      %p103 = scmp.eq.s32.totalorder %s33, 0
      %p104 = por %p102, %p103
      %s106 = sadd.s32 %s105, 1
      %p109 = scmp.eq.s32.totalorder %s27, 1
      %p110 = scmp.ne.s32.totalorder %s105, %s107
      %p111 = scmp.eq.s32.totalorder %s27, 0
      %p112 = por %p110, %p111
      %p113 = scmp.ne.s32.totalorder %s105, %s107
      %p114 = scmp.eq.s32.totalorder %s32, 1
      %p115 = por %p113, %p114
      %p116 = scmp.ne.s32.totalorder %s107, %s108
      %p117 = scmp.eq.s32.totalorder %s32, 0
      %p118 = por %p116, %p117
      %p119 = scmp.ne.s32.totalorder %s107, %s108
      %p120 = scmp.eq.s32.totalorder %s33, 1
      %p121 = por %p119, %p120
      %p123 = scmp.ne.s32.totalorder %s108, %s122
      %p124 = scmp.eq.s32.totalorder %s33, 0
      %p125 = por %p123, %p124
      %s127 = sadd.s32 %s126, 1
      %p130 = scmp.eq.s32.totalorder %s27, 1
      %p131 = scmp.ne.s32.totalorder %s126, %s128
      %p132 = scmp.eq.s32.totalorder %s27, 0
      %p133 = por %p131, %p132
      %p134 = scmp.ne.s32.totalorder %s126, %s128
      %p135 = scmp.eq.s32.totalorder %s32, 1
      %p136 = por %p134, %p135
      %p137 = scmp.ne.s32.totalorder %s128, %s129
      %p138 = scmp.eq.s32.totalorder %s32, 0
      %p139 = por %p137, %p138
      %p140 = scmp.ne.s32.totalorder %s128, %s129
      %p141 = scmp.eq.s32.totalorder %s33, 1
      %p142 = por %p140, %p141
      %p144 = scmp.ne.s32.totalorder %s129, %s143
      %p145 = scmp.eq.s32.totalorder %s33, 0
      %p146 = por %p144, %p145
      %s148 = sadd.s32 %s147, 1
      %p151 = scmp.eq.s32.totalorder %s27, 1
      %p152 = scmp.ne.s32.totalorder %s147, %s149
      %p153 = scmp.eq.s32.totalorder %s27, 0
      %p154 = por %p152, %p153
      %p155 = scmp.ne.s32.totalorder %s147, %s149
      %p156 = scmp.eq.s32.totalorder %s32, 1
      %p157 = por %p155, %p156
      %p158 = scmp.ne.s32.totalorder %s149, %s150
      %p159 = scmp.eq.s32.totalorder %s32, 0
      %p160 = por %p158, %p159
      %p161 = scmp.ne.s32.totalorder %s149, %s150
      %p162 = scmp.eq.s32.totalorder %s33, 1
      %p163 = por %p161, %p162
      %p165 = scmp.ne.s32.totalorder %s150, %s164
      %p166 = scmp.eq.s32.totalorder %s33, 0
      %p167 = por %p165, %p166
      %s168 = sadd.s32 %s35, %s36
      %s169 = sadd.s32 %s49, %s45
      %s170 = ssub.s32 %s34, %s53
      %s171 = ssub.s32 %s168, %s169
      %s172 = sor.u32 %s170, %s171
      %p173 = scmp.eq.s32.totalorder %s172, 0
      %s175 = sadd.s32 %s174, 1
      %s176 = scalar_select %p173, %s174, %s175
      %p179 = pneg %p173
      %p180 = scmp.eq.s32.totalorder %s27, 1
      %p181 = por %p179, %p180
      %p182 = scmp.ne.s32.totalorder %s174, %s177
      %p183 = scmp.eq.s32.totalorder %s27, 0
      %p184 = por %p182, %p183
      %p185 = scmp.ne.s32.totalorder %s174, %s177
      %p186 = scmp.eq.s32.totalorder %s32, 1
      %p187 = por %p185, %p186
      %p188 = scmp.ne.s32.totalorder %s177, %s178
      %p189 = scmp.eq.s32.totalorder %s32, 0
      %p190 = por %p188, %p189
      %p191 = scmp.ne.s32.totalorder %s177, %s178
      %p192 = scmp.eq.s32.totalorder %s33, 1
      %p193 = por %p191, %p192
      %p195 = scmp.ne.s32.totalorder %s178, %s194
      %p196 = scmp.eq.s32.totalorder %s33, 0
      %p197 = por %p195, %p196
      %s198 = sadd.s32 %s35, %s36
      %s199 = sadd.s32 %s49, %s45
      %s200 = ssub.s32 %s34, %s53
      %s201 = ssub.s32 %s198, %s199
      %s202 = sor.u32 %s200, %s201
      %p203 = scmp.eq.s32.totalorder %s202, 0
      %s205 = sadd.s32 %s204, 1
      %s206 = scalar_select %p203, %s204, %s205
      %p209 = pneg %p203
      %p210 = scmp.eq.s32.totalorder %s27, 1
      %p211 = por %p209, %p210
      %p212 = scmp.ne.s32.totalorder %s204, %s207
      %p213 = scmp.eq.s32.totalorder %s27, 0
      %p214 = por %p212, %p213
      %p215 = scmp.ne.s32.totalorder %s204, %s207
      %p216 = scmp.eq.s32.totalorder %s32, 1
      %p217 = por %p215, %p216
      %p218 = scmp.ne.s32.totalorder %s207, %s208
      %p219 = scmp.eq.s32.totalorder %s32, 0
      %p220 = por %p218, %p219
      %p221 = scmp.ne.s32.totalorder %s207, %s208
      %p222 = scmp.eq.s32.totalorder %s33, 1
      %p223 = por %p221, %p222
      %p225 = scmp.ne.s32.totalorder %s208, %s224
      %p226 = scmp.eq.s32.totalorder %s33, 0
      %p227 = por %p225, %p226
      %s228 = ssub.s32 %s34, %s53
      %s229 = ssub.s32 %s35, %s49
      %s230 = sor.u32 %s228, %s229
      %p231 = scmp.eq.s32.totalorder %s230, 0
      %s233 = sadd.s32 %s232, 1
      %s234 = scalar_select %p231, %s232, %s233
      %p237 = pneg %p231
      %p238 = scmp.eq.s32.totalorder %s27, 1
      %p239 = por %p237, %p238
      %p240 = scmp.ne.s32.totalorder %s232, %s235
      %p241 = scmp.eq.s32.totalorder %s27, 0
      %p242 = por %p240, %p241
      %p243 = scmp.ne.s32.totalorder %s232, %s235
      %p244 = scmp.eq.s32.totalorder %s32, 1
      %p245 = por %p243, %p244
      %p246 = scmp.ne.s32.totalorder %s235, %s236
      %p247 = scmp.eq.s32.totalorder %s32, 0
      %p248 = por %p246, %p247
      %p249 = scmp.ne.s32.totalorder %s235, %s236
      %p250 = scmp.eq.s32.totalorder %s33, 1
      %p251 = por %p249, %p250
      %p253 = scmp.ne.s32.totalorder %s236, %s252
      %p254 = scmp.eq.s32.totalorder %s33, 0
      %p255 = por %p253, %p254
      %s256 = ssub.s32 %s34, %s53
      %s257 = ssub.s32 %s35, %s49
      %s258 = sor.u32 %s256, %s257
      %p259 = scmp.eq.s32.totalorder %s258, 0
      %s261 = sadd.s32 %s260, 1
      %s262 = scalar_select %p259, %s260, %s261
      %p265 = pneg %p259
      %p266 = scmp.eq.s32.totalorder %s27, 1
      %p267 = por %p265, %p266
      %p268 = scmp.ne.s32.totalorder %s260, %s263
      %p269 = scmp.eq.s32.totalorder %s27, 0
      %p270 = por %p268, %p269
      %p271 = scmp.ne.s32.totalorder %s260, %s263
      %p272 = scmp.eq.s32.totalorder %s32, 1
      %p273 = por %p271, %p272
      %p274 = scmp.ne.s32.totalorder %s263, %s264
      %p275 = scmp.eq.s32.totalorder %s32, 0
      %p276 = por %p274, %p275
      %p277 = scmp.ne.s32.totalorder %s263, %s264
      %p278 = scmp.eq.s32.totalorder %s33, 1
      %p279 = por %p277, %p278
      %p281 = scmp.ne.s32.totalorder %s264, %s280
      %p282 = scmp.eq.s32.totalorder %s33, 0
      %p283 = por %p281, %p282
      %p284 = scmp.le.s32.totalorder 1, %s27
      %p285 = scmp.lt.s32.totalorder %s27, 3
      %p286 = pnand %p284, %p285
      %p287 = pneg %p286
      // Predicated region
      $region9: #{tpu_custom_call.1} parent=5 // pred_check
        _
      $region10: #{tpu_custom_call.1} parent=5 // pred_check_branch
        %289 = sbr.rel (%p286) target = $region12
      $region11: #{tpu_custom_call.1} parent=5 // pred_region
        %s290 = ssub.s32 %s27, 1
        // Predicated region
        $region13: #{tpu_custom_call.1} parent=11 // pred_check
          %p291 = pneg %p97
        $region14: #{tpu_custom_call.1} parent=11 // pred_check_branch
          %293 = sbr.rel (%p291) target = $region16
        $region15: #{tpu_custom_call.1} parent=11 // pred_region
          %s295 = ssub.s32 64, 64
          %296 = vsyncadd [#allocation7], %s295
          %299 = dma.hbm_to_smem %s1, 64, [#allocation9], [#allocation7]
        $region16: #{tpu_custom_call.1} parent=11 // pred_fallthru
          _
        // Predicated region
        $region17: #{tpu_custom_call.1} parent=11 // pred_check
          %p300 = pneg %p118
        $region18: #{tpu_custom_call.1} parent=11 // pred_check_branch
          %302 = sbr.rel (%p300) target = $region20
        $region19: #{tpu_custom_call.1} parent=11 // pred_region
          %s304 = ssub.s32 16, 16
          %305 = vsyncadd [#allocation8], %s304
          %s307 = sshll.u32 %s2, 4
          %s308 = int_to_ptr.vmem [resolvable:$true] %s307
          %310 = dma.vmem_to_smem %s308, 16, [#allocation10], [#allocation8]
        $region20: #{tpu_custom_call.1} parent=11 // pred_fallthru
          _
        // Predicated region
        $region21: #{tpu_custom_call.1} parent=11 // pred_check
          %p311 = pneg %p139
        $region22: #{tpu_custom_call.1} parent=11 // pred_check_branch
          %313 = sbr.rel (%p311) target = $region24
        $region23: #{tpu_custom_call.1} parent=11 // pred_region
          %s315 = ssub.s32 64, 64
          %316 = vsyncadd [#allocation12], %s315
          %s318 = sshll.u32 %s3, 4
          %s319 = int_to_ptr.vmem [resolvable:$true] %s318
          %321 = dma.vmem_to_smem %s319, 64, [#allocation11], [#allocation12]
        $region24: #{tpu_custom_call.1} parent=11 // pred_fallthru
          _
        // Predicated region
        $region25: #{tpu_custom_call.1} parent=11 // pred_check
          %p322 = pneg %p160
        $region26: #{tpu_custom_call.1} parent=11 // pred_check_branch
          %324 = sbr.rel (%p322) target = $region28
        $region27: #{tpu_custom_call.1} parent=11 // pred_region
          %s326 = ssub.s32 16, 16
          %327 = vsyncadd [#allocation12], %s326
          %s329 = sshll.u32 %s4, 4
          %s330 = int_to_ptr.vmem [resolvable:$true] %s329
          %332 = dma.vmem_to_smem %s330, 16, [#allocation13], [#allocation12]
        $region28: #{tpu_custom_call.1} parent=11 // pred_fallthru
          _
      $region12: #{tpu_custom_call.1} parent=5 // pred_fallthru
        _
      %p333 = scmp.lt.s32.totalorder %s27, 2
      // Predicated region
      $region29: #{tpu_custom_call.1} parent=5 // pred_check
        %p334 = pneg %p333
      $region30: #{tpu_custom_call.1} parent=5 // pred_check_branch
        %336 = sbr.rel (%p334) target = $region32
      $region31: #{tpu_custom_call.1} parent=5 // pred_region
        // Predicated region
        $region33: #{tpu_custom_call.1} parent=31 // pred_check
          %p337 = pneg %p70
        $region34: #{tpu_custom_call.1} parent=31 // pred_check_branch
          %339 = sbr.rel (%p337) target = $region36
        $region35: #{tpu_custom_call.1} parent=31 // pred_region
          %s340 = sand.u32 %s60, 1
          %s341 = scalar_lea.sflag [#allocation5], %s340
          %s342 = sand.u32 %s60, 1
          %s343 = smul.addr %s342, 96
          %s344 = scalar_lea.vmem [#allocation4], %s343
          %s345 = sadd.s32 %s35, %s36
          %s346 = smul.u32 4, %s345
          %s348 = ssub.s32 1536, 1536
          %349 = vsyncadd %s341, %s348
          %s350 = smul.addr %s34, 12
          %s351 = sadd.s32 %s346, %s350
          %s352 = smul.addr %s351, 128
          %s353 = scalar_lea.hbm %s0, %s352
          %s354 = sshll.u32 %s344, 4
          %s355 = int_to_ptr.vmem [resolvable:$true] %s354
          %360 = dma.hbm_to_vmem [thread:$0]  %s353, 1536, %s355, %s341, 128, 128, 8
        $region36: #{tpu_custom_call.1} parent=31 // pred_fallthru
          _
      $region32: #{tpu_custom_call.1} parent=5 // pred_fallthru
        _
      %p361 = scmp.le.s32.totalorder 1, %s27
      %p362 = scmp.lt.s32.totalorder %s27, 3
      %p363 = pnand %p361, %p362
      %p364 = pneg %p363
      // Predicated region
      $region37: #{tpu_custom_call.1} parent=5 // pred_check
        _
      $region38: #{tpu_custom_call.1} parent=5 // pred_check_branch
        %366 = sbr.rel (%p363) target = $region40
      $region39: #{tpu_custom_call.1} parent=5 // pred_region
        %s367 = ssub.s32 %s27, 1
        %s368 = sand.u32 %s63, 1
        %s369 = scalar_lea.sflag [#allocation5], %s368
        %s370 = sand.u32 %s63, 1
        %s371 = smul.addr %s370, 96
        %s372 = scalar_lea.vmem [#allocation4], %s371
        // Predicated region
        $region41: #{tpu_custom_call.1} parent=39 // pred_check
          %p373 = pneg %p76
        $region42: #{tpu_custom_call.1} parent=39 // pred_check_branch
          %375 = sbr.rel (%p373) target = $region44
        $region43: #{tpu_custom_call.1} parent=39 // pred_region
          %376 = dma.done %s369, 1536
        $region44: #{tpu_custom_call.1} parent=39 // pred_fallthru
          _
        // Predicated region
        $region45: #{tpu_custom_call.1} parent=39 // pred_check
          %p377 = pneg %p97
        $region46: #{tpu_custom_call.1} parent=39 // pred_check_branch
          %379 = sbr.rel (%p377) target = $region48
        $region47: #{tpu_custom_call.1} parent=39 // pred_region
          %380 = dma.done [#allocation7], 64
        $region48: #{tpu_custom_call.1} parent=39 // pred_fallthru
          _
        // Predicated region
        $region49: #{tpu_custom_call.1} parent=39 // pred_check
          %p381 = pneg %p118
        $region50: #{tpu_custom_call.1} parent=39 // pred_check_branch
          %383 = sbr.rel (%p381) target = $region52
        $region51: #{tpu_custom_call.1} parent=39 // pred_region
          %384 = dma.done [#allocation8], 16
        $region52: #{tpu_custom_call.1} parent=39 // pred_fallthru
          _
        // Predicated region
        $region53: #{tpu_custom_call.1} parent=39 // pred_check
          %p385 = pneg %p139
        $region54: #{tpu_custom_call.1} parent=39 // pred_check_branch
          %387 = sbr.rel (%p385) target = $region56
        $region55: #{tpu_custom_call.1} parent=39 // pred_region
          %388 = dma.done [#allocation12], 64
        $region56: #{tpu_custom_call.1} parent=39 // pred_fallthru
          _
        // Predicated region
        $region57: #{tpu_custom_call.1} parent=39 // pred_check
          %p389 = pneg %p160
        $region58: #{tpu_custom_call.1} parent=39 // pred_check_branch
          %391 = sbr.rel (%p389) target = $region60
        $region59: #{tpu_custom_call.1} parent=39 // pred_region
          %392 = dma.done [#allocation12], 16
        $region60: #{tpu_custom_call.1} parent=39 // pred_fallthru
          _
        %393 = sfence
        %s394 = sand.u32 %s63, 1
        %s395 = scalar_lea.sflag [#allocation5], %s394
        %s396 = sand.u32 %s63, 1
        %s397 = smul.addr %s396, 96
        %s398 = scalar_lea.vmem [#allocation4], %s397
        %p399 = pneg %p76
        %p400 = pneg %p73
        %p401 = pneg %p97
        %p402 = pneg %p94
        %p403 = pneg %p118
        %p404 = pneg %p115
        %p405 = pneg %p139
        %p406 = pneg %p136
        %p407 = pneg %p160
        %p408 = pneg %p157
        %p409 = pneg %p190
        %p410 = pneg %p187
        %s411 = sand.u32 %s177, 1
        %s412 = scalar_lea.sflag [#allocation6], %s411
        %s413 = sand.u32 %s177, 1
        %s414 = smul.addr %s413, 128
        %s415 = scalar_lea.vmem [#allocation14], %s414
        %p416 = pneg %p220
        %p417 = pneg %p217
        %s418 = sand.u32 %s207, 1
        %s419 = scalar_lea.sflag [#allocation16], %s418
        %s420 = sand.u32 %s207, 1
        %s421 = smul.addr %s420, 8
        %s422 = scalar_lea.vmem [#allocation15], %s421
        %p423 = pneg %p248
        %p424 = pneg %p245
        %p425 = scmp.lt.s32.totalorder %s37, 1
        %s426 = scalar_select %p425, %s37, 1
        %p427 = scmp.lt.s32.totalorder %s38, 0
        %s428 = scalar_select %p427, %s38, 0
        %s429 = sadd.s32 %s428, %s426
        %s430 = smul.addr %s429, 4
        %s431 = scalar_lea.vmem %s7, %s430
        %p432 = pneg %p276
        %p433 = pneg %p273
        %p434 = scmp.lt.s32.totalorder %s37, 1
        %s435 = scalar_select %p434, %s37, 1
        %p436 = scmp.lt.s32.totalorder %s38, 0
        %s437 = scalar_select %p436, %s38, 0
        %s438 = sadd.s32 %s437, %s435
        %s439 = smul.addr %s438, 4
        %s440 = scalar_lea.vmem %s8, %s439
        %s441 = sadd.s32 %s38, %s39
        %s442 = smul.u32 4, %s441
        %s443 = sadd.s32 %s38, %s39
        %s444 = smul.u32 4, %s443
        %s445 = sadd.s32 %s38, %s39
        %p446 = scmp.lt.s32.totalorder %s37, 1
        %s447 = scalar_select %p446, %s37, 1
        %p448 = scmp.lt.s32.totalorder %s38, 0
        %s449 = scalar_select %p448, %s38, 0
        %s450 = sadd.s32 %s449, %s447
        %s451 = smul.addr %s450, 4
        %s452 = scalar_lea.vmem %s7, %s451
        %p453 = scmp.lt.s32.totalorder %s37, 1
        %s454 = scalar_select %p453, %s37, 1
        %p455 = scmp.lt.s32.totalorder %s38, 0
        %s456 = scalar_select %p455, %s38, 0
        %s457 = sadd.s32 %s456, %s454
        %s458 = smul.addr %s457, 4
        %s459 = scalar_lea.vmem %s8, %s458
        %v460 = vld [vmem:[%s372] sm:$0xff]
        %v461 = vld [vmem:[%s372 + $0x8] sm:$0xff]
        %v462 = vld [vmem:[%s372 + $0x10] sm:$0xff]
        %v463 = vld [vmem:[%s372 + $0x18] sm:$0xff]
        %s464 = scalar_lea.vmem %s372, 32 [#allocation4]
        %v465 = vld [vmem:[%s464] sm:$0xff]
        %v466 = vld [vmem:[%s464 + $0x8] sm:$0xff]
        %v467 = vld [vmem:[%s464 + $0x10] sm:$0xff]
        %v468 = vld [vmem:[%s464 + $0x18] sm:$0xff]
        %s469 = scalar_lea.vmem %s372, 64 [#allocation4]
        %v470 = vld [vmem:[%s469] sm:$0xff]
        %v471 = vld [vmem:[%s469 + $0x8] sm:$0xff]
        %v472 = vld [vmem:[%s469 + $0x10] sm:$0xff]
        %v473 = vld [vmem:[%s469 + $0x18] sm:$0xff]
        %s474 = sld [smem:[#allocation9]]
        %v475 = vstv %s474
        %v476 = vmul.f32 %v475, %v460
        %v477 = vmul.f32 %v475, %v461
        %v478 = vmul.f32 %v475, %v462
        %v479 = vmul.f32 %v475, %v463
        %s480 = sld [smem:[#allocation9 + $0x1]]
        %v481 = vstv %s480
        %v482 = vmul.f32 %v481, %v465
        %v483 = vmul.f32 %v481, %v466
        %v484 = vmul.f32 %v481, %v467
        %v485 = vmul.f32 %v481, %v468
        %v486 = vadd.f32 %v476, %v482
        %v487 = vadd.f32 %v477, %v483
        %v488 = vadd.f32 %v478, %v484
        %v489 = vadd.f32 %v479, %v485
        %s490 = sld [smem:[#allocation9 + $0x2]]
        %v491 = vstv %s490
        %v492 = vmul.f32 %v491, %v470
        %v493 = vmul.f32 %v491, %v471
        %v494 = vmul.f32 %v491, %v472
        %v495 = vmul.f32 %v491, %v473
        %v496 = vadd.f32 %v486, %v492
        %v497 = vadd.f32 %v487, %v493
        %v498 = vadd.f32 %v488, %v494
        %v499 = vadd.f32 %v489, %v495
        %s500 = sld [smem:[#allocation10]]
        %v501 = vstv %s500
        %v502 = vadd.f32 %v496, %v501
        %v503 = vadd.f32 %v497, %v501
        %v504 = vadd.f32 %v498, %v501
        %v505 = vadd.f32 %v499, %v501
        %s506 = sld [smem:[#allocation9 + $0x80]]
        %v507 = vstv %s506
        %v508 = vmul.f32 %v507, %v460
        %v509 = vmul.f32 %v507, %v461
        %v510 = vmul.f32 %v507, %v462
        %v511 = vmul.f32 %v507, %v463
        %s512 = sld [smem:[#allocation9 + $0x81]]
        %v513 = vstv %s512
        %v514 = vmul.f32 %v513, %v465
        %v515 = vmul.f32 %v513, %v466
        %v516 = vmul.f32 %v513, %v467
        %v517 = vmul.f32 %v513, %v468
        %v518 = vadd.f32 %v508, %v514
        %v519 = vadd.f32 %v509, %v515
        %v520 = vadd.f32 %v510, %v516
        %v521 = vadd.f32 %v511, %v517
        %s522 = sld [smem:[#allocation9 + $0x82]]
        %v523 = vstv %s522
        %v524 = vmul.f32 %v523, %v470
        %v525 = vmul.f32 %v523, %v471
        %v526 = vmul.f32 %v523, %v472
        %v527 = vmul.f32 %v523, %v473
        %v528 = vadd.f32 %v518, %v524
        %v529 = vadd.f32 %v519, %v525
        %v530 = vadd.f32 %v520, %v526
        %v531 = vadd.f32 %v521, %v527
        %s532 = sld [smem:[#allocation10 + $0x1]]
        %v533 = vstv %s532
        %v534 = vadd.f32 %v528, %v533
        %v535 = vadd.f32 %v529, %v533
        %v536 = vadd.f32 %v530, %v533
        %v537 = vadd.f32 %v531, %v533
        %s538 = sld [smem:[#allocation9 + $0x100]]
        %v539 = vstv %s538
        %v540 = vmul.f32 %v539, %v460
        %v541 = vmul.f32 %v539, %v461
        %v542 = vmul.f32 %v539, %v462
        %v543 = vmul.f32 %v539, %v463
        %s544 = sld [smem:[#allocation9 + $0x101]]
        %v545 = vstv %s544
        %v546 = vmul.f32 %v545, %v465
        %v547 = vmul.f32 %v545, %v466
        %v548 = vmul.f32 %v545, %v467
        %v549 = vmul.f32 %v545, %v468
        %v550 = vadd.f32 %v540, %v546
        %v551 = vadd.f32 %v541, %v547
        %v552 = vadd.f32 %v542, %v548
        %v553 = vadd.f32 %v543, %v549
        %s554 = sld [smem:[#allocation9 + $0x102]]
        %v555 = vstv %s554
        %v556 = vmul.f32 %v555, %v470
        %v557 = vmul.f32 %v555, %v471
        %v558 = vmul.f32 %v555, %v472
        %v559 = vmul.f32 %v555, %v473
        %v560 = vadd.f32 %v550, %v556
        %v561 = vadd.f32 %v551, %v557
        %v562 = vadd.f32 %v552, %v558
        %v563 = vadd.f32 %v553, %v559
        %s564 = sld [smem:[#allocation10 + $0x2]]
        %v565 = vstv %s564
        %v566 = vadd.f32 %v560, %v565
        %v567 = vadd.f32 %v561, %v565
        %v568 = vadd.f32 %v562, %v565
        %v569 = vadd.f32 %v563, %v565
        %s570 = sld [smem:[#allocation9 + $0x180]]
        %v571 = vstv %s570
        %v572 = vmul.f32 %v571, %v460
        %v573 = vmul.f32 %v571, %v461
        %v574 = vmul.f32 %v571, %v462
        %v575 = vmul.f32 %v571, %v463
        %s576 = sld [smem:[#allocation9 + $0x181]]
        %v577 = vstv %s576
        %v578 = vmul.f32 %v577, %v465
        %v579 = vmul.f32 %v577, %v466
        %v580 = vmul.f32 %v577, %v467
        %v581 = vmul.f32 %v577, %v468
        %v582 = vadd.f32 %v572, %v578
        %v583 = vadd.f32 %v573, %v579
        %v584 = vadd.f32 %v574, %v580
        %v585 = vadd.f32 %v575, %v581
        %s586 = sld [smem:[#allocation9 + $0x182]]
        %v587 = vstv %s586
        %v588 = vmul.f32 %v587, %v470
        %v589 = vmul.f32 %v587, %v471
        %v590 = vmul.f32 %v587, %v472
        %v591 = vmul.f32 %v587, %v473
        %v592 = vadd.f32 %v582, %v588
        %v593 = vadd.f32 %v583, %v589
        %v594 = vadd.f32 %v584, %v590
        %v595 = vadd.f32 %v585, %v591
        %s596 = sld [smem:[#allocation10 + $0x3]]
        %v597 = vstv %s596
        %v598 = vadd.f32 %v592, %v597
        %v599 = vadd.f32 %v593, %v597
        %v600 = vadd.f32 %v594, %v597
        %v601 = vadd.f32 %v595, %v597
        %v602 = vmax.f32 %v502, %v534
        %v603 = vmax.f32 %v503, %v535
        %v604 = vmax.f32 %v504, %v536
        %v605 = vmax.f32 %v505, %v537
        %v606 = vmax.f32 %v566, %v598
        %v607 = vmax.f32 %v567, %v599
        %v608 = vmax.f32 %v568, %v600
        %v609 = vmax.f32 %v569, %v601
        %v610 = vmax.f32 %v602, %v606
        %v611 = vmax.f32 %v603, %v607
        %v612 = vmax.f32 %v604, %v608
        %v613 = vmax.f32 %v605, %v609
        %v614 = vsub.f32 %v502, %v610
        %v615 = vsub.f32 %v503, %v611
        %v616 = vsub.f32 %v504, %v612
        %v617 = vsub.f32 %v505, %v613
        %v618 = vmul.f32 %v614, 1.442695
        %v619 = vpow.pop %v618
        %v620 = vmul.f32 %v615, 1.442695
        %v621 = vpow.pop %v620
        %v622 = vmul.f32 %v616, 1.442695
        %v623 = vpow.pop %v622
        %v624 = vmul.f32 %v617, 1.442695
        %v625 = vpow.pop %v624
        %v626 = vsub.f32 %v534, %v610
        %v627 = vsub.f32 %v535, %v611
        %v628 = vsub.f32 %v536, %v612
        %v629 = vsub.f32 %v537, %v613
        %v630 = vmul.f32 %v626, 1.442695
        %v631 = vpow.pop %v630
        %v632 = vmul.f32 %v627, 1.442695
        %v633 = vpow.pop %v632
        %v634 = vmul.f32 %v628, 1.442695
        %v635 = vpow.pop %v634
        %v636 = vmul.f32 %v629, 1.442695
        %v637 = vpow.pop %v636
        %v638 = vsub.f32 %v566, %v610
        %v639 = vsub.f32 %v567, %v611
        %v640 = vsub.f32 %v568, %v612
        %v641 = vsub.f32 %v569, %v613
        %v642 = vmul.f32 %v638, 1.442695
        %v643 = vpow.pop %v642
        %v644 = vmul.f32 %v639, 1.442695
        %v645 = vpow.pop %v644
        %v646 = vmul.f32 %v640, 1.442695
        %v647 = vpow.pop %v646
        %v648 = vmul.f32 %v641, 1.442695
        %v649 = vpow.pop %v648
        %v650 = vsub.f32 %v598, %v610
        %v651 = vsub.f32 %v599, %v611
        %v652 = vsub.f32 %v600, %v612
        %v653 = vsub.f32 %v601, %v613
        %v654 = vmul.f32 %v650, 1.442695
        %v655 = vpow.pop %v654
        %v656 = vmul.f32 %v651, 1.442695
        %v657 = vpow.pop %v656
        %v658 = vmul.f32 %v652, 1.442695
        %v659 = vpow.pop %v658
        %v660 = vmul.f32 %v653, 1.442695
        %v661 = vpow.pop %v660
        %v662 = vadd.f32 %v619, %v631
        %v663 = vadd.f32 %v621, %v633
        %v664 = vadd.f32 %v623, %v635
        %v665 = vadd.f32 %v625, %v637
        %v666 = vadd.f32 %v662, %v643
        %v667 = vadd.f32 %v663, %v645
        %v668 = vadd.f32 %v664, %v647
        %v669 = vadd.f32 %v665, %v649
        %v670 = vadd.f32 %v666, %v655
        %v671 = vadd.f32 %v667, %v657
        %v672 = vadd.f32 %v668, %v659
        %v673 = vadd.f32 %v669, %v661
        %v674 = vrcp.pop %v670
        %v675 = vrcp.pop %v671
        %v676 = vrcp.pop %v672
        %v677 = vrcp.pop %v673
        %v678 = vmul.f32 %v619, %v674
        %v679 = vmul.f32 %v621, %v675
        %v680 = vmul.f32 %v623, %v676
        %v681 = vmul.f32 %v625, %v677
        %682 = vst [vmem:[%s415] sm:$0xff] %v678
        %683 = vst [vmem:[%s415 + $0x8] sm:$0xff] %v679
        %684 = vst [vmem:[%s415 + $0x10] sm:$0xff] %v680
        %685 = vst [vmem:[%s415 + $0x18] sm:$0xff] %v681
        %v686 = vmul.f32 %v631, %v674
        %v687 = vmul.f32 %v633, %v675
        %v688 = vmul.f32 %v635, %v676
        %v689 = vmul.f32 %v637, %v677
        %s690 = scalar_lea.vmem %s415, 32 [#allocation14]
        %691 = vst [vmem:[%s690] sm:$0xff] %v686
        %692 = vst [vmem:[%s690 + $0x8] sm:$0xff] %v687
        %693 = vst [vmem:[%s690 + $0x10] sm:$0xff] %v688
        %694 = vst [vmem:[%s690 + $0x18] sm:$0xff] %v689
        %v695 = vmul.f32 %v643, %v674
        %v696 = vmul.f32 %v645, %v675
        %v697 = vmul.f32 %v647, %v676
        %v698 = vmul.f32 %v649, %v677
        %s699 = scalar_lea.vmem %s415, 64 [#allocation14]
        %700 = vst [vmem:[%s699] sm:$0xff] %v695
        %701 = vst [vmem:[%s699 + $0x8] sm:$0xff] %v696
        %702 = vst [vmem:[%s699 + $0x10] sm:$0xff] %v697
        %703 = vst [vmem:[%s699 + $0x18] sm:$0xff] %v698
        %v704 = vmul.f32 %v655, %v674
        %v705 = vmul.f32 %v657, %v675
        %v706 = vmul.f32 %v659, %v676
        %v707 = vmul.f32 %v661, %v677
        %s708 = scalar_lea.vmem %s415, 96 [#allocation14]
        %709 = vst [vmem:[%s708] sm:$0xff] %v704
        %710 = vst [vmem:[%s708 + $0x8] sm:$0xff] %v705
        %711 = vst [vmem:[%s708 + $0x10] sm:$0xff] %v706
        %712 = vst [vmem:[%s708 + $0x18] sm:$0xff] %v707
        %vm713 = vcmp.eq.f32.partialorder %v502, %v610
        %vm714 = vcmp.eq.f32.partialorder %v503, %v611
        %vm715 = vcmp.eq.f32.partialorder %v504, %v612
        %vm716 = vcmp.eq.f32.partialorder %v505, %v613
        %vm717 = vcmp.eq.f32.partialorder %v534, %v610
        %vm718 = vcmp.eq.f32.partialorder %v535, %v611
        %vm719 = vcmp.eq.f32.partialorder %v536, %v612
        %vm720 = vcmp.eq.f32.partialorder %v537, %v613
        %vm721 = vcmp.eq.f32.partialorder %v566, %v610
        %vm722 = vcmp.eq.f32.partialorder %v567, %v611
        %vm723 = vcmp.eq.f32.partialorder %v568, %v612
        %vm724 = vcmp.eq.f32.partialorder %v569, %v613
        %v725 = vsel %vm721, 2, 3
        %v726 = vsel %vm722, 2, 3
        %v727 = vsel %vm723, 2, 3
        %v728 = vsel %vm724, 2, 3
        %v729 = vsel %vm717, 1, %v725
        %v730 = vsel %vm718, 1, %v726
        %v731 = vsel %vm719, 1, %v727
        %v732 = vsel %vm720, 1, %v728
        %v733 = vsel %vm713, 0, %v729
        %v734 = vsel %vm714, 0, %v730
        %v735 = vsel %vm715, 0, %v731
        %v736 = vsel %vm716, 0, %v732
        %v737 = vpack.c.b16 %v734, %v733
        %v738 = vpack.c.b16 %v736, %v735
        %v739 = vpack.c.b8 %v738, %v737
        %740 = vst [vmem:[%s422] sm:$0xff] %v739
        %s741 = sld [smem:[#allocation11]]
        %v742 = vstv %s741
        %v743 = vmul.f32 %v742, %v460
        %v744 = vmul.f32 %v742, %v461
        %v745 = vmul.f32 %v742, %v462
        %v746 = vmul.f32 %v742, %v463
        %s747 = sld [smem:[#allocation11 + $0x1]]
        %v748 = vstv %s747
        %v749 = vmul.f32 %v748, %v465
        %v750 = vmul.f32 %v748, %v466
        %v751 = vmul.f32 %v748, %v467
        %v752 = vmul.f32 %v748, %v468
        %v753 = vadd.f32 %v743, %v749
        %v754 = vadd.f32 %v744, %v750
        %v755 = vadd.f32 %v745, %v751
        %v756 = vadd.f32 %v746, %v752
        %s757 = sld [smem:[#allocation11 + $0x2]]
        %v758 = vstv %s757
        %v759 = vmul.f32 %v758, %v470
        %v760 = vmul.f32 %v758, %v471
        %v761 = vmul.f32 %v758, %v472
        %v762 = vmul.f32 %v758, %v473
        %v763 = vadd.f32 %v753, %v759
        %v764 = vadd.f32 %v754, %v760
        %v765 = vadd.f32 %v755, %v761
        %v766 = vadd.f32 %v756, %v762
        %s767 = sld [smem:[#allocation13]]
        %v768 = vstv %s767
        %v769 = vadd.f32 %v763, %v768
        %v770 = vadd.f32 %v764, %v768
        %v771 = vadd.f32 %v765, %v768
        %v772 = vadd.f32 %v766, %v768
        %s773 = sld [smem:[#allocation11 + $0x80]]
        %v774 = vstv %s773
        %v775 = vmul.f32 %v774, %v460
        %v776 = vmul.f32 %v774, %v461
        %v777 = vmul.f32 %v774, %v462
        %v778 = vmul.f32 %v774, %v463
        %s779 = sld [smem:[#allocation11 + $0x81]]
        %v780 = vstv %s779
        %v781 = vmul.f32 %v780, %v465
        %v782 = vmul.f32 %v780, %v466
        %v783 = vmul.f32 %v780, %v467
        %v784 = vmul.f32 %v780, %v468
        %v785 = vadd.f32 %v775, %v781
        %v786 = vadd.f32 %v776, %v782
        %v787 = vadd.f32 %v777, %v783
        %v788 = vadd.f32 %v778, %v784
        %s789 = sld [smem:[#allocation11 + $0x82]]
        %v790 = vstv %s789
        %v791 = vmul.f32 %v790, %v470
        %v792 = vmul.f32 %v790, %v471
        %v793 = vmul.f32 %v790, %v472
        %v794 = vmul.f32 %v790, %v473
        %v795 = vadd.f32 %v785, %v791
        %v796 = vadd.f32 %v786, %v792
        %v797 = vadd.f32 %v787, %v793
        %v798 = vadd.f32 %v788, %v794
        %s799 = sld [smem:[#allocation13 + $0x1]]
        %v800 = vstv %s799
        %v801 = vadd.f32 %v795, %v800
        %v802 = vadd.f32 %v796, %v800
        %v803 = vadd.f32 %v797, %v800
        %v804 = vadd.f32 %v798, %v800
        %s805 = sld [smem:[#allocation11 + $0x100]]
        %v806 = vstv %s805
        %v807 = vmul.f32 %v806, %v460
        %v808 = vmul.f32 %v806, %v461
        %v809 = vmul.f32 %v806, %v462
        %v810 = vmul.f32 %v806, %v463
        %s811 = sld [smem:[#allocation11 + $0x101]]
        %v812 = vstv %s811
        %v813 = vmul.f32 %v812, %v465
        %v814 = vmul.f32 %v812, %v466
        %v815 = vmul.f32 %v812, %v467
        %v816 = vmul.f32 %v812, %v468
        %v817 = vadd.f32 %v807, %v813
        %v818 = vadd.f32 %v808, %v814
        %v819 = vadd.f32 %v809, %v815
        %v820 = vadd.f32 %v810, %v816
        %s821 = sld [smem:[#allocation11 + $0x102]]
        %v822 = vstv %s821
        %v823 = vmul.f32 %v822, %v470
        %v824 = vmul.f32 %v822, %v471
        %v825 = vmul.f32 %v822, %v472
        %v826 = vmul.f32 %v822, %v473
        %v827 = vadd.f32 %v817, %v823
        %v828 = vadd.f32 %v818, %v824
        %v829 = vadd.f32 %v819, %v825
        %v830 = vadd.f32 %v820, %v826
        %s831 = sld [smem:[#allocation13 + $0x2]]
        %v832 = vstv %s831
        %v833 = vadd.f32 %v827, %v832
        %v834 = vadd.f32 %v828, %v832
        %v835 = vadd.f32 %v829, %v832
        %v836 = vadd.f32 %v830, %v832
        %v837 = vmax.f32 %v769, %v801
        %v838 = vmax.f32 %v770, %v802
        %v839 = vmax.f32 %v771, %v803
        %v840 = vmax.f32 %v772, %v804
        %v841 = vmax.f32 %v837, %v833
        %v842 = vmax.f32 %v838, %v834
        %v843 = vmax.f32 %v839, %v835
        %v844 = vmax.f32 %v840, %v836
        %v845 = vsub.f32 %v769, %v841
        %v846 = vsub.f32 %v770, %v842
        %v847 = vsub.f32 %v771, %v843
        %v848 = vsub.f32 %v772, %v844
        %v849 = vmul.f32 %v845, 1.442695
        %v850 = vpow.pop %v849
        %v851 = vmul.f32 %v846, 1.442695
        %v852 = vpow.pop %v851
        %v853 = vmul.f32 %v847, 1.442695
        %v854 = vpow.pop %v853
        %v855 = vmul.f32 %v848, 1.442695
        %v856 = vpow.pop %v855
        %v857 = vsub.f32 %v801, %v841
        %v858 = vsub.f32 %v802, %v842
        %v859 = vsub.f32 %v803, %v843
        %v860 = vsub.f32 %v804, %v844
        %v861 = vmul.f32 %v857, 1.442695
        %v862 = vpow.pop %v861
        %v863 = vmul.f32 %v858, 1.442695
        %v864 = vpow.pop %v863
        %v865 = vmul.f32 %v859, 1.442695
        %v866 = vpow.pop %v865
        %v867 = vmul.f32 %v860, 1.442695
        %v868 = vpow.pop %v867
        %v869 = vsub.f32 %v833, %v841
        %v870 = vsub.f32 %v834, %v842
        %v871 = vsub.f32 %v835, %v843
        %v872 = vsub.f32 %v836, %v844
        %v873 = vmul.f32 %v869, 1.442695
        %v874 = vpow.pop %v873
        %v875 = vmul.f32 %v870, 1.442695
        %v876 = vpow.pop %v875
        %v877 = vmul.f32 %v871, 1.442695
        %v878 = vpow.pop %v877
        %v879 = vmul.f32 %v872, 1.442695
        %v880 = vpow.pop %v879
        %v881 = vadd.f32 %v850, %v862
        %v882 = vadd.f32 %v852, %v864
        %v883 = vadd.f32 %v854, %v866
        %v884 = vadd.f32 %v856, %v868
        %v885 = vadd.f32 %v881, %v874
        %v886 = vadd.f32 %v882, %v876
        %v887 = vadd.f32 %v883, %v878
        %v888 = vadd.f32 %v884, %v880
        %v889 = vrcp.pop %v885
        %v890 = vrcp.pop %v886
        %v891 = vrcp.pop %v887
        %v892 = vrcp.pop %v888
        %v893 = vmul.f32 %v850, %v889
        %v894 = vmul.f32 %v852, %v890
        %v895 = vmul.f32 %v854, %v891
        %v896 = vmul.f32 %v856, %v892
        %v897 = vmul.f32 %v862, %v889
        %v898 = vmul.f32 %v864, %v890
        %v899 = vmul.f32 %v866, %v891
        %v900 = vmul.f32 %v868, %v892
        %v901 = vmul.f32 %v874, %v889
        %v902 = vmul.f32 %v876, %v890
        %v903 = vmul.f32 %v878, %v891
        %v904 = vmul.f32 %v880, %v892
        %p905 = scmp.eq.s32.totalorder %s39, 0
        // Predicated region
        $region61: #{tpu_custom_call.1} parent=39 // pred_check
          %p906 = pneg %p905
        $region62: #{tpu_custom_call.1} parent=39 // pred_check_branch
          %908 = sbr.rel (%p906) target = $region64
        $region63: #{tpu_custom_call.1} parent=39 // pred_region
          %909 = vst [vmem:[#allocation2] sm:$0xff] 0.0
          %910 = vst [vmem:[#allocation2 + $0x8] sm:$0xff] 0.0
          %911 = vst [vmem:[#allocation2 + $0x10] sm:$0xff] 0.0
          %912 = vst [vmem:[#allocation2 + $0x18] sm:$0xff] 0.0
          %913 = vst [vmem:[#allocation2 + $0x20] sm:$0xff] 0.0
          %914 = vst [vmem:[#allocation2 + $0x28] sm:$0xff] 0.0
          %915 = vst [vmem:[#allocation2 + $0x30] sm:$0xff] 0.0
          %916 = vst [vmem:[#allocation2 + $0x38] sm:$0xff] 0.0
          %917 = vst [vmem:[#allocation2 + $0x40] sm:$0xff] 0.0
          %918 = vst [vmem:[#allocation2 + $0x48] sm:$0xff] 0.0
          %919 = vst [vmem:[#allocation2 + $0x50] sm:$0xff] 0.0
          %920 = vst [vmem:[#allocation2 + $0x58] sm:$0xff] 0.0
          %921 = vst [vmem:[#allocation2 + $0x60] sm:$0xff] 0.0
          %922 = vst [vmem:[#allocation2 + $0x68] sm:$0xff] 0.0
          %923 = vst [vmem:[#allocation2 + $0x70] sm:$0xff] 0.0
          %924 = vst [vmem:[#allocation2 + $0x78] sm:$0xff] 0.0
          %925 = vst [vmem:[#allocation2 + $0x80] sm:$0xff] 0.0
          %926 = vst [vmem:[#allocation2 + $0x88] sm:$0xff] 0.0
          %927 = vst [vmem:[#allocation2 + $0x90] sm:$0xff] 0.0
          %928 = vst [vmem:[#allocation2 + $0x98] sm:$0xff] 0.0
          %929 = vst [vmem:[#allocation2 + $0xa0] sm:$0xff] 0.0
          %930 = vst [vmem:[#allocation2 + $0xa8] sm:$0xff] 0.0
          %931 = vst [vmem:[#allocation2 + $0xb0] sm:$0xff] 0.0
          %932 = vst [vmem:[#allocation2 + $0xb8] sm:$0xff] 0.0
          %933 = vst [vmem:[#allocation2 + $0xc0] sm:$0xff] 0.0
          %934 = vst [vmem:[#allocation2 + $0xc8] sm:$0xff] 0.0
          %935 = vst [vmem:[#allocation2 + $0xd0] sm:$0xff] 0.0
          %936 = vst [vmem:[#allocation2 + $0xd8] sm:$0xff] 0.0
          %937 = vst [vmem:[#allocation2 + $0xe0] sm:$0xff] 0.0
          %938 = vst [vmem:[#allocation2 + $0xe8] sm:$0xff] 0.0
          %939 = vst [vmem:[#allocation2 + $0xf0] sm:$0xff] 0.0
          %940 = vst [vmem:[#allocation2 + $0xf8] sm:$0xff] 0.0
          %941 = vst [vmem:[#allocation2 + $0x100] sm:$0xff] 0.0
          %942 = vst [vmem:[#allocation2 + $0x108] sm:$0xff] 0.0
          %943 = vst [vmem:[#allocation2 + $0x110] sm:$0xff] 0.0
          %944 = vst [vmem:[#allocation2 + $0x118] sm:$0xff] 0.0
          %945 = vst [vmem:[#allocation2 + $0x120] sm:$0xff] 0.0
          %946 = vst [vmem:[#allocation2 + $0x128] sm:$0xff] 0.0
          %947 = vst [vmem:[#allocation2 + $0x130] sm:$0xff] 0.0
          %948 = vst [vmem:[#allocation2 + $0x138] sm:$0xff] 0.0
          %949 = vst [vmem:[#allocation2 + $0x140] sm:$0xff] 0.0
          %950 = vst [vmem:[#allocation2 + $0x148] sm:$0xff] 0.0
          %951 = vst [vmem:[#allocation2 + $0x150] sm:$0xff] 0.0
          %952 = vst [vmem:[#allocation2 + $0x158] sm:$0xff] 0.0
          %953 = vst [vmem:[#allocation2 + $0x160] sm:$0xff] 0.0
          %954 = vst [vmem:[#allocation2 + $0x168] sm:$0xff] 0.0
          %955 = vst [vmem:[#allocation2 + $0x170] sm:$0xff] 0.0
          %956 = vst [vmem:[#allocation2 + $0x178] sm:$0xff] 0.0
          %957 = vst [vmem:[#allocation3] sm:$0xff] 0.0
          %958 = vst [vmem:[#allocation3 + $0x8] sm:$0xff] 0.0
          %959 = vst [vmem:[#allocation3 + $0x10] sm:$0xff] 0.0
          %960 = vst [vmem:[#allocation3 + $0x18] sm:$0xff] 0.0
          %961 = vst [vmem:[#allocation3 + $0x20] sm:$0xff] 0.0
          %962 = vst [vmem:[#allocation3 + $0x28] sm:$0xff] 0.0
          %963 = vst [vmem:[#allocation3 + $0x30] sm:$0xff] 0.0
          %964 = vst [vmem:[#allocation3 + $0x38] sm:$0xff] 0.0
          %965 = vst [vmem:[#allocation3 + $0x40] sm:$0xff] 0.0
          %966 = vst [vmem:[#allocation3 + $0x48] sm:$0xff] 0.0
          %967 = vst [vmem:[#allocation3 + $0x50] sm:$0xff] 0.0
          %968 = vst [vmem:[#allocation3 + $0x58] sm:$0xff] 0.0
          %969 = vst [vmem:[#allocation3 + $0x60] sm:$0xff] 0.0
          %970 = vst [vmem:[#allocation3 + $0x68] sm:$0xff] 0.0
          %971 = vst [vmem:[#allocation3 + $0x70] sm:$0xff] 0.0
          %972 = vst [vmem:[#allocation3 + $0x78] sm:$0xff] 0.0
        $region64: #{tpu_custom_call.1} parent=39 // pred_fallthru
          _
        %s973 = sadd.s32 %s38, %s39
        %s974 = smul.u32 %s973, 4096
        %v975 = vlaneseq
        %v976 = vshrl.u32 %v975, 7
        %v977 = vadd.s32 %v976, 8
        %v978 = vadd.s32 %v976, 16
        %v979 = vadd.s32 %v976, 24
        %v980 = vlaneseq
        %v981 = vand.u32 %v980, 127
        %v982 = vmul.u32 %v976, 128
        %v983 = vmul.u32 %v977, 128
        %v984 = vmul.u32 %v978, 128
        %v985 = vmul.u32 %v979, 128
        %v986 = vstv %s974
        %v987 = vadd.s32 %v986, %v982
        %v988 = vadd.s32 %v986, %v983
        %v989 = vadd.s32 %v986, %v984
        %v990 = vadd.s32 %v986, %v985
        %v991 = vadd.s32 %v987, %v981
        %v992 = vadd.s32 %v988, %v981
        %v993 = vadd.s32 %v989, %v981
        %v994 = vadd.s32 %v990, %v981
        %vm995 = vcmp.lt.s32.totalorder %v991, 256
        %vm996 = vcmp.lt.s32.totalorder %v992, 256
        %vm997 = vcmp.lt.s32.totalorder %v993, 256
        %vm998 = vcmp.lt.s32.totalorder %v994, 256
        %vm999 = vcmp.eq.s32.totalorder %v733, 0
        %vm1000 = vcmp.eq.s32.totalorder %v734, 0
        %vm1001 = vcmp.eq.s32.totalorder %v735, 0
        %vm1002 = vcmp.eq.s32.totalorder %v736, 0
        %vm1003 = vmand %vm999, %vm995
        %vm1004 = vmand %vm1000, %vm996
        %vm1005 = vmand %vm1001, %vm997
        %vm1006 = vmand %vm1002, %vm998
        %v1007 = vld [vmem:[#allocation3] sm:$0xff]
        %v1008 = vld [vmem:[#allocation3 + $0x8] sm:$0xff]
        %v1009 = vld [vmem:[#allocation3 + $0x10] sm:$0xff]
        %v1010 = vld [vmem:[#allocation3 + $0x18] sm:$0xff]
        %v1011 = vsel %vm1003, 1, 0
        %v1012 = vsel %vm1004, 1, 0
        %v1013 = vsel %vm1005, 1, 0
        %v1014 = vsel %vm1006, 1, 0
        %v1015 = vcvt.s32.f32 %v1011
        %v1016 = vcvt.s32.f32 %v1012
        %v1017 = vcvt.s32.f32 %v1013
        %v1018 = vcvt.s32.f32 %v1014
        %v1019 = vadd.f32 %v1007, %v1015
        %v1020 = vadd.f32 %v1008, %v1016
        %v1021 = vadd.f32 %v1009, %v1017
        %v1022 = vadd.f32 %v1010, %v1018
        %1023 = vst [vmem:[#allocation3] sm:$0xff] %v1019
        %1024 = vst [vmem:[#allocation3 + $0x8] sm:$0xff] %v1020
        %1025 = vst [vmem:[#allocation3 + $0x10] sm:$0xff] %v1021
        %1026 = vst [vmem:[#allocation3 + $0x18] sm:$0xff] %v1022
        %v1027 = vld [vmem:[#allocation2] sm:$0xff]
        %v1028 = vld [vmem:[#allocation2 + $0x8] sm:$0xff]
        %v1029 = vld [vmem:[#allocation2 + $0x10] sm:$0xff]
        %v1030 = vld [vmem:[#allocation2 + $0x18] sm:$0xff]
        %v1031 = vsel %vm1003, %v893, 0.0
        %v1032 = vsel %vm1004, %v894, 0.0
        %v1033 = vsel %vm1005, %v895, 0.0
        %v1034 = vsel %vm1006, %v896, 0.0
        %v1035 = vadd.f32 %v1027, %v1031
        %v1036 = vadd.f32 %v1028, %v1032
        %v1037 = vadd.f32 %v1029, %v1033
        %v1038 = vadd.f32 %v1030, %v1034
        %1039 = vst [vmem:[#allocation2] sm:$0xff] %v1035
        %1040 = vst [vmem:[#allocation2 + $0x8] sm:$0xff] %v1036
        %1041 = vst [vmem:[#allocation2 + $0x10] sm:$0xff] %v1037
        %1042 = vst [vmem:[#allocation2 + $0x18] sm:$0xff] %v1038
        %s1043 = scalar_lea.vmem [#allocation2], 32
        %v1044 = vld [vmem:[%s1043] sm:$0xff]
        %v1045 = vld [vmem:[%s1043 + $0x8] sm:$0xff]
        %v1046 = vld [vmem:[%s1043 + $0x10] sm:$0xff]
        %v1047 = vld [vmem:[%s1043 + $0x18] sm:$0xff]
        %v1048 = vsel %vm1003, %v897, 0.0
        %v1049 = vsel %vm1004, %v898, 0.0
        %v1050 = vsel %vm1005, %v899, 0.0
        %v1051 = vsel %vm1006, %v900, 0.0
        %v1052 = vadd.f32 %v1044, %v1048
        %v1053 = vadd.f32 %v1045, %v1049
        %v1054 = vadd.f32 %v1046, %v1050
        %v1055 = vadd.f32 %v1047, %v1051
        %1056 = vst [vmem:[%s1043] sm:$0xff] %v1052
        %1057 = vst [vmem:[%s1043 + $0x8] sm:$0xff] %v1053
        %1058 = vst [vmem:[%s1043 + $0x10] sm:$0xff] %v1054
        %1059 = vst [vmem:[%s1043 + $0x18] sm:$0xff] %v1055
        %s1060 = scalar_lea.vmem [#allocation2], 64
        %v1061 = vld [vmem:[%s1060] sm:$0xff]
        %v1062 = vld [vmem:[%s1060 + $0x8] sm:$0xff]
        %v1063 = vld [vmem:[%s1060 + $0x10] sm:$0xff]
        %v1064 = vld [vmem:[%s1060 + $0x18] sm:$0xff]
        %v1065 = vsel %vm1003, %v901, 0.0
        %v1066 = vsel %vm1004, %v902, 0.0
        %v1067 = vsel %vm1005, %v903, 0.0
        %v1068 = vsel %vm1006, %v904, 0.0
        %v1069 = vadd.f32 %v1061, %v1065
        %v1070 = vadd.f32 %v1062, %v1066
        %v1071 = vadd.f32 %v1063, %v1067
        %v1072 = vadd.f32 %v1064, %v1068
        %1073 = vst [vmem:[%s1060] sm:$0xff] %v1069
        %1074 = vst [vmem:[%s1060 + $0x8] sm:$0xff] %v1070
        %1075 = vst [vmem:[%s1060 + $0x10] sm:$0xff] %v1071
        %1076 = vst [vmem:[%s1060 + $0x18] sm:$0xff] %v1072
        %vm1077 = vcmp.eq.s32.totalorder %v733, 1
        %vm1078 = vcmp.eq.s32.totalorder %v734, 1
        %vm1079 = vcmp.eq.s32.totalorder %v735, 1
        %vm1080 = vcmp.eq.s32.totalorder %v736, 1
        %vm1081 = vmand %vm1077, %vm995
        %vm1082 = vmand %vm1078, %vm996
        %vm1083 = vmand %vm1079, %vm997
        %vm1084 = vmand %vm1080, %vm998
        %s1085 = scalar_lea.vmem [#allocation3], 32
        %v1086 = vld [vmem:[%s1085] sm:$0xff]
        %v1087 = vld [vmem:[%s1085 + $0x8] sm:$0xff]
        %v1088 = vld [vmem:[%s1085 + $0x10] sm:$0xff]
        %v1089 = vld [vmem:[%s1085 + $0x18] sm:$0xff]
        %v1090 = vsel %vm1081, 1, 0
        %v1091 = vsel %vm1082, 1, 0
        %v1092 = vsel %vm1083, 1, 0
        %v1093 = vsel %vm1084, 1, 0
        %v1094 = vcvt.s32.f32 %v1090
        %v1095 = vcvt.s32.f32 %v1091
        %v1096 = vcvt.s32.f32 %v1092
        %v1097 = vcvt.s32.f32 %v1093
        %v1098 = vadd.f32 %v1086, %v1094
        %v1099 = vadd.f32 %v1087, %v1095
        %v1100 = vadd.f32 %v1088, %v1096
        %v1101 = vadd.f32 %v1089, %v1097
        %1102 = vst [vmem:[%s1085] sm:$0xff] %v1098
        %1103 = vst [vmem:[%s1085 + $0x8] sm:$0xff] %v1099
        %1104 = vst [vmem:[%s1085 + $0x10] sm:$0xff] %v1100
        %1105 = vst [vmem:[%s1085 + $0x18] sm:$0xff] %v1101
        %s1106 = scalar_lea.vmem [#allocation2], 96
        %v1107 = vld [vmem:[%s1106] sm:$0xff]
        %v1108 = vld [vmem:[%s1106 + $0x8] sm:$0xff]
        %v1109 = vld [vmem:[%s1106 + $0x10] sm:$0xff]
        %v1110 = vld [vmem:[%s1106 + $0x18] sm:$0xff]
        %v1111 = vsel %vm1081, %v893, 0.0
        %v1112 = vsel %vm1082, %v894, 0.0
        %v1113 = vsel %vm1083, %v895, 0.0
        %v1114 = vsel %vm1084, %v896, 0.0
        %v1115 = vadd.f32 %v1107, %v1111
        %v1116 = vadd.f32 %v1108, %v1112
        %v1117 = vadd.f32 %v1109, %v1113
        %v1118 = vadd.f32 %v1110, %v1114
        %1119 = vst [vmem:[%s1106] sm:$0xff] %v1115
        %1120 = vst [vmem:[%s1106 + $0x8] sm:$0xff] %v1116
        %1121 = vst [vmem:[%s1106 + $0x10] sm:$0xff] %v1117
        %1122 = vst [vmem:[%s1106 + $0x18] sm:$0xff] %v1118
        %s1123 = scalar_lea.vmem [#allocation2], 128
        %v1124 = vld [vmem:[%s1123] sm:$0xff]
        %v1125 = vld [vmem:[%s1123 + $0x8] sm:$0xff]
        %v1126 = vld [vmem:[%s1123 + $0x10] sm:$0xff]
        %v1127 = vld [vmem:[%s1123 + $0x18] sm:$0xff]
        %v1128 = vsel %vm1081, %v897, 0.0
        %v1129 = vsel %vm1082, %v898, 0.0
        %v1130 = vsel %vm1083, %v899, 0.0
        %v1131 = vsel %vm1084, %v900, 0.0
        %v1132 = vadd.f32 %v1124, %v1128
        %v1133 = vadd.f32 %v1125, %v1129
        %v1134 = vadd.f32 %v1126, %v1130
        %v1135 = vadd.f32 %v1127, %v1131
        %1136 = vst [vmem:[%s1123] sm:$0xff] %v1132
        %1137 = vst [vmem:[%s1123 + $0x8] sm:$0xff] %v1133
        %1138 = vst [vmem:[%s1123 + $0x10] sm:$0xff] %v1134
        %1139 = vst [vmem:[%s1123 + $0x18] sm:$0xff] %v1135
        %s1140 = scalar_lea.vmem [#allocation2], 160
        %v1141 = vld [vmem:[%s1140] sm:$0xff]
        %v1142 = vld [vmem:[%s1140 + $0x8] sm:$0xff]
        %v1143 = vld [vmem:[%s1140 + $0x10] sm:$0xff]
        %v1144 = vld [vmem:[%s1140 + $0x18] sm:$0xff]
        %v1145 = vsel %vm1081, %v901, 0.0
        %v1146 = vsel %vm1082, %v902, 0.0
        %v1147 = vsel %vm1083, %v903, 0.0
        %v1148 = vsel %vm1084, %v904, 0.0
        %v1149 = vadd.f32 %v1141, %v1145
        %v1150 = vadd.f32 %v1142, %v1146
        %v1151 = vadd.f32 %v1143, %v1147
        %v1152 = vadd.f32 %v1144, %v1148
        %1153 = vst [vmem:[%s1140] sm:$0xff] %v1149
        %1154 = vst [vmem:[%s1140 + $0x8] sm:$0xff] %v1150
        %1155 = vst [vmem:[%s1140 + $0x10] sm:$0xff] %v1151
        %1156 = vst [vmem:[%s1140 + $0x18] sm:$0xff] %v1152
        %vm1157 = vcmp.eq.s32.totalorder %v733, 2
        %vm1158 = vcmp.eq.s32.totalorder %v734, 2
        %vm1159 = vcmp.eq.s32.totalorder %v735, 2
        %vm1160 = vcmp.eq.s32.totalorder %v736, 2
        %vm1161 = vmand %vm1157, %vm995
        %vm1162 = vmand %vm1158, %vm996
        %vm1163 = vmand %vm1159, %vm997
        %vm1164 = vmand %vm1160, %vm998
        %s1165 = scalar_lea.vmem [#allocation3], 64
        %v1166 = vld [vmem:[%s1165] sm:$0xff]
        %v1167 = vld [vmem:[%s1165 + $0x8] sm:$0xff]
        %v1168 = vld [vmem:[%s1165 + $0x10] sm:$0xff]
        %v1169 = vld [vmem:[%s1165 + $0x18] sm:$0xff]
        %v1170 = vsel %vm1161, 1, 0
        %v1171 = vsel %vm1162, 1, 0
        %v1172 = vsel %vm1163, 1, 0
        %v1173 = vsel %vm1164, 1, 0
        %v1174 = vcvt.s32.f32 %v1170
        %v1175 = vcvt.s32.f32 %v1171
        %v1176 = vcvt.s32.f32 %v1172
        %v1177 = vcvt.s32.f32 %v1173
        %v1178 = vadd.f32 %v1166, %v1174
        %v1179 = vadd.f32 %v1167, %v1175
        %v1180 = vadd.f32 %v1168, %v1176
        %v1181 = vadd.f32 %v1169, %v1177
        %1182 = vst [vmem:[%s1165] sm:$0xff] %v1178
        %1183 = vst [vmem:[%s1165 + $0x8] sm:$0xff] %v1179
        %1184 = vst [vmem:[%s1165 + $0x10] sm:$0xff] %v1180
        %1185 = vst [vmem:[%s1165 + $0x18] sm:$0xff] %v1181
        %s1186 = scalar_lea.vmem [#allocation2], 192
        %v1187 = vld [vmem:[%s1186] sm:$0xff]
        %v1188 = vld [vmem:[%s1186 + $0x8] sm:$0xff]
        %v1189 = vld [vmem:[%s1186 + $0x10] sm:$0xff]
        %v1190 = vld [vmem:[%s1186 + $0x18] sm:$0xff]
        %v1191 = vsel %vm1161, %v893, 0.0
        %v1192 = vsel %vm1162, %v894, 0.0
        %v1193 = vsel %vm1163, %v895, 0.0
        %v1194 = vsel %vm1164, %v896, 0.0
        %v1195 = vadd.f32 %v1187, %v1191
        %v1196 = vadd.f32 %v1188, %v1192
        %v1197 = vadd.f32 %v1189, %v1193
        %v1198 = vadd.f32 %v1190, %v1194
        %1199 = vst [vmem:[%s1186] sm:$0xff] %v1195
        %1200 = vst [vmem:[%s1186 + $0x8] sm:$0xff] %v1196
        %1201 = vst [vmem:[%s1186 + $0x10] sm:$0xff] %v1197
        %1202 = vst [vmem:[%s1186 + $0x18] sm:$0xff] %v1198
        %s1203 = scalar_lea.vmem [#allocation2], 224
        %v1204 = vld [vmem:[%s1203] sm:$0xff]
        %v1205 = vld [vmem:[%s1203 + $0x8] sm:$0xff]
        %v1206 = vld [vmem:[%s1203 + $0x10] sm:$0xff]
        %v1207 = vld [vmem:[%s1203 + $0x18] sm:$0xff]
        %v1208 = vsel %vm1161, %v897, 0.0
        %v1209 = vsel %vm1162, %v898, 0.0
        %v1210 = vsel %vm1163, %v899, 0.0
        %v1211 = vsel %vm1164, %v900, 0.0
        %v1212 = vadd.f32 %v1204, %v1208
        %v1213 = vadd.f32 %v1205, %v1209
        %v1214 = vadd.f32 %v1206, %v1210
        %v1215 = vadd.f32 %v1207, %v1211
        %1216 = vst [vmem:[%s1203] sm:$0xff] %v1212
        %1217 = vst [vmem:[%s1203 + $0x8] sm:$0xff] %v1213
        %1218 = vst [vmem:[%s1203 + $0x10] sm:$0xff] %v1214
        %1219 = vst [vmem:[%s1203 + $0x18] sm:$0xff] %v1215
        %s1220 = scalar_lea.vmem [#allocation2], 256
        %v1221 = vld [vmem:[%s1220] sm:$0xff]
        %v1222 = vld [vmem:[%s1220 + $0x8] sm:$0xff]
        %v1223 = vld [vmem:[%s1220 + $0x10] sm:$0xff]
        %v1224 = vld [vmem:[%s1220 + $0x18] sm:$0xff]
        %v1225 = vsel %vm1161, %v901, 0.0
        %v1226 = vsel %vm1162, %v902, 0.0
        %v1227 = vsel %vm1163, %v903, 0.0
        %v1228 = vsel %vm1164, %v904, 0.0
        %v1229 = vadd.f32 %v1221, %v1225
        %v1230 = vadd.f32 %v1222, %v1226
        %v1231 = vadd.f32 %v1223, %v1227
        %v1232 = vadd.f32 %v1224, %v1228
        %1233 = vst [vmem:[%s1220] sm:$0xff] %v1229
        %1234 = vst [vmem:[%s1220 + $0x8] sm:$0xff] %v1230
        %1235 = vst [vmem:[%s1220 + $0x10] sm:$0xff] %v1231
        %1236 = vst [vmem:[%s1220 + $0x18] sm:$0xff] %v1232
        %vm1237 = vcmp.eq.s32.totalorder %v733, 3
        %vm1238 = vcmp.eq.s32.totalorder %v734, 3
        %vm1239 = vcmp.eq.s32.totalorder %v735, 3
        %vm1240 = vcmp.eq.s32.totalorder %v736, 3
        %vm1241 = vmand %vm1237, %vm995
        %vm1242 = vmand %vm1238, %vm996
        %vm1243 = vmand %vm1239, %vm997
        %vm1244 = vmand %vm1240, %vm998
        %s1245 = scalar_lea.vmem [#allocation3], 96
        %v1246 = vld [vmem:[%s1245] sm:$0xff]
        %v1247 = vld [vmem:[%s1245 + $0x8] sm:$0xff]
        %v1248 = vld [vmem:[%s1245 + $0x10] sm:$0xff]
        %v1249 = vld [vmem:[%s1245 + $0x18] sm:$0xff]
        %v1250 = vsel %vm1241, 1, 0
        %v1251 = vsel %vm1242, 1, 0
        %v1252 = vsel %vm1243, 1, 0
        %v1253 = vsel %vm1244, 1, 0
        %v1254 = vcvt.s32.f32 %v1250
        %v1255 = vcvt.s32.f32 %v1251
        %v1256 = vcvt.s32.f32 %v1252
        %v1257 = vcvt.s32.f32 %v1253
        %v1258 = vadd.f32 %v1246, %v1254
        %v1259 = vadd.f32 %v1247, %v1255
        %v1260 = vadd.f32 %v1248, %v1256
        %v1261 = vadd.f32 %v1249, %v1257
        %1262 = vst [vmem:[%s1245] sm:$0xff] %v1258
        %1263 = vst [vmem:[%s1245 + $0x8] sm:$0xff] %v1259
        %1264 = vst [vmem:[%s1245 + $0x10] sm:$0xff] %v1260
        %1265 = vst [vmem:[%s1245 + $0x18] sm:$0xff] %v1261
        %s1266 = scalar_lea.vmem [#allocation2], 288
        %v1267 = vld [vmem:[%s1266] sm:$0xff]
        %v1268 = vld [vmem:[%s1266 + $0x8] sm:$0xff]
        %v1269 = vld [vmem:[%s1266 + $0x10] sm:$0xff]
        %v1270 = vld [vmem:[%s1266 + $0x18] sm:$0xff]
        %v1271 = vsel %vm1241, %v893, 0.0
        %v1272 = vsel %vm1242, %v894, 0.0
        %v1273 = vsel %vm1243, %v895, 0.0
        %v1274 = vsel %vm1244, %v896, 0.0
        %v1275 = vadd.f32 %v1267, %v1271
        %v1276 = vadd.f32 %v1268, %v1272
        %v1277 = vadd.f32 %v1269, %v1273
        %v1278 = vadd.f32 %v1270, %v1274
        %1279 = vst [vmem:[%s1266] sm:$0xff] %v1275
        %1280 = vst [vmem:[%s1266 + $0x8] sm:$0xff] %v1276
        %1281 = vst [vmem:[%s1266 + $0x10] sm:$0xff] %v1277
        %1282 = vst [vmem:[%s1266 + $0x18] sm:$0xff] %v1278
        %s1283 = scalar_lea.vmem [#allocation2], 320
        %v1284 = vld [vmem:[%s1283] sm:$0xff]
        %v1285 = vld [vmem:[%s1283 + $0x8] sm:$0xff]
        %v1286 = vld [vmem:[%s1283 + $0x10] sm:$0xff]
        %v1287 = vld [vmem:[%s1283 + $0x18] sm:$0xff]
        %v1288 = vsel %vm1241, %v897, 0.0
        %v1289 = vsel %vm1242, %v898, 0.0
        %v1290 = vsel %vm1243, %v899, 0.0
        %v1291 = vsel %vm1244, %v900, 0.0
        %v1292 = vadd.f32 %v1284, %v1288
        %v1293 = vadd.f32 %v1285, %v1289
        %v1294 = vadd.f32 %v1286, %v1290
        %v1295 = vadd.f32 %v1287, %v1291
        %1296 = vst [vmem:[%s1283] sm:$0xff] %v1292
        %1297 = vst [vmem:[%s1283 + $0x8] sm:$0xff] %v1293
        %1298 = vst [vmem:[%s1283 + $0x10] sm:$0xff] %v1294
        %1299 = vst [vmem:[%s1283 + $0x18] sm:$0xff] %v1295
        %s1300 = scalar_lea.vmem [#allocation2], 352
        %v1301 = vld [vmem:[%s1300] sm:$0xff]
        %v1302 = vld [vmem:[%s1300 + $0x8] sm:$0xff]
        %v1303 = vld [vmem:[%s1300 + $0x10] sm:$0xff]
        %v1304 = vld [vmem:[%s1300 + $0x18] sm:$0xff]
        %v1305 = vsel %vm1241, %v901, 0.0
        %v1306 = vsel %vm1242, %v902, 0.0
        %v1307 = vsel %vm1243, %v903, 0.0
        %v1308 = vsel %vm1244, %v904, 0.0
        %v1309 = vadd.f32 %v1301, %v1305
        %v1310 = vadd.f32 %v1302, %v1306
        %v1311 = vadd.f32 %v1303, %v1307
        %v1312 = vadd.f32 %v1304, %v1308
        %1313 = vst [vmem:[%s1300] sm:$0xff] %v1309
        %1314 = vst [vmem:[%s1300 + $0x8] sm:$0xff] %v1310
        %1315 = vst [vmem:[%s1300 + $0x10] sm:$0xff] %v1311
        %1316 = vst [vmem:[%s1300 + $0x18] sm:$0xff] %v1312
        // Predicated region
        $region65: #{tpu_custom_call.1} parent=39 // pred_check
          %p1317 = pneg %p905
        $region66: #{tpu_custom_call.1} parent=39 // pred_check_branch
          %1319 = sbr.rel (%p1317) target = $region68
        $region67: #{tpu_custom_call.1} parent=39 // pred_region
          %v1320 = vld [vmem:[#allocation2] sm:$0xff]
          %v1321 = vld [vmem:[#allocation2 + $0x8] sm:$0xff]
          %v1322 = vld [vmem:[#allocation2 + $0x10] sm:$0xff]
          %v1323 = vld [vmem:[#allocation2 + $0x18] sm:$0xff]
          %1324 = vadd.xlane.f32.xlu0 %v1320
          %v1325 = vpop.xlane.xlu0 %1324
          %1326 = vadd.xlane.f32.xlu0 %v1321
          %v1327 = vpop.xlane.xlu0 %1326
          %1328 = vadd.xlane.f32.xlu0 %v1322
          %v1329 = vpop.xlane.xlu0 %1328
          %1330 = vadd.xlane.f32.xlu0 %v1323
          %v1331 = vpop.xlane.xlu0 %1330
          %v1332 = vadd.f32 %v1325, %v1327
          %v1333 = vadd.f32 %v1332, %v1329
          %v1334 = vadd.f32 %v1333, %v1331
          %v1335 = vrot.slane %v1334, 4
          %v1336 = vadd.f32 %v1334, %v1335
          %v1337 = vrot.slane %v1336, 2
          %v1338 = vadd.f32 %v1336, %v1337
          %v1339 = vrot.slane %v1338, 1
          %v1340 = vadd.f32 %v1338, %v1339
          %v1341 = vld [vmem:[%s1043] sm:$0xff]
          %v1342 = vld [vmem:[%s1043 + $0x8] sm:$0xff]
          %v1343 = vld [vmem:[%s1043 + $0x10] sm:$0xff]
          %v1344 = vld [vmem:[%s1043 + $0x18] sm:$0xff]
          %1345 = vadd.xlane.f32.xlu0 %v1341
          %v1346 = vpop.xlane.xlu0 %1345
          %1347 = vadd.xlane.f32.xlu0 %v1342
          %v1348 = vpop.xlane.xlu0 %1347
          %1349 = vadd.xlane.f32.xlu0 %v1343
          %v1350 = vpop.xlane.xlu0 %1349
          %1351 = vadd.xlane.f32.xlu0 %v1344
          %v1352 = vpop.xlane.xlu0 %1351
          %v1353 = vadd.f32 %v1346, %v1348
          %v1354 = vadd.f32 %v1353, %v1350
          %v1355 = vadd.f32 %v1354, %v1352
          %v1356 = vrot.slane %v1355, 4
          %v1357 = vadd.f32 %v1355, %v1356
          %v1358 = vrot.slane %v1357, 2
          %v1359 = vadd.f32 %v1357, %v1358
          %v1360 = vrot.slane %v1359, 1
          %v1361 = vadd.f32 %v1359, %v1360
          %v1362 = vld [vmem:[%s1060] sm:$0xff]
          %v1363 = vld [vmem:[%s1060 + $0x8] sm:$0xff]
          %v1364 = vld [vmem:[%s1060 + $0x10] sm:$0xff]
          %v1365 = vld [vmem:[%s1060 + $0x18] sm:$0xff]
          %1366 = vadd.xlane.f32.xlu0 %v1362
          %v1367 = vpop.xlane.xlu0 %1366
          %1368 = vadd.xlane.f32.xlu0 %v1363
          %v1369 = vpop.xlane.xlu0 %1368
          %1370 = vadd.xlane.f32.xlu0 %v1364
          %v1371 = vpop.xlane.xlu0 %1370
          %1372 = vadd.xlane.f32.xlu0 %v1365
          %v1373 = vpop.xlane.xlu0 %1372
          %v1374 = vadd.f32 %v1367, %v1369
          %v1375 = vadd.f32 %v1374, %v1371
          %v1376 = vadd.f32 %v1375, %v1373
          %v1377 = vrot.slane %v1376, 4
          %v1378 = vadd.f32 %v1376, %v1377
          %v1379 = vrot.slane %v1378, 2
          %v1380 = vadd.f32 %v1378, %v1379
          %v1381 = vrot.slane %v1380, 1
          %v1382 = vadd.f32 %v1380, %v1381
          %vm1383 = vcmp.eq.s32.totalorder %v981, 0
          %vm1384 = vcmp.eq.s32.totalorder %v981, 1
          %v1385 = vsel %vm1384, %v1361, %v1382
          %v1386 = vsel %vm1383, %v1340, %v1385
          %v1387 = vld [vmem:[%s1106] sm:$0xff]
          %v1388 = vld [vmem:[%s1106 + $0x8] sm:$0xff]
          %v1389 = vld [vmem:[%s1106 + $0x10] sm:$0xff]
          %v1390 = vld [vmem:[%s1106 + $0x18] sm:$0xff]
          %1391 = vadd.xlane.f32.xlu0 %v1387
          %v1392 = vpop.xlane.xlu0 %1391
          %1393 = vadd.xlane.f32.xlu0 %v1388
          %v1394 = vpop.xlane.xlu0 %1393
          %1395 = vadd.xlane.f32.xlu0 %v1389
          %v1396 = vpop.xlane.xlu0 %1395
          %1397 = vadd.xlane.f32.xlu0 %v1390
          %v1398 = vpop.xlane.xlu0 %1397
          %v1399 = vadd.f32 %v1392, %v1394
          %v1400 = vadd.f32 %v1399, %v1396
          %v1401 = vadd.f32 %v1400, %v1398
          %v1402 = vrot.slane %v1401, 4
          %v1403 = vadd.f32 %v1401, %v1402
          %v1404 = vrot.slane %v1403, 2
          %v1405 = vadd.f32 %v1403, %v1404
          %v1406 = vrot.slane %v1405, 1
          %v1407 = vadd.f32 %v1405, %v1406
          %v1408 = vld [vmem:[%s1123] sm:$0xff]
          %v1409 = vld [vmem:[%s1123 + $0x8] sm:$0xff]
          %v1410 = vld [vmem:[%s1123 + $0x10] sm:$0xff]
          %v1411 = vld [vmem:[%s1123 + $0x18] sm:$0xff]
          %1412 = vadd.xlane.f32.xlu0 %v1408
          %v1413 = vpop.xlane.xlu0 %1412
          %1414 = vadd.xlane.f32.xlu0 %v1409
          %v1415 = vpop.xlane.xlu0 %1414
          %1416 = vadd.xlane.f32.xlu0 %v1410
          %v1417 = vpop.xlane.xlu0 %1416
          %1418 = vadd.xlane.f32.xlu0 %v1411
          %v1419 = vpop.xlane.xlu0 %1418
          %v1420 = vadd.f32 %v1413, %v1415
          %v1421 = vadd.f32 %v1420, %v1417
          %v1422 = vadd.f32 %v1421, %v1419
          %v1423 = vrot.slane %v1422, 4
          %v1424 = vadd.f32 %v1422, %v1423
          %v1425 = vrot.slane %v1424, 2
          %v1426 = vadd.f32 %v1424, %v1425
          %v1427 = vrot.slane %v1426, 1
          %v1428 = vadd.f32 %v1426, %v1427
          %v1429 = vld [vmem:[%s1140] sm:$0xff]
          %v1430 = vld [vmem:[%s1140 + $0x8] sm:$0xff]
          %v1431 = vld [vmem:[%s1140 + $0x10] sm:$0xff]
          %v1432 = vld [vmem:[%s1140 + $0x18] sm:$0xff]
          %1433 = vadd.xlane.f32.xlu0 %v1429
          %v1434 = vpop.xlane.xlu0 %1433
          %1435 = vadd.xlane.f32.xlu0 %v1430
          %v1436 = vpop.xlane.xlu0 %1435
          %1437 = vadd.xlane.f32.xlu0 %v1431
          %v1438 = vpop.xlane.xlu0 %1437
          %1439 = vadd.xlane.f32.xlu0 %v1432
          %v1440 = vpop.xlane.xlu0 %1439
          %v1441 = vadd.f32 %v1434, %v1436
          %v1442 = vadd.f32 %v1441, %v1438
          %v1443 = vadd.f32 %v1442, %v1440
          %v1444 = vrot.slane %v1443, 4
          %v1445 = vadd.f32 %v1443, %v1444
          %v1446 = vrot.slane %v1445, 2
          %v1447 = vadd.f32 %v1445, %v1446
          %v1448 = vrot.slane %v1447, 1
          %v1449 = vadd.f32 %v1447, %v1448
          %v1450 = vsel %vm1384, %v1428, %v1449
          %v1451 = vsel %vm1383, %v1407, %v1450
          %v1452 = vld [vmem:[%s1186] sm:$0xff]
          %v1453 = vld [vmem:[%s1186 + $0x8] sm:$0xff]
          %v1454 = vld [vmem:[%s1186 + $0x10] sm:$0xff]
          %v1455 = vld [vmem:[%s1186 + $0x18] sm:$0xff]
          %1456 = vadd.xlane.f32.xlu0 %v1452
          %v1457 = vpop.xlane.xlu0 %1456
          %1458 = vadd.xlane.f32.xlu0 %v1453
          %v1459 = vpop.xlane.xlu0 %1458
          %1460 = vadd.xlane.f32.xlu0 %v1454
          %v1461 = vpop.xlane.xlu0 %1460
          %1462 = vadd.xlane.f32.xlu0 %v1455
          %v1463 = vpop.xlane.xlu0 %1462
          %v1464 = vadd.f32 %v1457, %v1459
          %v1465 = vadd.f32 %v1464, %v1461
          %v1466 = vadd.f32 %v1465, %v1463
          %v1467 = vrot.slane %v1466, 4
          %v1468 = vadd.f32 %v1466, %v1467
          %v1469 = vrot.slane %v1468, 2
          %v1470 = vadd.f32 %v1468, %v1469
          %v1471 = vrot.slane %v1470, 1
          %v1472 = vadd.f32 %v1470, %v1471
          %v1473 = vld [vmem:[%s1203] sm:$0xff]
          %v1474 = vld [vmem:[%s1203 + $0x8] sm:$0xff]
          %v1475 = vld [vmem:[%s1203 + $0x10] sm:$0xff]
          %v1476 = vld [vmem:[%s1203 + $0x18] sm:$0xff]
          %1477 = vadd.xlane.f32.xlu0 %v1473
          %v1478 = vpop.xlane.xlu0 %1477
          %1479 = vadd.xlane.f32.xlu0 %v1474
          %v1480 = vpop.xlane.xlu0 %1479
          %1481 = vadd.xlane.f32.xlu0 %v1475
          %v1482 = vpop.xlane.xlu0 %1481
          %1483 = vadd.xlane.f32.xlu0 %v1476
          %v1484 = vpop.xlane.xlu0 %1483
          %v1485 = vadd.f32 %v1478, %v1480
          %v1486 = vadd.f32 %v1485, %v1482
          %v1487 = vadd.f32 %v1486, %v1484
          %v1488 = vrot.slane %v1487, 4
          %v1489 = vadd.f32 %v1487, %v1488
          %v1490 = vrot.slane %v1489, 2
          %v1491 = vadd.f32 %v1489, %v1490
          %v1492 = vrot.slane %v1491, 1
          %v1493 = vadd.f32 %v1491, %v1492
          %v1494 = vld [vmem:[%s1220] sm:$0xff]
          %v1495 = vld [vmem:[%s1220 + $0x8] sm:$0xff]
          %v1496 = vld [vmem:[%s1220 + $0x10] sm:$0xff]
          %v1497 = vld [vmem:[%s1220 + $0x18] sm:$0xff]
          %1498 = vadd.xlane.f32.xlu0 %v1494
          %v1499 = vpop.xlane.xlu0 %1498
          %1500 = vadd.xlane.f32.xlu0 %v1495
          %v1501 = vpop.xlane.xlu0 %1500
          %1502 = vadd.xlane.f32.xlu0 %v1496
          %v1503 = vpop.xlane.xlu0 %1502
          %1504 = vadd.xlane.f32.xlu0 %v1497
          %v1505 = vpop.xlane.xlu0 %1504
          %v1506 = vadd.f32 %v1499, %v1501
          %v1507 = vadd.f32 %v1506, %v1503
          %v1508 = vadd.f32 %v1507, %v1505
          %v1509 = vrot.slane %v1508, 4
          %v1510 = vadd.f32 %v1508, %v1509
          %v1511 = vrot.slane %v1510, 2
          %v1512 = vadd.f32 %v1510, %v1511
          %v1513 = vrot.slane %v1512, 1
          %v1514 = vadd.f32 %v1512, %v1513
          %v1515 = vsel %vm1384, %v1493, %v1514
          %v1516 = vsel %vm1383, %v1472, %v1515
          %v1517 = vld [vmem:[%s1266] sm:$0xff]
          %v1518 = vld [vmem:[%s1266 + $0x8] sm:$0xff]
          %v1519 = vld [vmem:[%s1266 + $0x10] sm:$0xff]
          %v1520 = vld [vmem:[%s1266 + $0x18] sm:$0xff]
          %1521 = vadd.xlane.f32.xlu0 %v1517
          %v1522 = vpop.xlane.xlu0 %1521
          %1523 = vadd.xlane.f32.xlu0 %v1518
          %v1524 = vpop.xlane.xlu0 %1523
          %1525 = vadd.xlane.f32.xlu0 %v1519
          %v1526 = vpop.xlane.xlu0 %1525
          %1527 = vadd.xlane.f32.xlu0 %v1520
          %v1528 = vpop.xlane.xlu0 %1527
          %v1529 = vadd.f32 %v1522, %v1524
          %v1530 = vadd.f32 %v1529, %v1526
          %v1531 = vadd.f32 %v1530, %v1528
          %v1532 = vrot.slane %v1531, 4
          %v1533 = vadd.f32 %v1531, %v1532
          %v1534 = vrot.slane %v1533, 2
          %v1535 = vadd.f32 %v1533, %v1534
          %v1536 = vrot.slane %v1535, 1
          %v1537 = vadd.f32 %v1535, %v1536
          %v1538 = vld [vmem:[%s1283] sm:$0xff]
          %v1539 = vld [vmem:[%s1283 + $0x8] sm:$0xff]
          %v1540 = vld [vmem:[%s1283 + $0x10] sm:$0xff]
          %v1541 = vld [vmem:[%s1283 + $0x18] sm:$0xff]
          %1542 = vadd.xlane.f32.xlu0 %v1538
          %v1543 = vpop.xlane.xlu0 %1542
          %1544 = vadd.xlane.f32.xlu0 %v1539
          %v1545 = vpop.xlane.xlu0 %1544
          %1546 = vadd.xlane.f32.xlu0 %v1540
          %v1547 = vpop.xlane.xlu0 %1546
          %1548 = vadd.xlane.f32.xlu0 %v1541
          %v1549 = vpop.xlane.xlu0 %1548
          %v1550 = vadd.f32 %v1543, %v1545
          %v1551 = vadd.f32 %v1550, %v1547
          %v1552 = vadd.f32 %v1551, %v1549
          %v1553 = vrot.slane %v1552, 4
          %v1554 = vadd.f32 %v1552, %v1553
          %v1555 = vrot.slane %v1554, 2
          %v1556 = vadd.f32 %v1554, %v1555
          %v1557 = vrot.slane %v1556, 1
          %v1558 = vadd.f32 %v1556, %v1557
          %v1559 = vld [vmem:[%s1300] sm:$0xff]
          %v1560 = vld [vmem:[%s1300 + $0x8] sm:$0xff]
          %v1561 = vld [vmem:[%s1300 + $0x10] sm:$0xff]
          %v1562 = vld [vmem:[%s1300 + $0x18] sm:$0xff]
          %1563 = vadd.xlane.f32.xlu0 %v1559
          %v1564 = vpop.xlane.xlu0 %1563
          %1565 = vadd.xlane.f32.xlu0 %v1560
          %v1566 = vpop.xlane.xlu0 %1565
          %1567 = vadd.xlane.f32.xlu0 %v1561
          %v1568 = vpop.xlane.xlu0 %1567
          %1569 = vadd.xlane.f32.xlu0 %v1562
          %v1570 = vpop.xlane.xlu0 %1569
          %v1571 = vadd.f32 %v1564, %v1566
          %v1572 = vadd.f32 %v1571, %v1568
          %v1573 = vadd.f32 %v1572, %v1570
          %v1574 = vrot.slane %v1573, 4
          %v1575 = vadd.f32 %v1573, %v1574
          %v1576 = vrot.slane %v1575, 2
          %v1577 = vadd.f32 %v1575, %v1576
          %v1578 = vrot.slane %v1577, 1
          %v1579 = vadd.f32 %v1577, %v1578
          %v1580 = vsel %vm1384, %v1558, %v1579
          %v1581 = vsel %vm1383, %v1537, %v1580
          %vm1582 = vcmp.eq.s32.totalorder %v976, 0
          %vm1583 = vcmp.eq.s32.totalorder %v976, 1
          %vm1584 = vcmp.eq.s32.totalorder %v976, 2
          %v1585 = vsel %vm1584, %v1516, %v1581
          %v1586 = vsel %vm1583, %v1451, %v1585
          %v1587 = vsel %vm1582, %v1386, %v1586
          %vm1588 = vcmask 19456
          %1589 = vst.msk [vmem:[%s452] sm:$0xf] %vm1588, %v1587
          %v1590 = vld [vmem:[#allocation3] sm:$0xff]
          %v1591 = vld [vmem:[#allocation3 + $0x8] sm:$0xff]
          %v1592 = vld [vmem:[#allocation3 + $0x10] sm:$0xff]
          %v1593 = vld [vmem:[#allocation3 + $0x18] sm:$0xff]
          %1594 = vadd.xlane.f32.xlu0 %v1590
          %v1595 = vpop.xlane.xlu0 %1594
          %1596 = vadd.xlane.f32.xlu0 %v1591
          %v1597 = vpop.xlane.xlu0 %1596
          %1598 = vadd.xlane.f32.xlu0 %v1592
          %v1599 = vpop.xlane.xlu0 %1598
          %1600 = vadd.xlane.f32.xlu0 %v1593
          %v1601 = vpop.xlane.xlu0 %1600
          %v1602 = vadd.f32 %v1595, %v1597
          %v1603 = vadd.f32 %v1602, %v1599
          %v1604 = vadd.f32 %v1603, %v1601
          %v1605 = vrot.slane %v1604, 4
          %v1606 = vadd.f32 %v1604, %v1605
          %v1607 = vrot.slane %v1606, 2
          %v1608 = vadd.f32 %v1606, %v1607
          %v1609 = vrot.slane %v1608, 1
          %v1610 = vadd.f32 %v1608, %v1609
          %v1611 = vld [vmem:[%s1085] sm:$0xff]
          %v1612 = vld [vmem:[%s1085 + $0x8] sm:$0xff]
          %v1613 = vld [vmem:[%s1085 + $0x10] sm:$0xff]
          %v1614 = vld [vmem:[%s1085 + $0x18] sm:$0xff]
          %1615 = vadd.xlane.f32.xlu0 %v1611
          %v1616 = vpop.xlane.xlu0 %1615
          %1617 = vadd.xlane.f32.xlu0 %v1612
          %v1618 = vpop.xlane.xlu0 %1617
          %1619 = vadd.xlane.f32.xlu0 %v1613
          %v1620 = vpop.xlane.xlu0 %1619
          %1621 = vadd.xlane.f32.xlu0 %v1614
          %v1622 = vpop.xlane.xlu0 %1621
          %v1623 = vadd.f32 %v1616, %v1618
          %v1624 = vadd.f32 %v1623, %v1620
          %v1625 = vadd.f32 %v1624, %v1622
          %v1626 = vrot.slane %v1625, 4
          %v1627 = vadd.f32 %v1625, %v1626
          %v1628 = vrot.slane %v1627, 2
          %v1629 = vadd.f32 %v1627, %v1628
          %v1630 = vrot.slane %v1629, 1
          %v1631 = vadd.f32 %v1629, %v1630
          %v1632 = vld [vmem:[%s1165] sm:$0xff]
          %v1633 = vld [vmem:[%s1165 + $0x8] sm:$0xff]
          %v1634 = vld [vmem:[%s1165 + $0x10] sm:$0xff]
          %v1635 = vld [vmem:[%s1165 + $0x18] sm:$0xff]
          %1636 = vadd.xlane.f32.xlu0 %v1632
          %v1637 = vpop.xlane.xlu0 %1636
          %1638 = vadd.xlane.f32.xlu0 %v1633
          %v1639 = vpop.xlane.xlu0 %1638
          %1640 = vadd.xlane.f32.xlu0 %v1634
          %v1641 = vpop.xlane.xlu0 %1640
          %1642 = vadd.xlane.f32.xlu0 %v1635
          %v1643 = vpop.xlane.xlu0 %1642
          %v1644 = vadd.f32 %v1637, %v1639
          %v1645 = vadd.f32 %v1644, %v1641
          %v1646 = vadd.f32 %v1645, %v1643
          %v1647 = vrot.slane %v1646, 4
          %v1648 = vadd.f32 %v1646, %v1647
          %v1649 = vrot.slane %v1648, 2
          %v1650 = vadd.f32 %v1648, %v1649
          %v1651 = vrot.slane %v1650, 1
          %v1652 = vadd.f32 %v1650, %v1651
          %v1653 = vld [vmem:[%s1245] sm:$0xff]
          %v1654 = vld [vmem:[%s1245 + $0x8] sm:$0xff]
          %v1655 = vld [vmem:[%s1245 + $0x10] sm:$0xff]
          %v1656 = vld [vmem:[%s1245 + $0x18] sm:$0xff]
          %1657 = vadd.xlane.f32.xlu0 %v1653
          %v1658 = vpop.xlane.xlu0 %1657
          %1659 = vadd.xlane.f32.xlu0 %v1654
          %v1660 = vpop.xlane.xlu0 %1659
          %1661 = vadd.xlane.f32.xlu0 %v1655
          %v1662 = vpop.xlane.xlu0 %1661
          %1663 = vadd.xlane.f32.xlu0 %v1656
          %v1664 = vpop.xlane.xlu0 %1663
          %v1665 = vadd.f32 %v1658, %v1660
          %v1666 = vadd.f32 %v1665, %v1662
          %v1667 = vadd.f32 %v1666, %v1664
          %v1668 = vrot.slane %v1667, 4
          %v1669 = vadd.f32 %v1667, %v1668
          %v1670 = vrot.slane %v1669, 2
          %v1671 = vadd.f32 %v1669, %v1670
          %v1672 = vrot.slane %v1671, 1
          %v1673 = vadd.f32 %v1671, %v1672
          %v1674 = vsel %vm1584, %v1652, %v1673
          %v1675 = vsel %vm1583, %v1631, %v1674
          %v1676 = vsel %vm1582, %v1610, %v1675
          %vm1677 = vcmask 3072
          %1678 = vst.msk [vmem:[%s459] sm:$0xf] %vm1677, %v1676
        $region68: #{tpu_custom_call.1} parent=39 // pred_fallthru
          _
        %s1679 = sand.u32 %s177, 1
        %s1680 = scalar_lea.sflag [#allocation6], %s1679
        %s1681 = sand.u32 %s177, 1
        %s1682 = smul.addr %s1681, 128
        %s1683 = scalar_lea.vmem [#allocation14], %s1682
        %s1684 = sand.u32 %s207, 1
        %s1685 = scalar_lea.sflag [#allocation16], %s1684
        %s1686 = sand.u32 %s207, 1
        %s1687 = smul.addr %s1686, 8
        %s1688 = scalar_lea.vmem [#allocation15], %s1687
        %p1689 = scmp.lt.s32.totalorder %s37, 1
        %s1690 = scalar_select %p1689, %s37, 1
        %p1691 = scmp.lt.s32.totalorder %s38, 0
        %s1692 = scalar_select %p1691, %s38, 0
        %s1693 = sadd.s32 %s1692, %s1690
        %s1694 = smul.addr %s1693, 4
        %s1695 = scalar_lea.vmem %s7, %s1694
        %p1696 = scmp.lt.s32.totalorder %s37, 1
        %s1697 = scalar_select %p1696, %s37, 1
        %p1698 = scmp.lt.s32.totalorder %s38, 0
        %s1699 = scalar_select %p1698, %s38, 0
        %s1700 = sadd.s32 %s1699, %s1697
        %s1701 = smul.addr %s1700, 4
        %s1702 = scalar_lea.vmem %s8, %s1701
        // Predicated region
        $region69: #{tpu_custom_call.1} parent=39 // pred_check
          %p1703 = pneg %p187
        $region70: #{tpu_custom_call.1} parent=39 // pred_check_branch
          %1705 = sbr.rel (%p1703) target = $region72
        $region71: #{tpu_custom_call.1} parent=39 // pred_region
          %s1706 = sadd.s32 %s38, %s39
          %s1707 = smul.u32 4, %s1706
          %s1709 = ssub.s32 2048, 2048
          %1710 = vsyncadd %s1680, %s1709
          %s1711 = smul.addr %s37, 16
          %s1712 = sadd.s32 %s1707, %s1711
          %s1713 = smul.addr %s1712, 128
          %s1714 = scalar_lea.hbm %s5, %s1713
          %s1715 = sshll.u32 %s1683, 4
          %s1716 = int_to_ptr.vmem [resolvable:$true] %s1715
          %1721 = dma.vmem_to_hbm [thread:$0]  %s1716, 2048, %s1714, %s1680, 128, 128, 8
        $region72: #{tpu_custom_call.1} parent=39 // pred_fallthru
          _
        // Predicated region
        $region73: #{tpu_custom_call.1} parent=39 // pred_check
          %p1722 = pneg %p217
        $region74: #{tpu_custom_call.1} parent=39 // pred_check_branch
          %1724 = sbr.rel (%p1722) target = $region76
        $region75: #{tpu_custom_call.1} parent=39 // pred_region
          %s1725 = sadd.s32 %s38, %s39
          %s1727 = ssub.s32 128, 128
          %1728 = vsyncadd %s1685, %s1727
          %s1729 = sadd.s32 %s1725, %s37
          %s1730 = smul.addr %s1729, 128
          %s1731 = scalar_lea.hbm %s6, %s1730
          %s1733 = sshll.u32 %s1688, 4
          %s1734 = int_to_ptr.vmem [resolvable:$true] %s1733
          %1736 = dma.vmem_to_hbm [thread:$0]  %s1734, 128, %s1731, %s1685
        $region76: #{tpu_custom_call.1} parent=39 // pred_fallthru
          _
        // Predicated region
        $region77: #{tpu_custom_call.1} parent=39 // pred_check
          %p1737 = pneg %p245
        $region78: #{tpu_custom_call.1} parent=39 // pred_check_branch
          %1739 = sbr.rel (%p1737) target = $region80
        $region79: #{tpu_custom_call.1} parent=39 // pred_region
          _
        $region80: #{tpu_custom_call.1} parent=39 // pred_fallthru
          _
        // Predicated region
        $region81: #{tpu_custom_call.1} parent=39 // pred_check
          %p1740 = pneg %p273
        $region82: #{tpu_custom_call.1} parent=39 // pred_check_branch
          %1742 = sbr.rel (%p1740) target = $region84
        $region83: #{tpu_custom_call.1} parent=39 // pred_region
          _
        $region84: #{tpu_custom_call.1} parent=39 // pred_fallthru
          _
      $region40: #{tpu_custom_call.1} parent=5 // pred_fallthru
        _
      %p1743 = scmp.le.s32.totalorder 2, %s27
      // Predicated region
      $region85: #{tpu_custom_call.1} parent=5 // pred_check
        %p1744 = pneg %p1743
      $region86: #{tpu_custom_call.1} parent=5 // pred_check_branch
        %1746 = sbr.rel (%p1744) target = $region88
      $region87: #{tpu_custom_call.1} parent=5 // pred_region
        %s1747 = ssub.s32 %s27, 2
        // Predicated region
        $region89: #{tpu_custom_call.1} parent=87 // pred_check
          %p1748 = pneg %p193
        $region90: #{tpu_custom_call.1} parent=87 // pred_check_branch
          %1750 = sbr.rel (%p1748) target = $region92
        $region91: #{tpu_custom_call.1} parent=87 // pred_region
          %s1751 = sand.u32 %s178, 1
          %s1752 = scalar_lea.sflag [#allocation6], %s1751
          %s1753 = sand.u32 %s178, 1
          %s1754 = smul.addr %s1753, 128
          %s1755 = scalar_lea.vmem [#allocation14], %s1754
          %1756 = dma.done %s1752, 2048
        $region92: #{tpu_custom_call.1} parent=87 // pred_fallthru
          _
        // Predicated region
        $region93: #{tpu_custom_call.1} parent=87 // pred_check
          %p1757 = pneg %p223
        $region94: #{tpu_custom_call.1} parent=87 // pred_check_branch
          %1759 = sbr.rel (%p1757) target = $region96
        $region95: #{tpu_custom_call.1} parent=87 // pred_region
          %s1760 = sand.u32 %s208, 1
          %s1761 = scalar_lea.sflag [#allocation16], %s1760
          %s1762 = sand.u32 %s208, 1
          %s1763 = smul.addr %s1762, 8
          %s1764 = scalar_lea.vmem [#allocation15], %s1763
          %1765 = dma.done %s1761, 128
        $region96: #{tpu_custom_call.1} parent=87 // pred_fallthru
          _
        // Predicated region
        $region97: #{tpu_custom_call.1} parent=87 // pred_check
          %p1766 = pneg %p251
        $region98: #{tpu_custom_call.1} parent=87 // pred_check_branch
          %1768 = sbr.rel (%p1766) target = $region100
        $region99: #{tpu_custom_call.1} parent=87 // pred_region
          %p1769 = scmp.lt.s32.totalorder %s40, 1
          %s1770 = scalar_select %p1769, %s40, 1
          %p1771 = scmp.lt.s32.totalorder %s41, 0
          %s1772 = scalar_select %p1771, %s41, 0
          %s1773 = sadd.s32 %s1772, %s1770
          %s1774 = smul.addr %s1773, 4
          %s1775 = scalar_lea.vmem %s7, %s1774
        $region100: #{tpu_custom_call.1} parent=87 // pred_fallthru
          _
        // Predicated region
        $region101: #{tpu_custom_call.1} parent=87 // pred_check
          %p1776 = pneg %p279
        $region102: #{tpu_custom_call.1} parent=87 // pred_check_branch
          %1778 = sbr.rel (%p1776) target = $region104
        $region103: #{tpu_custom_call.1} parent=87 // pred_region
          %p1779 = scmp.lt.s32.totalorder %s40, 1
          %s1780 = scalar_select %p1779, %s40, 1
          %p1781 = scmp.lt.s32.totalorder %s41, 0
          %s1782 = scalar_select %p1781, %s41, 0
          %s1783 = sadd.s32 %s1782, %s1780
          %s1784 = smul.addr %s1783, 4
          %s1785 = scalar_lea.vmem %s8, %s1784
        $region104: #{tpu_custom_call.1} parent=87 // pred_fallthru
          _
      $region88: #{tpu_custom_call.1} parent=5 // pred_fallthru
        _
    $region6: #{tpu_custom_call.1} parent=1 // loop_footer
      %s31 = sadd.s32 1, %s27
    $region7: #{tpu_custom_call.1} parent=1 // loop_footer_branch
      %26 = sbr.rel target = $region3
    $region8: #{tpu_custom_call.1} parent=1 // loop_exit
      _
    %1786 = vsyncpa [#allocation5], 1
    %s1787 = scalar_lea.sflag [#allocation5], 1
    %1788 = vsyncpa %s1787, 1
    %1789 = vsyncpa [#allocation6], 1
    %s1790 = scalar_lea.sflag [#allocation6], 1
    %1791 = vsyncpa %s1790, 1
    %1792 = vsyncpa [#allocation16], 1
    %s1793 = scalar_lea.sflag [#allocation16], 1
    %1794 = vsyncpa %s1793, 1
    %1795 = vsyncpa [#allocation7], 1
    %s1796 = scalar_lea.sflag [#allocation7], 1
    %1797 = vsyncpa %s1796, 1
    %1798 = vsyncpa [#allocation8], 1
    %s1799 = scalar_lea.sflag [#allocation8], 1
    %1800 = vsyncpa %s1799, 1
    %1801 = vsyncpa [#allocation12], 1

</llo_original>
